<compile_context>
chip_gen: v6e
topology: v6e:2x2x1
jax: 0.10.0
libtpu: 0.0.40
codegen_flags: <defaults>
</compile_context>

<pallas_src>
import functools

import jax
import jax.numpy as jnp
from jax.experimental import pallas as pl
from jax.experimental.pallas import tpu as pltpu


def _default_vmem_limit():
    """Per-generation scoped-VMEM limit: 3/4 of physical, clamped to [32,64] MiB
    (v5e/v6e: 128 MiB physical -> 64 MiB; v7x: 64 MiB physical -> 48 MiB)."""
    cap = 64 * 1024 * 1024
    try:
        cap = int(pltpu.get_tpu_info().vmem_capacity_bytes)
    except Exception:
        pass
    return max(32 * 1024 * 1024, min((cap * 3) // 4, 64 * 1024 * 1024))


_VMEM_LIMIT = _default_vmem_limit()
# Byte budget for all double-buffered row-tiled streams of one pallas_call
# (leaves room for resident weights, scratch and compiler temporaries).
_TILE_BUDGET = _VMEM_LIMIT // 4


def _pick_row_tile(m, row_bytes, *, cap=2048):
    """Largest multiple-of-8 divisor of m whose double-buffered streams fit the
    byte budget.  Falls back to m (full extent, always layout-legal).
    TODO(synk): switch to a pl.cdiv grid with a masked tail for awkward m."""
    max_rows = min(cap, max(8, _TILE_BUDGET // max(1, 2 * row_bytes)))
    best = None
    t = 8
    while t <= min(max_rows, m):
        if m % t == 0:
            best = t
        t += 8
    return best if best is not None else m


def _pick_conv2_rows(ho, wo, cap_rows=512):
    """Output-row tile for the 3x3 conv: largest divisor tr of ho keeping the
    accumulator at <= cap_rows rows while the (tr*wo) out block stays 8-aligned
    (or equals the full extent)."""
    best = None
    for tr in range(1, ho + 1):
        if ho % tr == 0 and tr * wo <= cap_rows and ((tr * wo) % 8 == 0 or tr == ho):
            best = tr
    return best if best is not None else ho


def _mosaic_params(*semantics):
    return pltpu.CompilerParams(dimension_semantics=tuple(semantics),
                                vmem_limit_bytes=_VMEM_LIMIT)


# ---------------------------------------------------------------------------
# Kernels
# ---------------------------------------------------------------------------
def _bn_relu_matmul_kernel(x_ref, s_ref, t_ref, w_ref, sh_ref, o_ref, *, relu_out):
    """relu(upcast(x)*scale + shift) @ W(bf16) + out_shift, optional output ReLU."""
    a = x_ref[...].astype(jnp.float32) * s_ref[...] + t_ref[...]
    a = jnp.maximum(a, 0.0).astype(jnp.bfloat16)
    acc = jnp.dot(a, w_ref[...], preferred_element_type=jnp.float32) + sh_ref[...]
    if relu_out:
        acc = jnp.maximum(acc, 0.0)
    o_ref[...] = acc.astype(o_ref.dtype)


def _conv3x3_s1_kernel(x_ref, w_ref, sh_ref, o_ref, pad_ref, *, h, w, tr):
    """3x3 conv, stride 1, pad 1 (+ folded BN + ReLU) for one row tile.

    x_ref:   (1, h, w, C) bf16 unpadded image, resident across row tiles.
    pad_ref: (h+2, w+2, C) bf16 VMEM scratch = zero-padded image (built at j==0).
    w_ref:   (9, Cin, Cout) bf16, tap index kh*3 + kw.  sh_ref: (1, Cout) f32.
    o_ref:   (1, tr*w, Cout) bf16 block of the (N, h*w, Cout) output.
    """
    j = pl.program_id(1)
    c = x_ref.shape[-1]
    cout = w_ref.shape[-1]

    @pl.when(j == 0)
    def _build_pad():
        pad_ref[...] = jnp.zeros_like(pad_ref)
        pad_ref[pl.ds(1, h), pl.ds(1, w), :] = x_ref[0]

    r0 = j * tr
    acc = jnp.zeros((tr * w, cout), jnp.float32)
    for kh in range(3):
        for kw in range(3):
            win = pad_ref[pl.ds(r0 + kh, tr), pl.ds(kw, w), :]          # (tr, w, c)
            acc = acc + jnp.dot(win.reshape(tr * w, c), w_ref[kh * 3 + kw],
                                preferred_element_type=jnp.float32)
    out = jnp.maximum(acc + sh_ref[...], 0.0)
    o_ref[0] = out.astype(o_ref.dtype)


def _conv3x3_s2d_kernel(x_ref, w_ref, sh_ref, o_ref, *, stride, tr, wo):
    """3x3 conv (pad=1, stride) + folded BN + ReLU for one output-row tile.

    x_ref: (1, s*s, Hp/s, Wp/s, C) space-to-depth padded image (bf16), resident
           across row tiles; every tap window is a contiguous slice of a phase.
    o_ref: (1, tr*wo, Cout) bf16 block of the (N, Ho*Wo, Cout) output.
    """
    s = stride
    j = pl.program_id(1)
    c = x_ref.shape[-1]
    cout = w_ref.shape[-1]
    acc = jnp.zeros((tr * wo, cout), jnp.float32)
    for kh in range(3):
        for kw in range(3):
            phase = (kh % s) * s + (kw % s)
            r0, c0 = kh // s, kw // s
            win = x_ref[0, phase, pl.ds(j * tr + r0, tr), pl.ds(c0, wo), :]
            acc = acc + jnp.dot(win.reshape(tr * wo, c), w_ref[kh * 3 + kw],
                                preferred_element_type=jnp.float32)
    out = jnp.maximum(acc + sh_ref[...], 0.0)
    o_ref[0] = out.astype(o_ref.dtype)


def _conv3_sum_kernel(x_ref, w_ref, b_ref, y_ref, s_ref):
    """conv3 (1x1) fused with the SE squeeze (per-image channel sums).
    y is stored bf16; the squeeze accumulates the f32 pre-cast values."""
    j = pl.program_id(1)

    @pl.when(j == 0)
    def _init():
        s_ref[...] = jnp.zeros_like(s_ref)

    y = jnp.dot(x_ref[0], w_ref[...], preferred_element_type=jnp.float32) + b_ref[...]
    y_ref[0] = y.astype(y_ref.dtype)
    s_ref[0] = s_ref[0] + jnp.sum(y, axis=0, keepdims=True)


def _se_mlp_kernel(s_ref, w1_ref, b1_ref, w2_ref, b2_ref, g_ref, *, inv_hw):
    """SE excitation MLP: gate = sigmoid(relu(mean @ W1 + b1) @ W2 + b2)."""
    sums = s_ref[...]                                         # (N, 1, C)
    p = sums.reshape(sums.shape[0], sums.shape[2]) * inv_hw   # (N, C) mean
    h = jnp.maximum(
        jnp.dot(p, w1_ref[...], preferred_element_type=jnp.float32) + b1_ref[...],
        0.0)
    g = jax.nn.sigmoid(
        jnp.dot(h, w2_ref[...], preferred_element_type=jnp.float32) + b2_ref[...])
    g_ref[...] = g.reshape(g_ref.shape)


def _gate_residual_kernel(y_ref, id_ref, g_ref, o_ref):
    o_ref[0] = (y_ref[0].astype(jnp.float32) * g_ref[0]
                + id_ref[0].astype(jnp.float32))


# ---------------------------------------------------------------------------
# pallas_call wrappers
# ---------------------------------------------------------------------------
def bn_relu_matmul(x2d, bn_scale, bn_shift, w_bf16, out_shift, *, relu_out, out_dtype):
    m, k = x2d.shape
    n = w_bf16.shape[1]
    row_bytes = k * x2d.dtype.itemsize + n * jnp.dtype(out_dtype).itemsize
    tm = _pick_row_tile(m, row_bytes)
    kernel = functools.partial(_bn_relu_matmul_kernel, relu_out=relu_out)
    return pl.pallas_call(
        kernel,
        out_shape=jax.ShapeDtypeStruct((m, n), out_dtype),
        grid=(m // tm,),
        in_specs=[
            pl.BlockSpec((tm, k), lambda i: (i, 0)),
            pl.BlockSpec((1, k), lambda i: (0, 0)),
            pl.BlockSpec((1, k), lambda i: (0, 0)),
            pl.BlockSpec((k, n), lambda i: (0, 0)),
            pl.BlockSpec((1, n), lambda i: (0, 0)),
        ],
        out_specs=pl.BlockSpec((tm, n), lambda i: (i, 0)),
        compiler_params=_mosaic_params("parallel"),
    )(x2d, bn_scale, bn_shift, w_bf16, out_shift)


def conv3x3_s1(x_img, w9, out_shift, *, h, w, out_dtype):
    """Stride-1 3x3 conv; zero-pad built in a VMEM scratch (no HBM pad pass)."""
    n, _, _, c = x_img.shape
    cout = w9.shape[-1]
    tr = _pick_conv2_rows(h, w)
    kernel = functools.partial(_conv3x3_s1_kernel, h=h, w=w, tr=tr)
    return pl.pallas_call(
        kernel,
        out_shape=jax.ShapeDtypeStruct((n, h * w, cout), out_dtype),
        grid=(n, h // tr),
        in_specs=[
            pl.BlockSpec((1, h, w, c), lambda i, j: (i, 0, 0, 0)),
            pl.BlockSpec((9, c, cout), lambda i, j: (0, 0, 0)),
            pl.BlockSpec((1, cout), lambda i, j: (0, 0)),
        ],
        out_specs=pl.BlockSpec((1, tr * w, cout), lambda i, j: (i, j, 0)),
        scratch_shapes=[pltpu.VMEM((h + 2, w + 2, c), x_img.dtype)],
        # row axis carries the padded-image scratch -> must stay on one core.
        compiler_params=_mosaic_params("parallel", "arbitrary"),
    )(x_img, w9, out_shift)


def conv3x3_s2d(x_s2d, w9, out_shift, *, stride, ho, wo, out_dtype):
    """Strided 3x3 conv over a space-to-depth padded input (row-tiled)."""
    n, ss, hs, ws, c = x_s2d.shape
    cout = w9.shape[-1]
    tr = _pick_conv2_rows(ho, wo)
    kernel = functools.partial(_conv3x3_s2d_kernel, stride=stride, tr=tr, wo=wo)
    return pl.pallas_call(
        kernel,
        out_shape=jax.ShapeDtypeStruct((n, ho * wo, cout), out_dtype),
        grid=(n, ho // tr),
        in_specs=[
            pl.BlockSpec((1, ss, hs, ws, c), lambda i, j: (i, 0, 0, 0, 0)),
            pl.BlockSpec((9, c, cout), lambda i, j: (0, 0, 0)),
            pl.BlockSpec((1, cout), lambda i, j: (0, 0)),
        ],
        out_specs=pl.BlockSpec((1, tr * wo, cout), lambda i, j: (i, j, 0)),
        compiler_params=_mosaic_params("parallel", "parallel"),
    )(x_s2d, w9, out_shift)


def conv3_se_squeeze(x3, w_bf16, b):
    n, hw, cin = x3.shape
    cout = w_bf16.shape[1]
    row_bytes = cin * x3.dtype.itemsize + cout * 2    # bf16 y out
    thw = _pick_row_tile(hw, row_bytes)
    return pl.pallas_call(
        _conv3_sum_kernel,
        out_shape=(jax.ShapeDtypeStruct((n, hw, cout), jnp.bfloat16),
                   jax.ShapeDtypeStruct((n, 1, cout), jnp.float32)),
        grid=(n, hw // thw),
        in_specs=[
            pl.BlockSpec((1, thw, cin), lambda i, j: (i, j, 0)),
            pl.BlockSpec((cin, cout), lambda i, j: (0, 0)),
            pl.BlockSpec((1, cout), lambda i, j: (0, 0)),
        ],
        out_specs=(
            pl.BlockSpec((1, thw, cout), lambda i, j: (i, j, 0)),
            pl.BlockSpec((1, 1, cout), lambda i, j: (i, 0, 0)),
        ),
        # sums are accumulated across j -> j must not be split across cores.
        compiler_params=_mosaic_params("parallel", "arbitrary"),
    )(x3, w_bf16, b)


def se_excite(ssum, w1, b1, w2, b2, *, inv_hw):
    kernel = functools.partial(_se_mlp_kernel, inv_hw=inv_hw)
    vmem = pl.BlockSpec(memory_space=pltpu.MemorySpace.VMEM)
    return pl.pallas_call(
        kernel,
        out_shape=jax.ShapeDtypeStruct(ssum.shape, jnp.float32),
        in_specs=[vmem, vmem, vmem, vmem, vmem],
        out_specs=vmem,
    )(ssum, w1, b1, w2, b2)


def gate_residual(y, identity, gates):
    n, hw, c = y.shape
    row_bytes = c * (y.dtype.itemsize + identity.dtype.itemsize + 4)
    thw = _pick_row_tile(hw, row_bytes)
    return pl.pallas_call(
        _gate_residual_kernel,
        out_shape=jax.ShapeDtypeStruct((n, hw, c), jnp.float32),
        grid=(n, hw // thw),
        in_specs=[
            pl.BlockSpec((1, thw, c), lambda i, j: (i, j, 0)),
            pl.BlockSpec((1, thw, c), lambda i, j: (i, j, 0)),
            pl.BlockSpec((1, 1, c), lambda i, j: (i, 0, 0)),
        ],
        out_specs=pl.BlockSpec((1, thw, c), lambda i, j: (i, j, 0)),
        compiler_params=_mosaic_params("parallel", "parallel"),
    )(y, identity, gates)


# ---------------------------------------------------------------------------
# Forward pass (glue: layout, padding / space-to-depth for stride>1)
# ---------------------------------------------------------------------------
def se_bottleneck_forward(x_nchw, params, stride):
    q = params
    x_nhwc = jnp.transpose(x_nchw, (0, 2, 3, 1))                      # NHWC
    n, h, w, cin = x_nhwc.shape
    x_bf = x_nhwc.astype(jnp.bfloat16)
    cmid = q["conv1_w"].shape[1]
    cout = q["conv3_w"].shape[1]
    ho = (h - 1) // stride + 1
    wo = (w - 1) // stride + 1

    # conv1 (1x1): bn1+relu prologue, folded bn2 + relu epilogue, bf16 output.
    out1 = bn_relu_matmul(
        x_bf.reshape(n * h * w, cin), q["bn1_scale"], q["bn1_shift"],
        q["conv1_w"], q["conv1_shift"], relu_out=True, out_dtype=jnp.bfloat16)

    # Identity / downsample path (downsample consumes strided relu(bn1(x))).
    if q["down_w"] is not None:
        xds = jnp.transpose(x_nchw[:, :, ::stride, ::stride],
                            (0, 2, 3, 1)).astype(jnp.bfloat16)
        identity = bn_relu_matmul(
            xds.reshape(n * ho * wo, cin), q["bn1_scale"], q["bn1_shift"],
            q["down_w"], q["down_b"], relu_out=False, out_dtype=jnp.bfloat16,
        ).reshape(n, ho * wo, cout)
    else:
        identity = x_nhwc.astype(jnp.float32).reshape(n, h * w, cin)

    # conv2 (3x3, pad=1, stride) with folded bn3 + relu, row-tiled accumulator.
    if stride == 1:
        out2 = conv3x3_s1(out1.reshape(n, h, w, cmid), q["conv2_w"],
                          q["conv2_shift"], h=h, w=w, out_dtype=jnp.bfloat16)
    else:
        hp, wp = h + 2, w + 2
        hp2 = ((hp + stride - 1) // stride) * stride
        wp2 = ((wp + stride - 1) // stride) * stride
        xp = jnp.pad(out1.reshape(n, h, w, cmid),
                     ((0, 0), (1, 1 + hp2 - hp), (1, 1 + wp2 - wp), (0, 0)))
        x_s2d = xp.reshape(n, hp2 // stride, stride, wp2 // stride, stride, cmid)
        x_s2d = x_s2d.transpose(0, 2, 4, 1, 3, 5).reshape(
            n, stride * stride, hp2 // stride, wp2 // stride, cmid)
        out2 = conv3x3_s2d(x_s2d, q["conv2_w"], q["conv2_shift"],
                           stride=stride, ho=ho, wo=wo, out_dtype=jnp.bfloat16)

    # conv3 (1x1) fused with the SE squeeze (per-image channel sums).
    y, ssum = conv3_se_squeeze(out2, q["conv3_w"], q["conv3_b"])

    # SE excitation MLP -> per-image channel gates.
    gates = se_excite(ssum, q["se_w1"], q["se_b1"], q["se_w2"], q["se_b2"],
                      inv_hw=1.0 / float(ho * wo))

    # Sigmoid gating + residual add (f32 result).
    out = gate_residual(y, identity, gates)

    return jnp.transpose(out.reshape(n, ho, wo, cout), (0, 3, 1, 2))   # NCHW


# ---------------------------------------------------------------------------
# Parameter prep: fold BN into conv weights, cast matmul operands to bf16.
# ---------------------------------------------------------------------------
def prepare_params(p):
    q = {}
    q["bn1_scale"], q["bn1_shift"] = p["bn1_scale"], p["bn1_shift"]
    # conv1 + bn2:  relu((a@W1+b1)*s2+t2) = relu(a@(W1*s2) + (b1*s2+t2))
    q["conv1_w"] = (p["conv1_w"] * p["bn2_scale"]).astype(jnp.bfloat16)
    q["conv1_shift"] = p["conv1_b"] * p["bn2_scale"] + p["bn2_shift"]
    # conv2 + bn3 (HWIO weight, per-output-channel scale), taps flattened kh*3+kw
    w2 = p["conv2_w"] * p["bn3_scale"].reshape(1, 1, 1, -1)
    q["conv2_w"] = w2.reshape(9, w2.shape[2], w2.shape[3]).astype(jnp.bfloat16)
    q["conv2_shift"] = p["conv2_b"] * p["bn3_scale"] + p["bn3_shift"]
    q["conv3_w"] = p["conv3_w"].astype(jnp.bfloat16)
    q["conv3_b"] = p["conv3_b"]
    if p["down_w"] is not None:
        q["down_w"] = p["down_w"].astype(jnp.bfloat16)
        q["down_b"] = p["down_b"]
    else:
        q["down_w"] = None
        q["down_b"] = None
    q["se_w1"], q["se_b1"] = p["se_w1"], p["se_b1"]
    q["se_w2"], q["se_b2"] = p["se_w2"], p["se_b2"]
    return q


# ---------------------------------------------------------------------------
# Pure-JAX reference (same prepared params / precision policy, XLA ops)
# ---------------------------------------------------------------------------
def ref_forward(x_nchw, q, stride):
    x = jnp.transpose(x_nchw, (0, 2, 3, 1))
    n, h, w, cin = x.shape
    cmid = q["conv1_w"].shape[1]
    cout = q["conv3_w"].shape[1]
    ho = (h - 1) // stride + 1
    wo = (w - 1) // stride + 1

    x_bf = x.astype(jnp.bfloat16)
    a = jnp.maximum(x_bf.astype(jnp.float32) * q["bn1_scale"][0]
                    + q["bn1_shift"][0], 0.0)
    a_bf = a.astype(jnp.bfloat16)

    if q["down_w"] is not None:
        ds = a_bf[:, ::stride, ::stride, :].reshape(n * ho * wo, cin)
        identity = (jnp.dot(ds, q["down_w"], preferred_element_type=jnp.float32)
                    + q["down_b"]).astype(jnp.bfloat16).astype(jnp.float32)
        identity = identity.reshape(n, ho * wo, cout)
    else:
        identity = x.astype(jnp.float32).reshape(n, h * w, cin)

    o1 = jnp.maximum(
        jnp.dot(a_bf.reshape(n * h * w, cin), q["conv1_w"],
                preferred_element_type=jnp.float32) + q["conv1_shift"], 0.0
    ).astype(jnp.bfloat16).reshape(n, h, w, cmid)

    w2 = q["conv2_w"].reshape(3, 3, cmid, cmid)
    o2 = jax.lax.conv_general_dilated(
        o1, w2, (stride, stride), [(1, 1), (1, 1)],
        dimension_numbers=("NHWC", "HWIO", "NHWC"),
        preferred_element_type=jnp.float32)
    o2 = jnp.maximum(o2 + q["conv2_shift"].reshape(1, 1, 1, -1),
                     0.0).astype(jnp.bfloat16)

    y_f32 = (jnp.dot(o2.reshape(n * ho * wo, cmid), q["conv3_w"],
                     preferred_element_type=jnp.float32)
             + q["conv3_b"]).reshape(n, ho * wo, cout)
    y = y_f32.astype(jnp.bfloat16)

    s = jnp.mean(y_f32, axis=1)
    hh = jnp.maximum(s @ q["se_w1"] + q["se_b1"], 0.0)
    g = jax.nn.sigmoid(hh @ q["se_w2"] + q["se_b2"])
    out = y.astype(jnp.float32) * g[:, None, :] + identity
    return jnp.transpose(out.reshape(n, ho, wo, cout), (0, 3, 1, 2))


# ---------------------------------------------------------------------------
# Deterministic parameter init (module-level params, f32)
# ---------------------------------------------------------------------------
def init_params(key, in_channels, out_channels, stride, reduction=8, eps=1e-5):
    cmid = out_channels // 4  # expansion = 4
    cse = out_channels // reduction
    keys = iter(jax.random.split(key, 32))

    def bn(c):
        gamma = jax.random.uniform(next(keys), (c,), minval=0.5, maxval=1.5)
        beta = 0.1 * jax.random.normal(next(keys), (c,))
        mean = 0.1 * jax.random.normal(next(keys), (c,))
        var = jax.random.uniform(next(keys), (c,), minval=0.5, maxval=1.5)
        scale = gamma / jnp.sqrt(var + eps)
        shift = beta - mean * scale
        return (scale.reshape(1, c).astype(jnp.float32),
                shift.reshape(1, c).astype(jnp.float32))

    def mat(shape, fan_in):
        return (jax.random.normal(next(keys), shape)
                / jnp.sqrt(fan_in)).astype(jnp.float32)

    def vec(c):
        return (0.1 * jax.random.normal(next(keys), (1, c))).astype(jnp.float32)

    p = {}
    p["bn1_scale"], p["bn1_shift"] = bn(in_channels)
    p["conv1_w"] = mat((in_channels, cmid), in_channels)
    p["conv1_b"] = vec(cmid)
    p["bn2_scale"], p["bn2_shift"] = bn(cmid)
    p["conv2_w"] = mat((3, 3, cmid, cmid), 9 * cmid)  # HWIO
    p["conv2_b"] = vec(cmid)
    p["bn3_scale"], p["bn3_shift"] = bn(cmid)
    p["conv3_w"] = mat((cmid, out_channels), cmid)
    p["conv3_b"] = vec(out_channels)
    if stride != 1 or in_channels != out_channels:
        p["down_w"] = mat((in_channels, out_channels), in_channels)
        p["down_b"] = vec(out_channels)
    else:
        p["down_w"] = None
        p["down_b"] = None
    p["se_w1"] = mat((out_channels, cse), out_channels)
    p["se_b1"] = vec(cse)
    p["se_w2"] = mat((cse, out_channels), cse)
    p["se_b2"] = vec(out_channels)
    return p


if __name__ == "__main__":
    key = jax.random.PRNGKey(0)
    # (N, Cin, H, W, Cout, stride): exercise stride-2 downsample, stride-1
    # identity, and stride-1 downsample paths.
    configs = [
        (2, 16, 16, 16, 32, 2),
        (2, 32, 8, 8, 32, 1),
        (2, 16, 8, 8, 32, 1),
    ]
    for idx, (N, Cin, H, W, Cout, stride) in enumerate(configs):
        k = jax.random.fold_in(key, idx)
        raw = init_params(k, Cin, Cout, stride)
        q = prepare_params(raw)
        x = jax.random.normal(jax.random.fold_in(k, 99), (N, Cin, H, W), jnp.float32)

        fwd = jax.jit(functools.partial(se_bottleneck_forward, stride=stride))
        out = jax.block_until_ready(fwd(x, q))

        ref = ref_forward(x, q, stride)
        Ho = (H - 1) // stride + 1
        Wo = (W - 1) // stride + 1
        assert out.shape == (N, Cout, Ho, Wo), out.shape
        max_err = float(jnp.max(jnp.abs(out - ref)))
        assert jnp.allclose(out, ref, atol=1e-2, rtol=1e-2), max_err

    print("KERNEL_OK")
</pallas_src>

<mosaic_0001>
module attributes {stable_mosaic.version = 11 : i64} {
  func.func @_bn_relu_matmul_kernel(%arg0: i32, %arg1: memref<512x16xbf16, #tpu.memory_space<vmem>>, %arg2: memref<1x16xf32, #tpu.memory_space<vmem>>, %arg3: memref<1x16xf32, #tpu.memory_space<vmem>>, %arg4: memref<16x8xbf16, #tpu.memory_space<vmem>>, %arg5: memref<1x8xf32, #tpu.memory_space<vmem>>, %arg6: memref<512x8xbf16, #tpu.memory_space<vmem>>) attributes {dimension_semantics = [#tpu.dimension_semantics<parallel>], iteration_bounds = array<i64: 1>, scalar_prefetch = 0 : i64, scratch_operands = 0 : i64, tpu.core_type = #tpu.core_type<tc>, window_params = [{transform_indices = @transform_0, window_bounds = array<i64: 512, 16>}, {pipeline_mode = #tpu.pipeline_mode<synchronous>, transform_indices = @transform_1, window_bounds = array<i64: 1, 16>}, {pipeline_mode = #tpu.pipeline_mode<synchronous>, transform_indices = @transform_2, window_bounds = array<i64: 1, 16>}, {pipeline_mode = #tpu.pipeline_mode<synchronous>, transform_indices = @transform_3, window_bounds = array<i64: 16, 8>}, {pipeline_mode = #tpu.pipeline_mode<synchronous>, transform_indices = @transform_4, window_bounds = array<i64: 1, 8>}, {transform_indices = @transform_5, window_bounds = array<i64: 512, 8>}]} {
    %c0 = arith.constant 0 : index
    %c0_0 = arith.constant 0 : index
    %0 = vector.load %arg1[%c0, %c0_0] : memref<512x16xbf16, #tpu.memory_space<vmem>>, vector<512x16xbf16>
    %1 = arith.extf %0 : vector<512x16xbf16> to vector<512x16xf32>
    %c0_1 = arith.constant 0 : index
    %c0_2 = arith.constant 0 : index
    %2 = vector.load %arg2[%c0_1, %c0_2] : memref<1x16xf32, #tpu.memory_space<vmem>>, vector<1x16xf32>
    %3 = vector.broadcast %2 : vector<1x16xf32> to vector<512x16xf32>
    %4 = arith.mulf %1, %3 : vector<512x16xf32>
    %c0_3 = arith.constant 0 : index
    %c0_4 = arith.constant 0 : index
    %5 = vector.load %arg3[%c0_3, %c0_4] : memref<1x16xf32, #tpu.memory_space<vmem>>, vector<1x16xf32>
    %6 = vector.broadcast %5 : vector<1x16xf32> to vector<512x16xf32>
    %7 = arith.addf %4, %6 : vector<512x16xf32>
    %cst = arith.constant 0.000000e+00 : f32
    %8 = vector.broadcast %cst : f32 to vector<512x16xf32>
    %9 = arith.maximumf %7, %8 : vector<512x16xf32>
    %10 = arith.truncf %9 : vector<512x16xf32> to vector<512x16xbf16>
    %c0_5 = arith.constant 0 : index
    %c0_6 = arith.constant 0 : index
    %11 = vector.load %arg4[%c0_5, %c0_6] : memref<16x8xbf16, #tpu.memory_space<vmem>>, vector<16x8xbf16>
    %cst_7 = arith.constant dense<0.000000e+00> : vector<512x8xf32>
    %12 = tpu.matmul %10, %11, %cst_7 {dimension_numbers = #tpu.dot_dimension_numbers<[1], [0], [0], [1], [0, 0, 1, 1], [], []>} : vector<512x16xbf16>, vector<16x8xbf16>, vector<512x8xf32> -> vector<512x8xf32>
    %c0_8 = arith.constant 0 : index
    %c0_9 = arith.constant 0 : index
    %13 = vector.load %arg5[%c0_8, %c0_9] : memref<1x8xf32, #tpu.memory_space<vmem>>, vector<1x8xf32>
    %14 = vector.broadcast %13 : vector<1x8xf32> to vector<512x8xf32>
    %15 = arith.addf %12, %14 : vector<512x8xf32>
    %cst_10 = arith.constant 0.000000e+00 : f32
    %16 = vector.broadcast %cst_10 : f32 to vector<512x8xf32>
    %17 = arith.maximumf %15, %16 : vector<512x8xf32>
    %18 = arith.truncf %17 : vector<512x8xf32> to vector<512x8xbf16>
    %c0_11 = arith.constant 0 : index
    %c0_12 = arith.constant 0 : index
    %19 = vector.load %arg6[%c0_11, %c0_12] : memref<512x8xbf16, #tpu.memory_space<vmem>>, vector<512x8xbf16>
    tpu.vector_store %arg6[%c0_11, %c0_12], %18 {strides = array<i32>} : memref<512x8xbf16, #tpu.memory_space<vmem>>, vector<512x8xbf16>,
    return
  }
  func.func @transform_0(%arg0: i32) -> (i32, i32) {
    %c0_i32 = arith.constant 0 : i32
    %c0_i32_0 = arith.constant 0 : i32
    return %arg0, %c0_i32 : i32, i32
  }
  func.func @transform_1(%arg0: i32) -> (i32, i32) {
    %c0_i32 = arith.constant 0 : i32
    %c0_i32_0 = arith.constant 0 : i32
    %c0_i32_1 = arith.constant 0 : i32
    return %c0_i32, %c0_i32_0 : i32, i32
  }
  func.func @transform_2(%arg0: i32) -> (i32, i32) {
    %c0_i32 = arith.constant 0 : i32
    %c0_i32_0 = arith.constant 0 : i32
    %c0_i32_1 = arith.constant 0 : i32
    return %c0_i32, %c0_i32_0 : i32, i32
  }
  func.func @transform_3(%arg0: i32) -> (i32, i32) {
    %c0_i32 = arith.constant 0 : i32
    %c0_i32_0 = arith.constant 0 : i32
    %c0_i32_1 = arith.constant 0 : i32
    return %c0_i32, %c0_i32_0 : i32, i32
  }
  func.func @transform_4(%arg0: i32) -> (i32, i32) {
    %c0_i32 = arith.constant 0 : i32
    %c0_i32_0 = arith.constant 0 : i32
    %c0_i32_1 = arith.constant 0 : i32
    return %c0_i32, %c0_i32_0 : i32, i32
  }
  func.func @transform_5(%arg0: i32) -> (i32, i32) {
    %c0_i32 = arith.constant 0 : i32
    %c0_i32_0 = arith.constant 0 : i32
    return %arg0, %c0_i32 : i32, i32
  }
}

module attributes {stable_mosaic.version = 11 : i64} {
  func.func @_conv3x3_s2d_kernel(%arg0: i32, %arg1: i32, %arg2: memref<1x4x9x9x8xbf16, #tpu.memory_space<vmem>>, %arg3: memref<9x8x8xbf16, #tpu.memory_space<vmem>>, %arg4: memref<1x8xf32, #tpu.memory_space<vmem>>, %arg5: memref<1x64x8xbf16, #tpu.memory_space<vmem>>) attributes {dimension_semantics = [#tpu.dimension_semantics<parallel>, #tpu.dimension_semantics<parallel>], iteration_bounds = array<i64: 2, 1>, scalar_prefetch = 0 : i64, scratch_operands = 0 : i64, tpu.core_type = #tpu.core_type<tc>, window_params = [{transform_indices = @transform_0, window_bounds = array<i64: 1, 4, 9, 9, 8>}, {pipeline_mode = #tpu.pipeline_mode<synchronous>, transform_indices = @transform_1, window_bounds = array<i64: 9, 8, 8>}, {pipeline_mode = #tpu.pipeline_mode<synchronous>, transform_indices = @transform_2, window_bounds = array<i64: 1, 8>}, {transform_indices = @transform_3, window_bounds = array<i64: 1, 64, 8>}]} {
    %cst = arith.constant 0.000000e+00 : f32
    %0 = vector.broadcast %cst : f32 to vector<64x8xf32>
    %c8_i32 = arith.constant 8 : i32
    %1 = arith.muli %arg1, %c8_i32 : i32
    %c0_i32 = arith.constant 0 : i32
    %2 = arith.addi %1, %c0_i32 : i32
    %c0 = arith.constant 0 : index
    %c0_0 = arith.constant 0 : index
    %3 = arith.index_cast %2 : i32 to index
    %c0_1 = arith.constant 0 : index
    %c0_2 = arith.constant 0 : index
    %4 = vector.load %arg2[%c0, %c0_0, %3, %c0_1, %c0_2] : memref<1x4x9x9x8xbf16, #tpu.memory_space<vmem>>, vector<1x1x8x8x8xbf16>
    %5 = vector.shape_cast %4 : vector<1x1x8x8x8xbf16> to vector<8x8x8xbf16>
    %6 = vector.shape_cast %5 : vector<8x8x8xbf16> to vector<64x8xbf16>
    %c0_3 = arith.constant 0 : index
    %c0_4 = arith.constant 0 : index
    %c0_5 = arith.constant 0 : index
    %7 = vector.load %arg3[%c0_3, %c0_4, %c0_5] : memref<9x8x8xbf16, #tpu.memory_space<vmem>>, vector<1x8x8xbf16>
    %8 = vector.shape_cast %7 : vector<1x8x8xbf16> to vector<8x8xbf16>
    %cst_6 = arith.constant dense<0.000000e+00> : vector<64x8xf32>
    %9 = tpu.matmul %6, %8, %cst_6 {dimension_numbers = #tpu.dot_dimension_numbers<[1], [0], [0], [1], [0, 0, 1, 1], [], []>} : vector<64x8xbf16>, vector<8x8xbf16>, vector<64x8xf32> -> vector<64x8xf32>
    %10 = arith.addf %0, %9 : vector<64x8xf32>
    %c8_i32_7 = arith.constant 8 : i32
    %11 = arith.muli %arg1, %c8_i32_7 : i32
    %c0_i32_8 = arith.constant 0 : i32
    %12 = arith.addi %11, %c0_i32_8 : i32
    %c0_9 = arith.constant 0 : index
    %c1 = arith.constant 1 : index
    %13 = arith.index_cast %12 : i32 to index
    %c0_10 = arith.constant 0 : index
    %c0_11 = arith.constant 0 : index
    %14 = vector.load %arg2[%c0_9, %c1, %13, %c0_10, %c0_11] : memref<1x4x9x9x8xbf16, #tpu.memory_space<vmem>>, vector<1x1x8x8x8xbf16>
    %15 = vector.shape_cast %14 : vector<1x1x8x8x8xbf16> to vector<8x8x8xbf16>
    %16 = vector.shape_cast %15 : vector<8x8x8xbf16> to vector<64x8xbf16>
    %c1_12 = arith.constant 1 : index
    %c0_13 = arith.constant 0 : index
    %c0_14 = arith.constant 0 : index
    %17 = vector.load %arg3[%c1_12, %c0_13, %c0_14] : memref<9x8x8xbf16, #tpu.memory_space<vmem>>, vector<1x8x8xbf16>
    %18 = vector.shape_cast %17 : vector<1x8x8xbf16> to vector<8x8xbf16>
    %cst_15 = arith.constant dense<0.000000e+00> : vector<64x8xf32>
    %19 = tpu.matmul %16, %18, %cst_15 {dimension_numbers = #tpu.dot_dimension_numbers<[1], [0], [0], [1], [0, 0, 1, 1], [], []>} : vector<64x8xbf16>, vector<8x8xbf16>, vector<64x8xf32> -> vector<64x8xf32>
    %20 = arith.addf %10, %19 : vector<64x8xf32>
    %c8_i32_16 = arith.constant 8 : i32
    %21 = arith.muli %arg1, %c8_i32_16 : i32
    %c0_i32_17 = arith.constant 0 : i32
    %22 = arith.addi %21, %c0_i32_17 : i32
    %c0_18 = arith.constant 0 : index
    %c0_19 = arith.constant 0 : index
    %23 = arith.index_cast %22 : i32 to index
    %c1_20 = arith.constant 1 : index
    %c0_21 = arith.constant 0 : index
    %24 = vector.load %arg2[%c0_18, %c0_19, %23, %c1_20, %c0_21] : memref<1x4x9x9x8xbf16, #tpu.memory_space<vmem>>, vector<1x1x8x8x8xbf16>
    %25 = vector.shape_cast %24 : vector<1x1x8x8x8xbf16> to vector<8x8x8xbf16>
    %26 = vector.shape_cast %25 : vector<8x8x8xbf16> to vector<64x8xbf16>
    %c2 = arith.constant 2 : index
    %c0_22 = arith.constant 0 : index
    %c0_23 = arith.constant 0 : index
    %27 = vector.load %arg3[%c2, %c0_22, %c0_23] : memref<9x8x8xbf16, #tpu.memory_space<vmem>>, vector<1x8x8xbf16>
    %28 = vector.shape_cast %27 : vector<1x8x8xbf16> to vector<8x8xbf16>
    %cst_24 = arith.constant dense<0.000000e+00> : vector<64x8xf32>
    %29 = tpu.matmul %26, %28, %cst_24 {dimension_numbers = #tpu.dot_dimension_numbers<[1], [0], [0], [1], [0, 0, 1, 1], [], []>} : vector<64x8xbf16>, vector<8x8xbf16>, vector<64x8xf32> -> vector<64x8xf32>
    %30 = arith.addf %20, %29 : vector<64x8xf32>
    %c8_i32_25 = arith.constant 8 : i32
    %31 = arith.muli %arg1, %c8_i32_25 : i32
    %c0_i32_26 = arith.constant 0 : i32
    %32 = arith.addi %31, %c0_i32_26 : i32
    %c0_27 = arith.constant 0 : index
    %c2_28 = arith.constant 2 : index
    %33 = arith.index_cast %32 : i32 to index
    %c0_29 = arith.constant 0 : index
    %c0_30 = arith.constant 0 : index
    %34 = vector.load %arg2[%c0_27, %c2_28, %33, %c0_29, %c0_30] : memref<1x4x9x9x8xbf16, #tpu.memory_space<vmem>>, vector<1x1x8x8x8xbf16>
    %35 = vector.shape_cast %34 : vector<1x1x8x8x8xbf16> to vector<8x8x8xbf16>
    %36 = vector.shape_cast %35 : vector<8x8x8xbf16> to vector<64x8xbf16>
    %c3 = arith.constant 3 : index
    %c0_31 = arith.constant 0 : index
    %c0_32 = arith.constant 0 : index
    %37 = vector.load %arg3[%c3, %c0_31, %c0_32] : memref<9x8x8xbf16, #tpu.memory_space<vmem>>, vector<1x8x8xbf16>
    %38 = vector.shape_cast %37 : vector<1x8x8xbf16> to vector<8x8xbf16>
    %cst_33 = arith.constant dense<0.000000e+00> : vector<64x8xf32>
    %39 = tpu.matmul %36, %38, %cst_33 {dimension_numbers = #tpu.dot_dimension_numbers<[1], [0], [0], [1], [0, 0, 1, 1], [], []>} : vector<64x8xbf16>, vector<8x8xbf16>, vector<64x8xf32> -> vector<64x8xf32>
    %40 = arith.addf %30, %39 : vector<64x8xf32>
    %c8_i32_34 = arith.constant 8 : i32
    %41 = arith.muli %arg1, %c8_i32_34 : i32
    %c0_i32_35 = arith.constant 0 : i32
    %42 = arith.addi %41, %c0_i32_35 : i32
    %c0_36 = arith.constant 0 : index
    %c3_37 = arith.constant 3 : index
    %43 = arith.index_cast %42 : i32 to index
    %c0_38 = arith.constant 0 : index
    %c0_39 = arith.constant 0 : index
    %44 = vector.load %arg2[%c0_36, %c3_37, %43, %c0_38, %c0_39] : memref<1x4x9x9x8xbf16, #tpu.memory_space<vmem>>, vector<1x1x8x8x8xbf16>
    %45 = vector.shape_cast %44 : vector<1x1x8x8x8xbf16> to vector<8x8x8xbf16>
    %46 = vector.shape_cast %45 : vector<8x8x8xbf16> to vector<64x8xbf16>
    %c4 = arith.constant 4 : index
    %c0_40 = arith.constant 0 : index
    %c0_41 = arith.constant 0 : index
    %47 = vector.load %arg3[%c4, %c0_40, %c0_41] : memref<9x8x8xbf16, #tpu.memory_space<vmem>>, vector<1x8x8xbf16>
    %48 = vector.shape_cast %47 : vector<1x8x8xbf16> to vector<8x8xbf16>
    %cst_42 = arith.constant dense<0.000000e+00> : vector<64x8xf32>
    %49 = tpu.matmul %46, %48, %cst_42 {dimension_numbers = #tpu.dot_dimension_numbers<[1], [0], [0], [1], [0, 0, 1, 1], [], []>} : vector<64x8xbf16>, vector<8x8xbf16>, vector<64x8xf32> -> vector<64x8xf32>
    %50 = arith.addf %40, %49 : vector<64x8xf32>
    %c8_i32_43 = arith.constant 8 : i32
    %51 = arith.muli %arg1, %c8_i32_43 : i32
    %c0_i32_44 = arith.constant 0 : i32
    %52 = arith.addi %51, %c0_i32_44 : i32
    %c0_45 = arith.constant 0 : index
    %c2_46 = arith.constant 2 : index
    %53 = arith.index_cast %52 : i32 to index
    %c1_47 = arith.constant 1 : index
    %c0_48 = arith.constant 0 : index
    %54 = vector.load %arg2[%c0_45, %c2_46, %53, %c1_47, %c0_48] : memref<1x4x9x9x8xbf16, #tpu.memory_space<vmem>>, vector<1x1x8x8x8xbf16>
    %55 = vector.shape_cast %54 : vector<1x1x8x8x8xbf16> to vector<8x8x8xbf16>
    %56 = vector.shape_cast %55 : vector<8x8x8xbf16> to vector<64x8xbf16>
    %c5 = arith.constant 5 : index
    %c0_49 = arith.constant 0 : index
    %c0_50 = arith.constant 0 : index
    %57 = vector.load %arg3[%c5, %c0_49, %c0_50] : memref<9x8x8xbf16, #tpu.memory_space<vmem>>, vector<1x8x8xbf16>
    %58 = vector.shape_cast %57 : vector<1x8x8xbf16> to vector<8x8xbf16>
    %cst_51 = arith.constant dense<0.000000e+00> : vector<64x8xf32>
    %59 = tpu.matmul %56, %58, %cst_51 {dimension_numbers = #tpu.dot_dimension_numbers<[1], [0], [0], [1], [0, 0, 1, 1], [], []>} : vector<64x8xbf16>, vector<8x8xbf16>, vector<64x8xf32> -> vector<64x8xf32>
    %60 = arith.addf %50, %59 : vector<64x8xf32>
    %c8_i32_52 = arith.constant 8 : i32
    %61 = arith.muli %arg1, %c8_i32_52 : i32
    %c1_i32 = arith.constant 1 : i32
    %62 = arith.addi %61, %c1_i32 : i32
    %c0_53 = arith.constant 0 : index
    %c0_54 = arith.constant 0 : index
    %63 = arith.index_cast %62 : i32 to index
    %c0_55 = arith.constant 0 : index
    %c0_56 = arith.constant 0 : index
    %64 = vector.load %arg2[%c0_53, %c0_54, %63, %c0_55, %c0_56] : memref<1x4x9x9x8xbf16, #tpu.memory_space<vmem>>, vector<1x1x8x8x8xbf16>
    %65 = vector.shape_cast %64 : vector<1x1x8x8x8xbf16> to vector<8x8x8xbf16>
    %66 = vector.shape_cast %65 : vector<8x8x8xbf16> to vector<64x8xbf16>
    %c6 = arith.constant 6 : index
    %c0_57 = arith.constant 0 : index
    %c0_58 = arith.constant 0 : index
    %67 = vector.load %arg3[%c6, %c0_57, %c0_58] : memref<9x8x8xbf16, #tpu.memory_space<vmem>>, vector<1x8x8xbf16>
    %68 = vector.shape_cast %67 : vector<1x8x8xbf16> to vector<8x8xbf16>
    %cst_59 = arith.constant dense<0.000000e+00> : vector<64x8xf32>
    %69 = tpu.matmul %66, %68, %cst_59 {dimension_numbers = #tpu.dot_dimension_numbers<[1], [0], [0], [1], [0, 0, 1, 1], [], []>} : vector<64x8xbf16>, vector<8x8xbf16>, vector<64x8xf32> -> vector<64x8xf32>
    %70 = arith.addf %60, %69 : vector<64x8xf32>
    %c8_i32_60 = arith.constant 8 : i32
    %71 = arith.muli %arg1, %c8_i32_60 : i32
    %c1_i32_61 = arith.constant 1 : i32
    %72 = arith.addi %71, %c1_i32_61 : i32
    %c0_62 = arith.constant 0 : index
    %c1_63 = arith.constant 1 : index
    %73 = arith.index_cast %72 : i32 to index
    %c0_64 = arith.constant 0 : index
    %c0_65 = arith.constant 0 : index
    %74 = vector.load %arg2[%c0_62, %c1_63, %73, %c0_64, %c0_65] : memref<1x4x9x9x8xbf16, #tpu.memory_space<vmem>>, vector<1x1x8x8x8xbf16>
    %75 = vector.shape_cast %74 : vector<1x1x8x8x8xbf16> to vector<8x8x8xbf16>
    %76 = vector.shape_cast %75 : vector<8x8x8xbf16> to vector<64x8xbf16>
    %c7 = arith.constant 7 : index
    %c0_66 = arith.constant 0 : index
    %c0_67 = arith.constant 0 : index
    %77 = vector.load %arg3[%c7, %c0_66, %c0_67] : memref<9x8x8xbf16, #tpu.memory_space<vmem>>, vector<1x8x8xbf16>
    %78 = vector.shape_cast %77 : vector<1x8x8xbf16> to vector<8x8xbf16>
    %cst_68 = arith.constant dense<0.000000e+00> : vector<64x8xf32>
    %79 = tpu.matmul %76, %78, %cst_68 {dimension_numbers = #tpu.dot_dimension_numbers<[1], [0], [0], [1], [0, 0, 1, 1], [], []>} : vector<64x8xbf16>, vector<8x8xbf16>, vector<64x8xf32> -> vector<64x8xf32>
    %80 = arith.addf %70, %79 : vector<64x8xf32>
    %c8_i32_69 = arith.constant 8 : i32
    %81 = arith.muli %arg1, %c8_i32_69 : i32
    %c1_i32_70 = arith.constant 1 : i32
    %82 = arith.addi %81, %c1_i32_70 : i32
    %c0_71 = arith.constant 0 : index
    %c0_72 = arith.constant 0 : index
    %83 = arith.index_cast %82 : i32 to index
    %c1_73 = arith.constant 1 : index
    %c0_74 = arith.constant 0 : index
    %84 = vector.load %arg2[%c0_71, %c0_72, %83, %c1_73, %c0_74] : memref<1x4x9x9x8xbf16, #tpu.memory_space<vmem>>, vector<1x1x8x8x8xbf16>
    %85 = vector.shape_cast %84 : vector<1x1x8x8x8xbf16> to vector<8x8x8xbf16>
    %86 = vector.shape_cast %85 : vector<8x8x8xbf16> to vector<64x8xbf16>
    %c8 = arith.constant 8 : index
    %c0_75 = arith.constant 0 : index
    %c0_76 = arith.constant 0 : index
    %87 = vector.load %arg3[%c8, %c0_75, %c0_76] : memref<9x8x8xbf16, #tpu.memory_space<vmem>>, vector<1x8x8xbf16>
    %88 = vector.shape_cast %87 : vector<1x8x8xbf16> to vector<8x8xbf16>
    %cst_77 = arith.constant dense<0.000000e+00> : vector<64x8xf32>
    %89 = tpu.matmul %86, %88, %cst_77 {dimension_numbers = #tpu.dot_dimension_numbers<[1], [0], [0], [1], [0, 0, 1, 1], [], []>} : vector<64x8xbf16>, vector<8x8xbf16>, vector<64x8xf32> -> vector<64x8xf32>
    %90 = arith.addf %80, %89 : vector<64x8xf32>
    %c0_78 = arith.constant 0 : index
    %c0_79 = arith.constant 0 : index
    %91 = vector.load %arg4[%c0_78, %c0_79] : memref<1x8xf32, #tpu.memory_space<vmem>>, vector<1x8xf32>
    %92 = vector.broadcast %91 : vector<1x8xf32> to vector<64x8xf32>
    %93 = arith.addf %90, %92 : vector<64x8xf32>
    %cst_80 = arith.constant 0.000000e+00 : f32
    %94 = vector.broadcast %cst_80 : f32 to vector<64x8xf32>
    %95 = arith.maximumf %93, %94 : vector<64x8xf32>
    %96 = arith.truncf %95 : vector<64x8xf32> to vector<64x8xbf16>
    %c0_81 = arith.constant 0 : index
    %c0_82 = arith.constant 0 : index
    %c0_83 = arith.constant 0 : index
    %97 = vector.load %arg5[%c0_81, %c0_82, %c0_83] : memref<1x64x8xbf16, #tpu.memory_space<vmem>>, vector<1x64x8xbf16>
    %98 = vector.shape_cast %97 : vector<1x64x8xbf16> to vector<64x8xbf16>
    %99 = vector.shape_cast %96 : vector<64x8xbf16> to vector<1x64x8xbf16>
    tpu.vector_store %arg5[%c0_81, %c0_82, %c0_83], %99 {strides = array<i32>} : memref<1x64x8xbf16, #tpu.memory_space<vmem>>, vector<1x64x8xbf16>,
    return
  }
  func.func @transform_0(%arg0: i32, %arg1: i32) -> (i32, i32, i32, i32, i32) {
    %c0_i32 = arith.constant 0 : i32
    %c0_i32_0 = arith.constant 0 : i32
    %c0_i32_1 = arith.constant 0 : i32
    %c0_i32_2 = arith.constant 0 : i32
    %c0_i32_3 = arith.constant 0 : i32
    return %arg0, %c0_i32, %c0_i32_0, %c0_i32_1, %c0_i32_2 : i32, i32, i32, i32, i32
  }
  func.func @transform_1(%arg0: i32, %arg1: i32) -> (i32, i32, i32) {
    %c0_i32 = arith.constant 0 : i32
    %c0_i32_0 = arith.constant 0 : i32
    %c0_i32_1 = arith.constant 0 : i32
    %c0_i32_2 = arith.constant 0 : i32
    return %c0_i32, %c0_i32_0, %c0_i32_1 : i32, i32, i32
  }
  func.func @transform_2(%arg0: i32, %arg1: i32) -> (i32, i32) {
    %c0_i32 = arith.constant 0 : i32
    %c0_i32_0 = arith.constant 0 : i32
    %c0_i32_1 = arith.constant 0 : i32
    return %c0_i32, %c0_i32_0 : i32, i32
  }
  func.func @transform_3(%arg0: i32, %arg1: i32) -> (i32, i32, i32) {
    %c0_i32 = arith.constant 0 : i32
    %c0_i32_0 = arith.constant 0 : i32
    return %arg0, %arg1, %c0_i32 : i32, i32, i32
  }
}

module attributes {stable_mosaic.version = 11 : i64} {
  func.func @_conv3_sum_kernel(%arg0: i32, %arg1: i32, %arg2: memref<1x64x8xbf16, #tpu.memory_space<vmem>>, %arg3: memref<8x32xbf16, #tpu.memory_space<vmem>>, %arg4: memref<1x32xf32, #tpu.memory_space<vmem>>, %arg5: memref<1x64x32xbf16, #tpu.memory_space<vmem>>, %arg6: memref<1x1x32xf32, #tpu.memory_space<vmem>>) attributes {dimension_semantics = [#tpu.dimension_semantics<parallel>, #tpu.dimension_semantics<arbitrary>], iteration_bounds = array<i64: 2, 1>, scalar_prefetch = 0 : i64, scratch_operands = 0 : i64, tpu.core_type = #tpu.core_type<tc>, window_params = [{transform_indices = @transform_0, window_bounds = array<i64: 1, 64, 8>}, {pipeline_mode = #tpu.pipeline_mode<synchronous>, transform_indices = @transform_1, window_bounds = array<i64: 8, 32>}, {pipeline_mode = #tpu.pipeline_mode<synchronous>, transform_indices = @transform_2, window_bounds = array<i64: 1, 32>}, {transform_indices = @transform_3, window_bounds = array<i64: 1, 64, 32>}, {transform_indices = @transform_4, window_bounds = array<i64: 1, 1, 32>}]} {
    %c0_i32 = arith.constant 0 : i32
    %0 = arith.cmpi eq, %arg1, %c0_i32 : i32
    %1 = arith.extui %0 : i1 to i32
    %c0_i32_0 = arith.constant 0 : i32
    %2 = arith.cmpi ne, %1, %c0_i32_0 : i32
    scf.if %2 {
      %cst_17 = arith.constant 0.000000e+00 : f32
      %22 = vector.broadcast %cst_17 : f32 to vector<1x1x32xf32>
      %c0_18 = arith.constant 0 : index
      %c0_19 = arith.constant 0 : index
      %c0_20 = arith.constant 0 : index
      %23 = vector.load %arg6[%c0_18, %c0_19, %c0_20] : memref<1x1x32xf32, #tpu.memory_space<vmem>>, vector<1x1x32xf32>
      tpu.vector_store %arg6[%c0_18, %c0_19, %c0_20], %22 {strides = array<i32>} : memref<1x1x32xf32, #tpu.memory_space<vmem>>, vector<1x1x32xf32>,
    } else {
    }
    %c0 = arith.constant 0 : index
    %c0_1 = arith.constant 0 : index
    %c0_2 = arith.constant 0 : index
    %3 = vector.load %arg2[%c0, %c0_1, %c0_2] : memref<1x64x8xbf16, #tpu.memory_space<vmem>>, vector<1x64x8xbf16>
    %4 = vector.shape_cast %3 : vector<1x64x8xbf16> to vector<64x8xbf16>
    %c0_3 = arith.constant 0 : index
    %c0_4 = arith.constant 0 : index
    %5 = vector.load %arg3[%c0_3, %c0_4] : memref<8x32xbf16, #tpu.memory_space<vmem>>, vector<8x32xbf16>
    %cst = arith.constant dense<0.000000e+00> : vector<64x32xf32>
    %6 = tpu.matmul %4, %5, %cst {dimension_numbers = #tpu.dot_dimension_numbers<[1], [0], [0], [1], [0, 0, 1, 1], [], []>} : vector<64x8xbf16>, vector<8x32xbf16>, vector<64x32xf32> -> vector<64x32xf32>
    %c0_5 = arith.constant 0 : index
    %c0_6 = arith.constant 0 : index
    %7 = vector.load %arg4[%c0_5, %c0_6] : memref<1x32xf32, #tpu.memory_space<vmem>>, vector<1x32xf32>
    %8 = vector.broadcast %7 : vector<1x32xf32> to vector<64x32xf32>
    %9 = arith.addf %6, %8 : vector<64x32xf32>
    %10 = arith.truncf %9 : vector<64x32xf32> to vector<64x32xbf16>
    %c0_7 = arith.constant 0 : index
    %c0_8 = arith.constant 0 : index
    %c0_9 = arith.constant 0 : index
    %11 = vector.load %arg5[%c0_7, %c0_8, %c0_9] : memref<1x64x32xbf16, #tpu.memory_space<vmem>>, vector<1x64x32xbf16>
    %12 = vector.shape_cast %11 : vector<1x64x32xbf16> to vector<64x32xbf16>
    %13 = vector.shape_cast %10 : vector<64x32xbf16> to vector<1x64x32xbf16>
    tpu.vector_store %arg5[%c0_7, %c0_8, %c0_9], %13 {strides = array<i32>} : memref<1x64x32xbf16, #tpu.memory_space<vmem>>, vector<1x64x32xbf16>,
    %c0_10 = arith.constant 0 : index
    %c0_11 = arith.constant 0 : index
    %c0_12 = arith.constant 0 : index
    %14 = vector.load %arg6[%c0_10, %c0_11, %c0_12] : memref<1x1x32xf32, #tpu.memory_space<vmem>>, vector<1x1x32xf32>
    %15 = vector.shape_cast %14 : vector<1x1x32xf32> to vector<1x32xf32>
    %cst_13 = arith.constant dense<0.000000e+00> : vector<32xf32>
    %16 = vector.multi_reduction <add>, %9, %cst_13 [0] : vector<64x32xf32> to vector<32xf32>
    %17 = vector.shape_cast %16 : vector<32xf32> to vector<1x32xf32>
    %18 = arith.addf %15, %17 : vector<1x32xf32>
    %c0_14 = arith.constant 0 : index
    %c0_15 = arith.constant 0 : index
    %c0_16 = arith.constant 0 : index
    %19 = vector.load %arg6[%c0_14, %c0_15, %c0_16] : memref<1x1x32xf32, #tpu.memory_space<vmem>>, vector<1x1x32xf32>
    %20 = vector.shape_cast %19 : vector<1x1x32xf32> to vector<1x32xf32>
    %21 = vector.shape_cast %18 : vector<1x32xf32> to vector<1x1x32xf32>
    tpu.vector_store %arg6[%c0_14, %c0_15, %c0_16], %21 {strides = array<i32>} : memref<1x1x32xf32, #tpu.memory_space<vmem>>, vector<1x1x32xf32>,
    return
  }
  func.func @transform_0(%arg0: i32, %arg1: i32) -> (i32, i32, i32) {
    %c0_i32 = arith.constant 0 : i32
    %c0_i32_0 = arith.constant 0 : i32
    return %arg0, %arg1, %c0_i32 : i32, i32, i32
  }
  func.func @transform_1(%arg0: i32, %arg1: i32) -> (i32, i32) {
    %c0_i32 = arith.constant 0 : i32
    %c0_i32_0 = arith.constant 0 : i32
    %c0_i32_1 = arith.constant 0 : i32
    return %c0_i32, %c0_i32_0 : i32, i32
  }
  func.func @transform_2(%arg0: i32, %arg1: i32) -> (i32, i32) {
    %c0_i32 = arith.constant 0 : i32
    %c0_i32_0 = arith.constant 0 : i32
    %c0_i32_1 = arith.constant 0 : i32
    return %c0_i32, %c0_i32_0 : i32, i32
  }
  func.func @transform_3(%arg0: i32, %arg1: i32) -> (i32, i32, i32) {
    %c0_i32 = arith.constant 0 : i32
    %c0_i32_0 = arith.constant 0 : i32
    return %arg0, %arg1, %c0_i32 : i32, i32, i32
  }
  func.func @transform_4(%arg0: i32, %arg1: i32) -> (i32, i32, i32) {
    %c0_i32 = arith.constant 0 : i32
    %c0_i32_0 = arith.constant 0 : i32
    %c0_i32_1 = arith.constant 0 : i32
    return %arg0, %c0_i32, %c0_i32_0 : i32, i32, i32
  }
}

module attributes {stable_mosaic.version = 11 : i64} {
  func.func @_se_mlp_kernel(%arg0: memref<2x1x32xf32, #tpu.memory_space<vmem>>, %arg1: memref<32x4xf32, #tpu.memory_space<vmem>>, %arg2: memref<1x4xf32, #tpu.memory_space<vmem>>, %arg3: memref<4x32xf32, #tpu.memory_space<vmem>>, %arg4: memref<1x32xf32, #tpu.memory_space<vmem>>, %arg5: memref<2x1x32xf32, #tpu.memory_space<vmem>>) attributes {dimension_semantics = [], scalar_prefetch = 0 : i64, scratch_operands = 0 : i64, tpu.core_type = #tpu.core_type<tc>} {
    %c0 = arith.constant 0 : index
    %c0_0 = arith.constant 0 : index
    %c0_1 = arith.constant 0 : index
    %0 = vector.load %arg0[%c0, %c0_0, %c0_1] : memref<2x1x32xf32, #tpu.memory_space<vmem>>, vector<2x1x32xf32>
    %1 = vector.shape_cast %0 : vector<2x1x32xf32> to vector<2x32xf32>
    %cst = arith.constant 1.562500e-02 : f32
    %2 = vector.broadcast %cst : f32 to vector<2x32xf32>
    %3 = arith.mulf %1, %2 : vector<2x32xf32>
    %c0_2 = arith.constant 0 : index
    %c0_3 = arith.constant 0 : index
    %4 = vector.load %arg1[%c0_2, %c0_3] : memref<32x4xf32, #tpu.memory_space<vmem>>, vector<32x4xf32>
    %cst_4 = arith.constant dense<0.000000e+00> : vector<2x4xf32>
    %5 = tpu.matmul %3, %4, %cst_4 {dimension_numbers = #tpu.dot_dimension_numbers<[1], [0], [0], [1], [0, 0, 1, 1], [], []>} : vector<2x32xf32>, vector<32x4xf32>, vector<2x4xf32> -> vector<2x4xf32>
    %c0_5 = arith.constant 0 : index
    %c0_6 = arith.constant 0 : index
    %6 = vector.load %arg2[%c0_5, %c0_6] : memref<1x4xf32, #tpu.memory_space<vmem>>, vector<1x4xf32>
    %7 = vector.broadcast %6 : vector<1x4xf32> to vector<2x4xf32>
    %8 = arith.addf %5, %7 : vector<2x4xf32>
    %cst_7 = arith.constant 0.000000e+00 : f32
    %9 = vector.broadcast %cst_7 : f32 to vector<2x4xf32>
    %10 = arith.maximumf %8, %9 : vector<2x4xf32>
    %c0_8 = arith.constant 0 : index
    %c0_9 = arith.constant 0 : index
    %11 = vector.load %arg3[%c0_8, %c0_9] : memref<4x32xf32, #tpu.memory_space<vmem>>, vector<4x32xf32>
    %cst_10 = arith.constant dense<0.000000e+00> : vector<2x32xf32>
    %12 = tpu.matmul %10, %11, %cst_10 {dimension_numbers = #tpu.dot_dimension_numbers<[1], [0], [0], [1], [0, 0, 1, 1], [], []>} : vector<2x4xf32>, vector<4x32xf32>, vector<2x32xf32> -> vector<2x32xf32>
    %c0_11 = arith.constant 0 : index
    %c0_12 = arith.constant 0 : index
    %13 = vector.load %arg4[%c0_11, %c0_12] : memref<1x32xf32, #tpu.memory_space<vmem>>, vector<1x32xf32>
    %14 = vector.broadcast %13 : vector<1x32xf32> to vector<2x32xf32>
    %15 = arith.addf %12, %14 : vector<2x32xf32>
    %16 = arith.negf %15 : vector<2x32xf32>
    %17 = math.exp %16 : vector<2x32xf32>
    %cst_13 = arith.constant 1.000000e+00 : f32
    %18 = vector.broadcast %cst_13 : f32 to vector<2x32xf32>
    %19 = arith.addf %18, %17 : vector<2x32xf32>
    %20 = arith.divf %18, %19 : vector<2x32xf32>
    %21 = vector.shape_cast %20 : vector<2x32xf32> to vector<2x1x32xf32>
    %c0_14 = arith.constant 0 : index
    %c0_15 = arith.constant 0 : index
    %c0_16 = arith.constant 0 : index
    %22 = vector.load %arg5[%c0_14, %c0_15, %c0_16] : memref<2x1x32xf32, #tpu.memory_space<vmem>>, vector<2x1x32xf32>
    tpu.vector_store %arg5[%c0_14, %c0_15, %c0_16], %21 {strides = array<i32>} : memref<2x1x32xf32, #tpu.memory_space<vmem>>, vector<2x1x32xf32>,
    return
  }
}

module attributes {stable_mosaic.version = 11 : i64} {
  func.func @_bn_relu_matmul_kernel(%arg0: i32, %arg1: memref<128x16xbf16, #tpu.memory_space<vmem>>, %arg2: memref<1x16xf32, #tpu.memory_space<vmem>>, %arg3: memref<1x16xf32, #tpu.memory_space<vmem>>, %arg4: memref<16x32xbf16, #tpu.memory_space<vmem>>, %arg5: memref<1x32xf32, #tpu.memory_space<vmem>>, %arg6: memref<128x32xbf16, #tpu.memory_space<vmem>>) attributes {dimension_semantics = [#tpu.dimension_semantics<parallel>], iteration_bounds = array<i64: 1>, scalar_prefetch = 0 : i64, scratch_operands = 0 : i64, tpu.core_type = #tpu.core_type<tc>, window_params = [{transform_indices = @transform_0, window_bounds = array<i64: 128, 16>}, {pipeline_mode = #tpu.pipeline_mode<synchronous>, transform_indices = @transform_1, window_bounds = array<i64: 1, 16>}, {pipeline_mode = #tpu.pipeline_mode<synchronous>, transform_indices = @transform_2, window_bounds = array<i64: 1, 16>}, {pipeline_mode = #tpu.pipeline_mode<synchronous>, transform_indices = @transform_3, window_bounds = array<i64: 16, 32>}, {pipeline_mode = #tpu.pipeline_mode<synchronous>, transform_indices = @transform_4, window_bounds = array<i64: 1, 32>}, {transform_indices = @transform_5, window_bounds = array<i64: 128, 32>}]} {
    %c0 = arith.constant 0 : index
    %c0_0 = arith.constant 0 : index
    %0 = vector.load %arg1[%c0, %c0_0] : memref<128x16xbf16, #tpu.memory_space<vmem>>, vector<128x16xbf16>
    %1 = arith.extf %0 : vector<128x16xbf16> to vector<128x16xf32>
    %c0_1 = arith.constant 0 : index
    %c0_2 = arith.constant 0 : index
    %2 = vector.load %arg2[%c0_1, %c0_2] : memref<1x16xf32, #tpu.memory_space<vmem>>, vector<1x16xf32>
    %3 = vector.broadcast %2 : vector<1x16xf32> to vector<128x16xf32>
    %4 = arith.mulf %1, %3 : vector<128x16xf32>
    %c0_3 = arith.constant 0 : index
    %c0_4 = arith.constant 0 : index
    %5 = vector.load %arg3[%c0_3, %c0_4] : memref<1x16xf32, #tpu.memory_space<vmem>>, vector<1x16xf32>
    %6 = vector.broadcast %5 : vector<1x16xf32> to vector<128x16xf32>
    %7 = arith.addf %4, %6 : vector<128x16xf32>
    %cst = arith.constant 0.000000e+00 : f32
    %8 = vector.broadcast %cst : f32 to vector<128x16xf32>
    %9 = arith.maximumf %7, %8 : vector<128x16xf32>
    %10 = arith.truncf %9 : vector<128x16xf32> to vector<128x16xbf16>
    %c0_5 = arith.constant 0 : index
    %c0_6 = arith.constant 0 : index
    %11 = vector.load %arg4[%c0_5, %c0_6] : memref<16x32xbf16, #tpu.memory_space<vmem>>, vector<16x32xbf16>
    %cst_7 = arith.constant dense<0.000000e+00> : vector<128x32xf32>
    %12 = tpu.matmul %10, %11, %cst_7 {dimension_numbers = #tpu.dot_dimension_numbers<[1], [0], [0], [1], [0, 0, 1, 1], [], []>} : vector<128x16xbf16>, vector<16x32xbf16>, vector<128x32xf32> -> vector<128x32xf32>
    %c0_8 = arith.constant 0 : index
    %c0_9 = arith.constant 0 : index
    %13 = vector.load %arg5[%c0_8, %c0_9] : memref<1x32xf32, #tpu.memory_space<vmem>>, vector<1x32xf32>
    %14 = vector.broadcast %13 : vector<1x32xf32> to vector<128x32xf32>
    %15 = arith.addf %12, %14 : vector<128x32xf32>
    %16 = arith.truncf %15 : vector<128x32xf32> to vector<128x32xbf16>
    %c0_10 = arith.constant 0 : index
    %c0_11 = arith.constant 0 : index
    %17 = vector.load %arg6[%c0_10, %c0_11] : memref<128x32xbf16, #tpu.memory_space<vmem>>, vector<128x32xbf16>
    tpu.vector_store %arg6[%c0_10, %c0_11], %16 {strides = array<i32>} : memref<128x32xbf16, #tpu.memory_space<vmem>>, vector<128x32xbf16>,
    return
  }
  func.func @transform_0(%arg0: i32) -> (i32, i32) {
    %c0_i32 = arith.constant 0 : i32
    %c0_i32_0 = arith.constant 0 : i32
    return %arg0, %c0_i32 : i32, i32
  }
  func.func @transform_1(%arg0: i32) -> (i32, i32) {
    %c0_i32 = arith.constant 0 : i32
    %c0_i32_0 = arith.constant 0 : i32
    %c0_i32_1 = arith.constant 0 : i32
    return %c0_i32, %c0_i32_0 : i32, i32
  }
  func.func @transform_2(%arg0: i32) -> (i32, i32) {
    %c0_i32 = arith.constant 0 : i32
    %c0_i32_0 = arith.constant 0 : i32
    %c0_i32_1 = arith.constant 0 : i32
    return %c0_i32, %c0_i32_0 : i32, i32
  }
  func.func @transform_3(%arg0: i32) -> (i32, i32) {
    %c0_i32 = arith.constant 0 : i32
    %c0_i32_0 = arith.constant 0 : i32
    %c0_i32_1 = arith.constant 0 : i32
    return %c0_i32, %c0_i32_0 : i32, i32
  }
  func.func @transform_4(%arg0: i32) -> (i32, i32) {
    %c0_i32 = arith.constant 0 : i32
    %c0_i32_0 = arith.constant 0 : i32
    %c0_i32_1 = arith.constant 0 : i32
    return %c0_i32, %c0_i32_0 : i32, i32
  }
  func.func @transform_5(%arg0: i32) -> (i32, i32) {
    %c0_i32 = arith.constant 0 : i32
    %c0_i32_0 = arith.constant 0 : i32
    return %arg0, %c0_i32 : i32, i32
  }
}

module attributes {stable_mosaic.version = 11 : i64} {
  func.func @_gate_residual_kernel(%arg0: i32, %arg1: i32, %arg2: memref<1x64x32xbf16, #tpu.memory_space<vmem>>, %arg3: memref<1x64x32xbf16, #tpu.memory_space<vmem>>, %arg4: memref<1x1x32xf32, #tpu.memory_space<vmem>>, %arg5: memref<1x64x32xf32, #tpu.memory_space<vmem>>) attributes {dimension_semantics = [#tpu.dimension_semantics<parallel>, #tpu.dimension_semantics<parallel>], iteration_bounds = array<i64: 2, 1>, scalar_prefetch = 0 : i64, scratch_operands = 0 : i64, tpu.core_type = #tpu.core_type<tc>, window_params = [{transform_indices = @transform_0, window_bounds = array<i64: 1, 64, 32>}, {transform_indices = @transform_1, window_bounds = array<i64: 1, 64, 32>}, {transform_indices = @transform_2, window_bounds = array<i64: 1, 1, 32>}, {transform_indices = @transform_3, window_bounds = array<i64: 1, 64, 32>}]} {
    %c0 = arith.constant 0 : index
    %c0_0 = arith.constant 0 : index
    %c0_1 = arith.constant 0 : index
    %0 = vector.load %arg2[%c0, %c0_0, %c0_1] : memref<1x64x32xbf16, #tpu.memory_space<vmem>>, vector<1x64x32xbf16>
    %1 = vector.shape_cast %0 : vector<1x64x32xbf16> to vector<64x32xbf16>
    %2 = arith.extf %1 : vector<64x32xbf16> to vector<64x32xf32>
    %c0_2 = arith.constant 0 : index
    %c0_3 = arith.constant 0 : index
    %c0_4 = arith.constant 0 : index
    %3 = vector.load %arg4[%c0_2, %c0_3, %c0_4] : memref<1x1x32xf32, #tpu.memory_space<vmem>>, vector<1x1x32xf32>
    %4 = vector.shape_cast %3 : vector<1x1x32xf32> to vector<1x32xf32>
    %5 = vector.broadcast %4 : vector<1x32xf32> to vector<64x32xf32>
    %6 = arith.mulf %2, %5 : vector<64x32xf32>
    %c0_5 = arith.constant 0 : index
    %c0_6 = arith.constant 0 : index
    %c0_7 = arith.constant 0 : index
    %7 = vector.load %arg3[%c0_5, %c0_6, %c0_7] : memref<1x64x32xbf16, #tpu.memory_space<vmem>>, vector<1x64x32xbf16>
    %8 = vector.shape_cast %7 : vector<1x64x32xbf16> to vector<64x32xbf16>
    %9 = arith.extf %8 : vector<64x32xbf16> to vector<64x32xf32>
    %10 = arith.addf %6, %9 : vector<64x32xf32>
    %c0_8 = arith.constant 0 : index
    %c0_9 = arith.constant 0 : index
    %c0_10 = arith.constant 0 : index
    %11 = vector.load %arg5[%c0_8, %c0_9, %c0_10] : memref<1x64x32xf32, #tpu.memory_space<vmem>>, vector<1x64x32xf32>
    %12 = vector.shape_cast %11 : vector<1x64x32xf32> to vector<64x32xf32>
    %13 = vector.shape_cast %10 : vector<64x32xf32> to vector<1x64x32xf32>
    tpu.vector_store %arg5[%c0_8, %c0_9, %c0_10], %13 {strides = array<i32>} : memref<1x64x32xf32, #tpu.memory_space<vmem>>, vector<1x64x32xf32>,
    return
  }
  func.func @transform_0(%arg0: i32, %arg1: i32) -> (i32, i32, i32) {
    %c0_i32 = arith.constant 0 : i32
    %c0_i32_0 = arith.constant 0 : i32
    return %arg0, %arg1, %c0_i32 : i32, i32, i32
  }
  func.func @transform_1(%arg0: i32, %arg1: i32) -> (i32, i32, i32) {
    %c0_i32 = arith.constant 0 : i32
    %c0_i32_0 = arith.constant 0 : i32
    return %arg0, %arg1, %c0_i32 : i32, i32, i32
  }
  func.func @transform_2(%arg0: i32, %arg1: i32) -> (i32, i32, i32) {
    %c0_i32 = arith.constant 0 : i32
    %c0_i32_0 = arith.constant 0 : i32
    %c0_i32_1 = arith.constant 0 : i32
    return %arg0, %c0_i32, %c0_i32_0 : i32, i32, i32
  }
  func.func @transform_3(%arg0: i32, %arg1: i32) -> (i32, i32, i32) {
    %c0_i32 = arith.constant 0 : i32
    %c0_i32_0 = arith.constant 0 : i32
    return %arg0, %arg1, %c0_i32 : i32, i32, i32
  }
}

</mosaic_0001>

<llo_original>
// kernel: se_bottleneck_forward.6
$region0: #{se_bottleneck_forward.6}
  #allocation0 [shape = 'u32[]', space=smem, size = 0x4, offset = 0x4, fixed_abs, tag = 'smem constant byte address 0x4 - core index']
  #allocation1 [shape = 'u32[144,128]{1,0:T(1,128)}', space=vmem, size = 0x12000, scoped, tag = 'internal scratch']
  %s0 = inlined_call_operand.vmem [shape: bf16[512,16], index: 0, kind: input, shape index: {}]
  %s1 = inlined_call_operand.vmem [shape: f32[1,16], index: 1, kind: input, shape index: {}]
  %s2 = inlined_call_operand.vmem [shape: f32[1,16], index: 2, kind: input, shape index: {}]
  %s3 = inlined_call_operand.vmem [shape: bf16[16,8], index: 3, kind: input, shape index: {}]
  %s4 = inlined_call_operand.vmem [shape: f32[1,8], index: 4, kind: input, shape index: {}]
  %s5 = inlined_call_operand.vmem [shape: bf16[512,8], index: 5, kind: output, shape index: {}]
  %s6 = sld [smem:[#allocation0]]
  $region30: #{se_bottleneck_forward.6} parent=0
    _
  %s8 = ssub.s32 1, %s6
  %s9 = scalar_select 0, %s8, %s6
  // Predicated region
  $region2: #{se_bottleneck_forward.6} parent=0 // pred_check
    _
  $region3: #{se_bottleneck_forward.6} parent=0 // pred_check_branch
    %11 = sbr.rel (0) target = $region5
  $region4: #{se_bottleneck_forward.6} parent=0 // pred_region
    _
  $region5: #{se_bottleneck_forward.6} parent=0 // pred_fallthru
    _
  // Predicated region
  $region6: #{se_bottleneck_forward.6} parent=0 // pred_check
    _
  $region7: #{se_bottleneck_forward.6} parent=0 // pred_check_branch
    %13 = sbr.rel (0) target = $region9
  $region8: #{se_bottleneck_forward.6} parent=0 // pred_region
    _
  $region9: #{se_bottleneck_forward.6} parent=0 // pred_fallthru
    _
  // Predicated region
  $region10: #{se_bottleneck_forward.6} parent=0 // pred_check
    _
  $region11: #{se_bottleneck_forward.6} parent=0 // pred_check_branch
    %15 = sbr.rel (0) target = $region13
  $region12: #{se_bottleneck_forward.6} parent=0 // pred_region
    _
  $region13: #{se_bottleneck_forward.6} parent=0 // pred_fallthru
    _
  // Predicated region
  $region14: #{se_bottleneck_forward.6} parent=0 // pred_check
    _
  $region15: #{se_bottleneck_forward.6} parent=0 // pred_check_branch
    %17 = sbr.rel (0) target = $region17
  $region16: #{se_bottleneck_forward.6} parent=0 // pred_region
    _
  $region17: #{se_bottleneck_forward.6} parent=0 // pred_fallthru
    _
  // Predicated region
  $region18: #{se_bottleneck_forward.6} parent=0 // pred_check
    _
  $region19: #{se_bottleneck_forward.6} parent=0 // pred_check_branch
    %19 = sbr.rel (0) target = $region21
  $region20: #{se_bottleneck_forward.6} parent=0 // pred_region
    _
  $region21: #{se_bottleneck_forward.6} parent=0 // pred_fallthru
    _
  %v21 = vld [vmem:[%s0] sm:$0xf]
  %v22 = vld [vmem:[%s0 + $0x4] sm:$0xf]
  %v23 = vld [vmem:[%s0 + $0x8] sm:$0xf]
  %v24 = vld [vmem:[%s0 + $0xc] sm:$0xf]
  %v25 = vld [vmem:[%s0 + $0x10] sm:$0xf]
  %v26 = vld [vmem:[%s0 + $0x14] sm:$0xf]
  %v27 = vld [vmem:[%s0 + $0x18] sm:$0xf]
  %v28 = vld [vmem:[%s0 + $0x1c] sm:$0xf]
  %v29 = vld [vmem:[%s0 + $0x20] sm:$0xf]
  %v30 = vld [vmem:[%s0 + $0x24] sm:$0xf]
  %v31 = vld [vmem:[%s0 + $0x28] sm:$0xf]
  %v32 = vld [vmem:[%s0 + $0x2c] sm:$0xf]
  %v33 = vld [vmem:[%s0 + $0x30] sm:$0xf]
  %v34 = vld [vmem:[%s0 + $0x34] sm:$0xf]
  %v35 = vld [vmem:[%s0 + $0x38] sm:$0xf]
  %v36 = vld [vmem:[%s0 + $0x3c] sm:$0xf]
  %v37 = vld [vmem:[%s0 + $0x40] sm:$0xf]
  %v38 = vld [vmem:[%s0 + $0x44] sm:$0xf]
  %v39 = vld [vmem:[%s0 + $0x48] sm:$0xf]
  %v40 = vld [vmem:[%s0 + $0x4c] sm:$0xf]
  %v41 = vld [vmem:[%s0 + $0x50] sm:$0xf]
  %v42 = vld [vmem:[%s0 + $0x54] sm:$0xf]
  %v43 = vld [vmem:[%s0 + $0x58] sm:$0xf]
  %v44 = vld [vmem:[%s0 + $0x5c] sm:$0xf]
  %v45 = vld [vmem:[%s0 + $0x60] sm:$0xf]
  %v46 = vld [vmem:[%s0 + $0x64] sm:$0xf]
  %v47 = vld [vmem:[%s0 + $0x68] sm:$0xf]
  %v48 = vld [vmem:[%s0 + $0x6c] sm:$0xf]
  %v49 = vld [vmem:[%s0 + $0x70] sm:$0xf]
  %v50 = vld [vmem:[%s0 + $0x74] sm:$0xf]
  %v51 = vld [vmem:[%s0 + $0x78] sm:$0xf]
  %v52 = vld [vmem:[%s0 + $0x7c] sm:$0xf]
  %v53 = vld [vmem:[%s0 + $0x80] sm:$0xf]
  %v54 = vld [vmem:[%s0 + $0x84] sm:$0xf]
  %v55 = vld [vmem:[%s0 + $0x88] sm:$0xf]
  %v56 = vld [vmem:[%s0 + $0x8c] sm:$0xf]
  %v57 = vld [vmem:[%s0 + $0x90] sm:$0xf]
  %v58 = vld [vmem:[%s0 + $0x94] sm:$0xf]
  %v59 = vld [vmem:[%s0 + $0x98] sm:$0xf]
  %v60 = vld [vmem:[%s0 + $0x9c] sm:$0xf]
  %v61 = vld [vmem:[%s0 + $0xa0] sm:$0xf]
  %v62 = vld [vmem:[%s0 + $0xa4] sm:$0xf]
  %v63 = vld [vmem:[%s0 + $0xa8] sm:$0xf]
  %v64 = vld [vmem:[%s0 + $0xac] sm:$0xf]
  %v65 = vld [vmem:[%s0 + $0xb0] sm:$0xf]
  %v66 = vld [vmem:[%s0 + $0xb4] sm:$0xf]
  %v67 = vld [vmem:[%s0 + $0xb8] sm:$0xf]
  %v68 = vld [vmem:[%s0 + $0xbc] sm:$0xf]
  %v69 = vld [vmem:[%s0 + $0xc0] sm:$0xf]
  %v70 = vld [vmem:[%s0 + $0xc4] sm:$0xf]
  %v71 = vld [vmem:[%s0 + $0xc8] sm:$0xf]
  %v72 = vld [vmem:[%s0 + $0xcc] sm:$0xf]
  %v73 = vld [vmem:[%s0 + $0xd0] sm:$0xf]
  %v74 = vld [vmem:[%s0 + $0xd4] sm:$0xf]
  %v75 = vld [vmem:[%s0 + $0xd8] sm:$0xf]
  %v76 = vld [vmem:[%s0 + $0xdc] sm:$0xf]
  %v77 = vld [vmem:[%s0 + $0xe0] sm:$0xf]
  %v78 = vld [vmem:[%s0 + $0xe4] sm:$0xf]
  %v79 = vld [vmem:[%s0 + $0xe8] sm:$0xf]
  %v80 = vld [vmem:[%s0 + $0xec] sm:$0xf]
  %v81 = vld [vmem:[%s0 + $0xf0] sm:$0xf]
  %v82 = vld [vmem:[%s0 + $0xf4] sm:$0xf]
  %v83 = vld [vmem:[%s0 + $0xf8] sm:$0xf]
  %v84 = vld [vmem:[%s0 + $0xfc] sm:$0xf]
  %v85 = vunpack.c.l.bf16 %v21
  %v86 = vunpack.c.l.bf16 %v22
  %v87 = vunpack.c.l.bf16 %v23
  %v88 = vunpack.c.l.bf16 %v24
  %v89 = vunpack.c.l.bf16 %v25
  %v90 = vunpack.c.l.bf16 %v26
  %v91 = vunpack.c.l.bf16 %v27
  %v92 = vunpack.c.l.bf16 %v28
  %v93 = vunpack.c.l.bf16 %v29
  %v94 = vunpack.c.l.bf16 %v30
  %v95 = vunpack.c.l.bf16 %v31
  %v96 = vunpack.c.l.bf16 %v32
  %v97 = vunpack.c.l.bf16 %v33
  %v98 = vunpack.c.l.bf16 %v34
  %v99 = vunpack.c.l.bf16 %v35
  %v100 = vunpack.c.l.bf16 %v36
  %v101 = vunpack.c.l.bf16 %v37
  %v102 = vunpack.c.l.bf16 %v38
  %v103 = vunpack.c.l.bf16 %v39
  %v104 = vunpack.c.l.bf16 %v40
  %v105 = vunpack.c.l.bf16 %v41
  %v106 = vunpack.c.l.bf16 %v42
  %v107 = vunpack.c.l.bf16 %v43
  %v108 = vunpack.c.l.bf16 %v44
  %v109 = vunpack.c.l.bf16 %v45
  %v110 = vunpack.c.l.bf16 %v46
  %v111 = vunpack.c.l.bf16 %v47
  %v112 = vunpack.c.l.bf16 %v48
  %v113 = vunpack.c.l.bf16 %v49
  %v114 = vunpack.c.l.bf16 %v50
  %v115 = vunpack.c.l.bf16 %v51
  %v116 = vunpack.c.l.bf16 %v52
  %v117 = vunpack.c.l.bf16 %v53
  %v118 = vunpack.c.l.bf16 %v54
  %v119 = vunpack.c.l.bf16 %v55
  %v120 = vunpack.c.l.bf16 %v56
  %v121 = vunpack.c.l.bf16 %v57
  %v122 = vunpack.c.l.bf16 %v58
  %v123 = vunpack.c.l.bf16 %v59
  %v124 = vunpack.c.l.bf16 %v60
  %v125 = vunpack.c.l.bf16 %v61
  %v126 = vunpack.c.l.bf16 %v62
  %v127 = vunpack.c.l.bf16 %v63
  %v128 = vunpack.c.l.bf16 %v64
  %v129 = vunpack.c.l.bf16 %v65
  %v130 = vunpack.c.l.bf16 %v66
  %v131 = vunpack.c.l.bf16 %v67
  %v132 = vunpack.c.l.bf16 %v68
  %v133 = vunpack.c.l.bf16 %v69
  %v134 = vunpack.c.l.bf16 %v70
  %v135 = vunpack.c.l.bf16 %v71
  %v136 = vunpack.c.l.bf16 %v72
  %v137 = vunpack.c.l.bf16 %v73
  %v138 = vunpack.c.l.bf16 %v74
  %v139 = vunpack.c.l.bf16 %v75
  %v140 = vunpack.c.l.bf16 %v76
  %v141 = vunpack.c.l.bf16 %v77
  %v142 = vunpack.c.l.bf16 %v78
  %v143 = vunpack.c.l.bf16 %v79
  %v144 = vunpack.c.l.bf16 %v80
  %v145 = vunpack.c.l.bf16 %v81
  %v146 = vunpack.c.l.bf16 %v82
  %v147 = vunpack.c.l.bf16 %v83
  %v148 = vunpack.c.l.bf16 %v84
  %v149 = vld [vmem:[%s1] sm:$0x1]
  %v151 = vlaneseq
  %v152 = vshrl.u32 %v151, 7
  %v153 = vsub.s32 0, %v152
  %v154 = vrot.slane %v149, %v153
  %v156 = vmul.f32 %v85, %v154
  %v157 = vmul.f32 %v86, %v154
  %v158 = vmul.f32 %v87, %v154
  %v159 = vmul.f32 %v88, %v154
  %v160 = vmul.f32 %v89, %v154
  %v161 = vmul.f32 %v90, %v154
  %v162 = vmul.f32 %v91, %v154
  %v163 = vmul.f32 %v92, %v154
  %v164 = vmul.f32 %v93, %v154
  %v165 = vmul.f32 %v94, %v154
  %v166 = vmul.f32 %v95, %v154
  %v167 = vmul.f32 %v96, %v154
  %v168 = vmul.f32 %v97, %v154
  %v169 = vmul.f32 %v98, %v154
  %v170 = vmul.f32 %v99, %v154
  %v171 = vmul.f32 %v100, %v154
  %v172 = vmul.f32 %v101, %v154
  %v173 = vmul.f32 %v102, %v154
  %v174 = vmul.f32 %v103, %v154
  %v175 = vmul.f32 %v104, %v154
  %v176 = vmul.f32 %v105, %v154
  %v177 = vmul.f32 %v106, %v154
  %v178 = vmul.f32 %v107, %v154
  %v179 = vmul.f32 %v108, %v154
  %v180 = vmul.f32 %v109, %v154
  %v181 = vmul.f32 %v110, %v154
  %v182 = vmul.f32 %v111, %v154
  %v183 = vmul.f32 %v112, %v154
  %v184 = vmul.f32 %v113, %v154
  %v185 = vmul.f32 %v114, %v154
  %v186 = vmul.f32 %v115, %v154
  %v187 = vmul.f32 %v116, %v154
  %v188 = vmul.f32 %v117, %v154
  %v189 = vmul.f32 %v118, %v154
  %v190 = vmul.f32 %v119, %v154
  %v191 = vmul.f32 %v120, %v154
  %v192 = vmul.f32 %v121, %v154
  %v193 = vmul.f32 %v122, %v154
  %v194 = vmul.f32 %v123, %v154
  %v195 = vmul.f32 %v124, %v154
  %v196 = vmul.f32 %v125, %v154
  %v197 = vmul.f32 %v126, %v154
  %v198 = vmul.f32 %v127, %v154
  %v199 = vmul.f32 %v128, %v154
  %v200 = vmul.f32 %v129, %v154
  %v201 = vmul.f32 %v130, %v154
  %v202 = vmul.f32 %v131, %v154
  %v203 = vmul.f32 %v132, %v154
  %v204 = vmul.f32 %v133, %v154
  %v205 = vmul.f32 %v134, %v154
  %v206 = vmul.f32 %v135, %v154
  %v207 = vmul.f32 %v136, %v154
  %v208 = vmul.f32 %v137, %v154
  %v209 = vmul.f32 %v138, %v154
  %v210 = vmul.f32 %v139, %v154
  %v211 = vmul.f32 %v140, %v154
  %v212 = vmul.f32 %v141, %v154
  %v213 = vmul.f32 %v142, %v154
  %v214 = vmul.f32 %v143, %v154
  %v215 = vmul.f32 %v144, %v154
  %v216 = vmul.f32 %v145, %v154
  %v217 = vmul.f32 %v146, %v154
  %v218 = vmul.f32 %v147, %v154
  %v219 = vmul.f32 %v148, %v154
  %v220 = vld [vmem:[%s2] sm:$0x1]
  %v222 = vlaneseq
  %v223 = vshrl.u32 %v222, 7
  %v224 = vsub.s32 0, %v223
  %v225 = vrot.slane %v220, %v224
  %v227 = vadd.f32 %v156, %v225
  %v228 = vadd.f32 %v157, %v225
  %v229 = vadd.f32 %v158, %v225
  %v230 = vadd.f32 %v159, %v225
  %v231 = vadd.f32 %v160, %v225
  %v232 = vadd.f32 %v161, %v225
  %v233 = vadd.f32 %v162, %v225
  %v234 = vadd.f32 %v163, %v225
  %v235 = vadd.f32 %v164, %v225
  %v236 = vadd.f32 %v165, %v225
  %v237 = vadd.f32 %v166, %v225
  %v238 = vadd.f32 %v167, %v225
  %v239 = vadd.f32 %v168, %v225
  %v240 = vadd.f32 %v169, %v225
  %v241 = vadd.f32 %v170, %v225
  %v242 = vadd.f32 %v171, %v225
  %v243 = vadd.f32 %v172, %v225
  %v244 = vadd.f32 %v173, %v225
  %v245 = vadd.f32 %v174, %v225
  %v246 = vadd.f32 %v175, %v225
  %v247 = vadd.f32 %v176, %v225
  %v248 = vadd.f32 %v177, %v225
  %v249 = vadd.f32 %v178, %v225
  %v250 = vadd.f32 %v179, %v225
  %v251 = vadd.f32 %v180, %v225
  %v252 = vadd.f32 %v181, %v225
  %v253 = vadd.f32 %v182, %v225
  %v254 = vadd.f32 %v183, %v225
  %v255 = vadd.f32 %v184, %v225
  %v256 = vadd.f32 %v185, %v225
  %v257 = vadd.f32 %v186, %v225
  %v258 = vadd.f32 %v187, %v225
  %v259 = vadd.f32 %v188, %v225
  %v260 = vadd.f32 %v189, %v225
  %v261 = vadd.f32 %v190, %v225
  %v262 = vadd.f32 %v191, %v225
  %v263 = vadd.f32 %v192, %v225
  %v264 = vadd.f32 %v193, %v225
  %v265 = vadd.f32 %v194, %v225
  %v266 = vadd.f32 %v195, %v225
  %v267 = vadd.f32 %v196, %v225
  %v268 = vadd.f32 %v197, %v225
  %v269 = vadd.f32 %v198, %v225
  %v270 = vadd.f32 %v199, %v225
  %v271 = vadd.f32 %v200, %v225
  %v272 = vadd.f32 %v201, %v225
  %v273 = vadd.f32 %v202, %v225
  %v274 = vadd.f32 %v203, %v225
  %v275 = vadd.f32 %v204, %v225
  %v276 = vadd.f32 %v205, %v225
  %v277 = vadd.f32 %v206, %v225
  %v278 = vadd.f32 %v207, %v225
  %v279 = vadd.f32 %v208, %v225
  %v280 = vadd.f32 %v209, %v225
  %v281 = vadd.f32 %v210, %v225
  %v282 = vadd.f32 %v211, %v225
  %v283 = vadd.f32 %v212, %v225
  %v284 = vadd.f32 %v213, %v225
  %v285 = vadd.f32 %v214, %v225
  %v286 = vadd.f32 %v215, %v225
  %v287 = vadd.f32 %v216, %v225
  %v288 = vadd.f32 %v217, %v225
  %v289 = vadd.f32 %v218, %v225
  %v290 = vadd.f32 %v219, %v225
  %v291 = vmax.f32 %v227, 0.0
  %v292 = vmax.f32 %v228, 0.0
  %v293 = vmax.f32 %v229, 0.0
  %v294 = vmax.f32 %v230, 0.0
  %v295 = vmax.f32 %v231, 0.0
  %v296 = vmax.f32 %v232, 0.0
  %v297 = vmax.f32 %v233, 0.0
  %v298 = vmax.f32 %v234, 0.0
  %v299 = vmax.f32 %v235, 0.0
  %v300 = vmax.f32 %v236, 0.0
  %v301 = vmax.f32 %v237, 0.0
  %v302 = vmax.f32 %v238, 0.0
  %v303 = vmax.f32 %v239, 0.0
  %v304 = vmax.f32 %v240, 0.0
  %v305 = vmax.f32 %v241, 0.0
  %v306 = vmax.f32 %v242, 0.0
  %v307 = vmax.f32 %v243, 0.0
  %v308 = vmax.f32 %v244, 0.0
  %v309 = vmax.f32 %v245, 0.0
  %v310 = vmax.f32 %v246, 0.0
  %v311 = vmax.f32 %v247, 0.0
  %v312 = vmax.f32 %v248, 0.0
  %v313 = vmax.f32 %v249, 0.0
  %v314 = vmax.f32 %v250, 0.0
  %v315 = vmax.f32 %v251, 0.0
  %v316 = vmax.f32 %v252, 0.0
  %v317 = vmax.f32 %v253, 0.0
  %v318 = vmax.f32 %v254, 0.0
  %v319 = vmax.f32 %v255, 0.0
  %v320 = vmax.f32 %v256, 0.0
  %v321 = vmax.f32 %v257, 0.0
  %v322 = vmax.f32 %v258, 0.0
  %v323 = vmax.f32 %v259, 0.0
  %v324 = vmax.f32 %v260, 0.0
  %v325 = vmax.f32 %v261, 0.0
  %v326 = vmax.f32 %v262, 0.0
  %v327 = vmax.f32 %v263, 0.0
  %v328 = vmax.f32 %v264, 0.0
  %v329 = vmax.f32 %v265, 0.0
  %v330 = vmax.f32 %v266, 0.0
  %v331 = vmax.f32 %v267, 0.0
  %v332 = vmax.f32 %v268, 0.0
  %v333 = vmax.f32 %v269, 0.0
  %v334 = vmax.f32 %v270, 0.0
  %v335 = vmax.f32 %v271, 0.0
  %v336 = vmax.f32 %v272, 0.0
  %v337 = vmax.f32 %v273, 0.0
  %v338 = vmax.f32 %v274, 0.0
  %v339 = vmax.f32 %v275, 0.0
  %v340 = vmax.f32 %v276, 0.0
  %v341 = vmax.f32 %v277, 0.0
  %v342 = vmax.f32 %v278, 0.0
  %v343 = vmax.f32 %v279, 0.0
  %v344 = vmax.f32 %v280, 0.0
  %v345 = vmax.f32 %v281, 0.0
  %v346 = vmax.f32 %v282, 0.0
  %v347 = vmax.f32 %v283, 0.0
  %v348 = vmax.f32 %v284, 0.0
  %v349 = vmax.f32 %v285, 0.0
  %v350 = vmax.f32 %v286, 0.0
  %v351 = vmax.f32 %v287, 0.0
  %v352 = vmax.f32 %v288, 0.0
  %v353 = vmax.f32 %v289, 0.0
  %v354 = vmax.f32 %v290, 0.0
  %v355 = vpack.c.bf16 %v292, %v291
  %v356 = vpack.c.bf16 %v294, %v293
  %v357 = vpack.c.bf16 %v296, %v295
  %v358 = vpack.c.bf16 %v298, %v297
  %v359 = vpack.c.bf16 %v300, %v299
  %v360 = vpack.c.bf16 %v302, %v301
  %v361 = vpack.c.bf16 %v304, %v303
  %v362 = vpack.c.bf16 %v306, %v305
  %v363 = vpack.c.bf16 %v308, %v307
  %v364 = vpack.c.bf16 %v310, %v309
  %v365 = vpack.c.bf16 %v312, %v311
  %v366 = vpack.c.bf16 %v314, %v313
  %v367 = vpack.c.bf16 %v316, %v315
  %v368 = vpack.c.bf16 %v318, %v317
  %v369 = vpack.c.bf16 %v320, %v319
  %v370 = vpack.c.bf16 %v322, %v321
  %v371 = vpack.c.bf16 %v324, %v323
  %v372 = vpack.c.bf16 %v326, %v325
  %v373 = vpack.c.bf16 %v328, %v327
  %v374 = vpack.c.bf16 %v330, %v329
  %v375 = vpack.c.bf16 %v332, %v331
  %v376 = vpack.c.bf16 %v334, %v333
  %v377 = vpack.c.bf16 %v336, %v335
  %v378 = vpack.c.bf16 %v338, %v337
  %v379 = vpack.c.bf16 %v340, %v339
  %v380 = vpack.c.bf16 %v342, %v341
  %v381 = vpack.c.bf16 %v344, %v343
  %v382 = vpack.c.bf16 %v346, %v345
  %v383 = vpack.c.bf16 %v348, %v347
  %v384 = vpack.c.bf16 %v350, %v349
  %v385 = vpack.c.bf16 %v352, %v351
  %v386 = vpack.c.bf16 %v354, %v353
  %v387 = vld [vmem:[%s3] sm:$0xf]
  %v388 = vld [vmem:[%s3 + $0x4] sm:$0xf]
  %v389 = vld [vmem:[%s4] sm:$0x1]
  %v391 = vlaneseq
  %v392 = vshrl.u32 %v391, 7
  %v393 = vsub.s32 0, %v392
  %v394 = vrot.slane %v389, %v393
  %v398 = vunpack.c.l.b16 %v387
  %v399 = vunpack.c.l.b16 %v388
  %v400 = vpack.c.b16 %v399, %v398
  %vm402 = vcmask 130048
  %v404 = vsel %vm402, %v355, 0
  %v407 = vsel %vm402, %v356, 0
  %v410 = vsel %vm402, %v357, 0
  %v413 = vsel %vm402, %v358, 0
  %v416 = vsel %vm402, %v359, 0
  %v419 = vsel %vm402, %v360, 0
  %v422 = vsel %vm402, %v361, 0
  %v425 = vsel %vm402, %v362, 0
  %v428 = vsel %vm402, %v363, 0
  %v431 = vsel %vm402, %v364, 0
  %v434 = vsel %vm402, %v365, 0
  %v437 = vsel %vm402, %v366, 0
  %v440 = vsel %vm402, %v367, 0
  %v443 = vsel %vm402, %v368, 0
  %v446 = vsel %vm402, %v369, 0
  %v449 = vsel %vm402, %v370, 0
  %v452 = vsel %vm402, %v371, 0
  %v455 = vsel %vm402, %v372, 0
  %v458 = vsel %vm402, %v373, 0
  %v461 = vsel %vm402, %v374, 0
  %v464 = vsel %vm402, %v375, 0
  %v467 = vsel %vm402, %v376, 0
  %v470 = vsel %vm402, %v377, 0
  %v473 = vsel %vm402, %v378, 0
  %v476 = vsel %vm402, %v379, 0
  %v479 = vsel %vm402, %v380, 0
  %v482 = vsel %vm402, %v381, 0
  %v485 = vsel %vm402, %v382, 0
  %v488 = vsel %vm402, %v383, 0
  %v491 = vsel %vm402, %v384, 0
  %v494 = vsel %vm402, %v385, 0
  %v497 = vsel %vm402, %v386, 0
  %499 = vmatprep.subr.bf16.mxu0 0
  %500 = vmatpush1.bf16.msra.mxu0 0
  %501 = vmatprep.subr.bf16.mxu0 0
  %502 = vmatpush1.bf16.msra.mxu0 0
  %503 = vmatprep.subr.bf16.mxu0 0
  %504 = vmatpush1.bf16.msra.mxu0 0
  %505 = vmatprep.subr.bf16.mxu0 0
  %506 = vmatpush1.bf16.msra.mxu0 0
  %507 = vmatprep.subr.bf16.mxu0 0
  %508 = vmatpush1.bf16.msra.mxu0 0
  %509 = vmatprep.subr.bf16.mxu0 0
  %510 = vmatpush1.bf16.msra.mxu0 0
  %511 = vmatprep.subr.bf16.mxu0 0
  %512 = vmatpush1.bf16.msra.mxu0 0
  %513 = vmatprep.subr.bf16.mxu0 0
  %514 = vmatpush1.bf16.msra.mxu0 %v400
  %515 = vmatprep.subr.bf16.mxu0 0
  %516 = vmatpush2.bf16.msra.mxu0 0
  %517 = vmatprep.subr.bf16.mxu0 0
  %518 = vmatpush2.bf16.msra.mxu0 0
  %519 = vmatprep.subr.bf16.mxu0 0
  %520 = vmatpush2.bf16.msra.mxu0 0
  %521 = vmatprep.subr.bf16.mxu0 0
  %522 = vmatpush2.bf16.msra.mxu0 0
  %523 = vmatprep.subr.bf16.mxu0 0
  %524 = vmatpush2.bf16.msra.mxu0 0
  %525 = vmatprep.subr.bf16.mxu0 0
  %526 = vmatpush2.bf16.msra.mxu0 0
  %527 = vmatprep.subr.bf16.mxu0 0
  %528 = vmatpush2.bf16.msra.mxu0 0
  %529 = vmatprep.subr.bf16.mxu0 0
  %530 = vmatpush2.bf16.msra.mxu0 0
  %531 = vmatprep.mubr.bf16.mxu0 0
  %532 = vmatmul.mubr.bf16.gmra.mxu0 %v404
  %v533 = vpop.f32.mrf.mxu0
  %v534 = vadd.f32 %v394, %v533
  %v535 = vpop.f32.mrf.mxu0
  %v536 = vpop.f32.mrf.mxu0
  %v537 = vadd.f32 %v394, %v536
  %v538 = vpop.f32.mrf.mxu0
  %539 = vmatprep.mubr.bf16.mxu0 0
  %540 = vmatmul.mubr.bf16.gmra.mxu0 %v407
  %v541 = vpop.f32.mrf.mxu0
  %v542 = vadd.f32 %v394, %v541
  %v543 = vpop.f32.mrf.mxu0
  %v544 = vpop.f32.mrf.mxu0
  %v545 = vadd.f32 %v394, %v544
  %v546 = vpop.f32.mrf.mxu0
  %547 = vmatprep.mubr.bf16.mxu0 0
  %548 = vmatmul.mubr.bf16.gmra.mxu0 %v410
  %v549 = vpop.f32.mrf.mxu0
  %v550 = vadd.f32 %v394, %v549
  %v551 = vpop.f32.mrf.mxu0
  %v552 = vpop.f32.mrf.mxu0
  %v553 = vadd.f32 %v394, %v552
  %v554 = vpop.f32.mrf.mxu0
  %555 = vmatprep.mubr.bf16.mxu0 0
  %556 = vmatmul.mubr.bf16.gmra.mxu0 %v413
  %v557 = vpop.f32.mrf.mxu0
  %v558 = vadd.f32 %v394, %v557
  %v559 = vpop.f32.mrf.mxu0
  %v560 = vpop.f32.mrf.mxu0
  %v561 = vadd.f32 %v394, %v560
  %v562 = vpop.f32.mrf.mxu0
  %563 = vmatprep.mubr.bf16.mxu0 0
  %564 = vmatmul.mubr.bf16.gmra.mxu0 %v416
  %v565 = vpop.f32.mrf.mxu0
  %v566 = vadd.f32 %v394, %v565
  %v567 = vpop.f32.mrf.mxu0
  %v568 = vpop.f32.mrf.mxu0
  %v569 = vadd.f32 %v394, %v568
  %v570 = vpop.f32.mrf.mxu0
  %571 = vmatprep.mubr.bf16.mxu0 0
  %572 = vmatmul.mubr.bf16.gmra.mxu0 %v419
  %v573 = vpop.f32.mrf.mxu0
  %v574 = vadd.f32 %v394, %v573
  %v575 = vpop.f32.mrf.mxu0
  %v576 = vpop.f32.mrf.mxu0
  %v577 = vadd.f32 %v394, %v576
  %v578 = vpop.f32.mrf.mxu0
  %579 = vmatprep.mubr.bf16.mxu0 0
  %580 = vmatmul.mubr.bf16.gmra.mxu0 %v422
  %v581 = vpop.f32.mrf.mxu0
  %v582 = vadd.f32 %v394, %v581
  %v583 = vpop.f32.mrf.mxu0
  %v584 = vpop.f32.mrf.mxu0
  %v585 = vadd.f32 %v394, %v584
  %v586 = vpop.f32.mrf.mxu0
  %587 = vmatprep.mubr.bf16.mxu0 0
  %588 = vmatmul.mubr.bf16.gmra.mxu0 %v425
  %v589 = vpop.f32.mrf.mxu0
  %v590 = vadd.f32 %v394, %v589
  %v591 = vpop.f32.mrf.mxu0
  %v592 = vpop.f32.mrf.mxu0
  %v593 = vadd.f32 %v394, %v592
  %v594 = vpop.f32.mrf.mxu0
  %595 = vmatprep.mubr.bf16.mxu0 0
  %596 = vmatmul.mubr.bf16.gmra.mxu0 %v428
  %v597 = vpop.f32.mrf.mxu0
  %v598 = vadd.f32 %v394, %v597
  %v599 = vpop.f32.mrf.mxu0
  %v600 = vpop.f32.mrf.mxu0
  %v601 = vadd.f32 %v394, %v600
  %v602 = vpop.f32.mrf.mxu0
  %603 = vmatprep.mubr.bf16.mxu0 0
  %604 = vmatmul.mubr.bf16.gmra.mxu0 %v431
  %v605 = vpop.f32.mrf.mxu0
  %v606 = vadd.f32 %v394, %v605
  %v607 = vpop.f32.mrf.mxu0
  %v608 = vpop.f32.mrf.mxu0
  %v609 = vadd.f32 %v394, %v608
  %v610 = vpop.f32.mrf.mxu0
  %611 = vmatprep.mubr.bf16.mxu0 0
  %612 = vmatmul.mubr.bf16.gmra.mxu0 %v434
  %v613 = vpop.f32.mrf.mxu0
  %v614 = vadd.f32 %v394, %v613
  %v615 = vpop.f32.mrf.mxu0
  %v616 = vpop.f32.mrf.mxu0
  %v617 = vadd.f32 %v394, %v616
  %v618 = vpop.f32.mrf.mxu0
  %619 = vmatprep.mubr.bf16.mxu0 0
  %620 = vmatmul.mubr.bf16.gmra.mxu0 %v437
  %v621 = vpop.f32.mrf.mxu0
  %v622 = vadd.f32 %v394, %v621
  %v623 = vpop.f32.mrf.mxu0
  %v624 = vpop.f32.mrf.mxu0
  %v625 = vadd.f32 %v394, %v624
  %v626 = vpop.f32.mrf.mxu0
  %627 = vmatprep.mubr.bf16.mxu0 0
  %628 = vmatmul.mubr.bf16.gmra.mxu0 %v440
  %v629 = vpop.f32.mrf.mxu0
  %v630 = vadd.f32 %v394, %v629
  %v631 = vpop.f32.mrf.mxu0
  %v632 = vpop.f32.mrf.mxu0
  %v633 = vadd.f32 %v394, %v632
  %v634 = vpop.f32.mrf.mxu0
  %635 = vmatprep.mubr.bf16.mxu0 0
  %636 = vmatmul.mubr.bf16.gmra.mxu0 %v443
  %v637 = vpop.f32.mrf.mxu0
  %v638 = vadd.f32 %v394, %v637
  %v639 = vpop.f32.mrf.mxu0
  %v640 = vpop.f32.mrf.mxu0
  %v641 = vadd.f32 %v394, %v640
  %v642 = vpop.f32.mrf.mxu0
  %643 = vmatprep.mubr.bf16.mxu0 0
  %644 = vmatmul.mubr.bf16.gmra.mxu0 %v446
  %v645 = vpop.f32.mrf.mxu0
  %v646 = vadd.f32 %v394, %v645
  %v647 = vpop.f32.mrf.mxu0
  %v648 = vpop.f32.mrf.mxu0
  %v649 = vadd.f32 %v394, %v648
  %v650 = vpop.f32.mrf.mxu0
  %651 = vmatprep.mubr.bf16.mxu0 0
  %652 = vmatmul.mubr.bf16.gmra.mxu0 %v449
  %v653 = vpop.f32.mrf.mxu0
  %v654 = vadd.f32 %v394, %v653
  %v655 = vpop.f32.mrf.mxu0
  %v656 = vpop.f32.mrf.mxu0
  %v657 = vadd.f32 %v394, %v656
  %v658 = vpop.f32.mrf.mxu0
  %659 = vmatprep.mubr.bf16.mxu0 0
  %660 = vmatmul.mubr.bf16.gmra.mxu0 %v452
  %v661 = vpop.f32.mrf.mxu0
  %v662 = vadd.f32 %v394, %v661
  %v663 = vpop.f32.mrf.mxu0
  %v664 = vpop.f32.mrf.mxu0
  %v665 = vadd.f32 %v394, %v664
  %v666 = vpop.f32.mrf.mxu0
  %667 = vmatprep.mubr.bf16.mxu0 0
  %668 = vmatmul.mubr.bf16.gmra.mxu0 %v455
  %v669 = vpop.f32.mrf.mxu0
  %v670 = vadd.f32 %v394, %v669
  %v671 = vpop.f32.mrf.mxu0
  %v672 = vpop.f32.mrf.mxu0
  %v673 = vadd.f32 %v394, %v672
  %v674 = vpop.f32.mrf.mxu0
  %675 = vmatprep.mubr.bf16.mxu0 0
  %676 = vmatmul.mubr.bf16.gmra.mxu0 %v458
  %v677 = vpop.f32.mrf.mxu0
  %v678 = vadd.f32 %v394, %v677
  %v679 = vpop.f32.mrf.mxu0
  %v680 = vpop.f32.mrf.mxu0
  %v681 = vadd.f32 %v394, %v680
  %v682 = vpop.f32.mrf.mxu0
  %683 = vmatprep.mubr.bf16.mxu0 0
  %684 = vmatmul.mubr.bf16.gmra.mxu0 %v461
  %v685 = vpop.f32.mrf.mxu0
  %v686 = vadd.f32 %v394, %v685
  %v687 = vpop.f32.mrf.mxu0
  %v688 = vpop.f32.mrf.mxu0
  %v689 = vadd.f32 %v394, %v688
  %v690 = vpop.f32.mrf.mxu0
  %691 = vmatprep.mubr.bf16.mxu0 0
  %692 = vmatmul.mubr.bf16.gmra.mxu0 %v464
  %v693 = vpop.f32.mrf.mxu0
  %v694 = vadd.f32 %v394, %v693
  %v695 = vpop.f32.mrf.mxu0
  %v696 = vpop.f32.mrf.mxu0
  %v697 = vadd.f32 %v394, %v696
  %v698 = vpop.f32.mrf.mxu0
  %699 = vmatprep.mubr.bf16.mxu0 0
  %700 = vmatmul.mubr.bf16.gmra.mxu0 %v467
  %v701 = vpop.f32.mrf.mxu0
  %v702 = vadd.f32 %v394, %v701
  %v703 = vpop.f32.mrf.mxu0
  %v704 = vpop.f32.mrf.mxu0
  %v705 = vadd.f32 %v394, %v704
  %v706 = vpop.f32.mrf.mxu0
  %707 = vmatprep.mubr.bf16.mxu0 0
  %708 = vmatmul.mubr.bf16.gmra.mxu0 %v470
  %v709 = vpop.f32.mrf.mxu0
  %v710 = vadd.f32 %v394, %v709
  %v711 = vpop.f32.mrf.mxu0
  %v712 = vpop.f32.mrf.mxu0
  %v713 = vadd.f32 %v394, %v712
  %v714 = vpop.f32.mrf.mxu0
  %715 = vmatprep.mubr.bf16.mxu0 0
  %716 = vmatmul.mubr.bf16.gmra.mxu0 %v473
  %v717 = vpop.f32.mrf.mxu0
  %v718 = vadd.f32 %v394, %v717
  %v719 = vpop.f32.mrf.mxu0
  %v720 = vpop.f32.mrf.mxu0
  %v721 = vadd.f32 %v394, %v720
  %v722 = vpop.f32.mrf.mxu0
  %723 = vmatprep.mubr.bf16.mxu0 0
  %724 = vmatmul.mubr.bf16.gmra.mxu0 %v476
  %v725 = vpop.f32.mrf.mxu0
  %v726 = vadd.f32 %v394, %v725
  %v727 = vpop.f32.mrf.mxu0
  %v728 = vpop.f32.mrf.mxu0
  %v729 = vadd.f32 %v394, %v728
  %v730 = vpop.f32.mrf.mxu0
  %731 = vmatprep.mubr.bf16.mxu0 0
  %732 = vmatmul.mubr.bf16.gmra.mxu0 %v479
  %v733 = vpop.f32.mrf.mxu0
  %v734 = vadd.f32 %v394, %v733
  %v735 = vpop.f32.mrf.mxu0
  %v736 = vpop.f32.mrf.mxu0
  %v737 = vadd.f32 %v394, %v736
  %v738 = vpop.f32.mrf.mxu0
  %739 = vmatprep.mubr.bf16.mxu0 0
  %740 = vmatmul.mubr.bf16.gmra.mxu0 %v482
  %v741 = vpop.f32.mrf.mxu0
  %v742 = vadd.f32 %v394, %v741
  %v743 = vpop.f32.mrf.mxu0
  %v744 = vpop.f32.mrf.mxu0
  %v745 = vadd.f32 %v394, %v744
  %v746 = vpop.f32.mrf.mxu0
  %747 = vmatprep.mubr.bf16.mxu0 0
  %748 = vmatmul.mubr.bf16.gmra.mxu0 %v485
  %v749 = vpop.f32.mrf.mxu0
  %v750 = vadd.f32 %v394, %v749
  %v751 = vpop.f32.mrf.mxu0
  %v752 = vpop.f32.mrf.mxu0
  %v753 = vadd.f32 %v394, %v752
  %v754 = vpop.f32.mrf.mxu0
  %755 = vmatprep.mubr.bf16.mxu0 0
  %756 = vmatmul.mubr.bf16.gmra.mxu0 %v488
  %v757 = vpop.f32.mrf.mxu0
  %v758 = vadd.f32 %v394, %v757
  %v759 = vpop.f32.mrf.mxu0
  %v760 = vpop.f32.mrf.mxu0
  %v761 = vadd.f32 %v394, %v760
  %v762 = vpop.f32.mrf.mxu0
  %763 = vmatprep.mubr.bf16.mxu0 0
  %764 = vmatmul.mubr.bf16.gmra.mxu0 %v491
  %v765 = vpop.f32.mrf.mxu0
  %v766 = vadd.f32 %v394, %v765
  %v767 = vpop.f32.mrf.mxu0
  %v768 = vpop.f32.mrf.mxu0
  %v769 = vadd.f32 %v394, %v768
  %v770 = vpop.f32.mrf.mxu0
  %771 = vmatprep.mubr.bf16.mxu0 0
  %772 = vmatmul.mubr.bf16.gmra.mxu0 %v494
  %v773 = vpop.f32.mrf.mxu0
  %v774 = vadd.f32 %v394, %v773
  %v775 = vpop.f32.mrf.mxu0
  %v776 = vpop.f32.mrf.mxu0
  %v777 = vadd.f32 %v394, %v776
  %v778 = vpop.f32.mrf.mxu0
  %779 = vmatprep.mubr.bf16.mxu0 0
  %780 = vmatmul.mubr.bf16.gmra.mxu0 %v497
  %v781 = vpop.f32.mrf.mxu0
  %v782 = vadd.f32 %v394, %v781
  %v783 = vpop.f32.mrf.mxu0
  %v784 = vpop.f32.mrf.mxu0
  %v785 = vadd.f32 %v394, %v784
  %v786 = vpop.f32.mrf.mxu0
  %787 = vdwg.mxu0
  %v788 = vmax.f32 %v534, 0.0
  %v789 = vmax.f32 %v537, 0.0
  %v790 = vmax.f32 %v542, 0.0
  %v791 = vmax.f32 %v545, 0.0
  %v792 = vmax.f32 %v550, 0.0
  %v793 = vmax.f32 %v553, 0.0
  %v794 = vmax.f32 %v558, 0.0
  %v795 = vmax.f32 %v561, 0.0
  %v796 = vmax.f32 %v566, 0.0
  %v797 = vmax.f32 %v569, 0.0
  %v798 = vmax.f32 %v574, 0.0
  %v799 = vmax.f32 %v577, 0.0
  %v800 = vmax.f32 %v582, 0.0
  %v801 = vmax.f32 %v585, 0.0
  %v802 = vmax.f32 %v590, 0.0
  %v803 = vmax.f32 %v593, 0.0
  %v804 = vmax.f32 %v598, 0.0
  %v805 = vmax.f32 %v601, 0.0
  %v806 = vmax.f32 %v606, 0.0
  %v807 = vmax.f32 %v609, 0.0
  %v808 = vmax.f32 %v614, 0.0
  %v809 = vmax.f32 %v617, 0.0
  %v810 = vmax.f32 %v622, 0.0
  %v811 = vmax.f32 %v625, 0.0
  %v812 = vmax.f32 %v630, 0.0
  %v813 = vmax.f32 %v633, 0.0
  %v814 = vmax.f32 %v638, 0.0
  %v815 = vmax.f32 %v641, 0.0
  %v816 = vmax.f32 %v646, 0.0
  %v817 = vmax.f32 %v649, 0.0
  %v818 = vmax.f32 %v654, 0.0
  %v819 = vmax.f32 %v657, 0.0
  %v820 = vmax.f32 %v662, 0.0
  %v821 = vmax.f32 %v665, 0.0
  %v822 = vmax.f32 %v670, 0.0
  %v823 = vmax.f32 %v673, 0.0
  %v824 = vmax.f32 %v678, 0.0
  %v825 = vmax.f32 %v681, 0.0
  %v826 = vmax.f32 %v686, 0.0
  %v827 = vmax.f32 %v689, 0.0
  %v828 = vmax.f32 %v694, 0.0
  %v829 = vmax.f32 %v697, 0.0
  %v830 = vmax.f32 %v702, 0.0
  %v831 = vmax.f32 %v705, 0.0
  %v832 = vmax.f32 %v710, 0.0
  %v833 = vmax.f32 %v713, 0.0
  %v834 = vmax.f32 %v718, 0.0
  %v835 = vmax.f32 %v721, 0.0
  %v836 = vmax.f32 %v726, 0.0
  %v837 = vmax.f32 %v729, 0.0
  %v838 = vmax.f32 %v734, 0.0
  %v839 = vmax.f32 %v737, 0.0
  %v840 = vmax.f32 %v742, 0.0
  %v841 = vmax.f32 %v745, 0.0
  %v842 = vmax.f32 %v750, 0.0
  %v843 = vmax.f32 %v753, 0.0
  %v844 = vmax.f32 %v758, 0.0
  %v845 = vmax.f32 %v761, 0.0
  %v846 = vmax.f32 %v766, 0.0
  %v847 = vmax.f32 %v769, 0.0
  %v848 = vmax.f32 %v774, 0.0
  %v849 = vmax.f32 %v777, 0.0
  %v850 = vmax.f32 %v782, 0.0
  %v851 = vmax.f32 %v785, 0.0
  %v852 = vpack.c.bf16 %v789, %v788
  %v853 = vpack.c.bf16 %v791, %v790
  %v854 = vpack.c.bf16 %v793, %v792
  %v855 = vpack.c.bf16 %v795, %v794
  %v856 = vpack.c.bf16 %v797, %v796
  %v857 = vpack.c.bf16 %v799, %v798
  %v858 = vpack.c.bf16 %v801, %v800
  %v859 = vpack.c.bf16 %v803, %v802
  %v860 = vpack.c.bf16 %v805, %v804
  %v861 = vpack.c.bf16 %v807, %v806
  %v862 = vpack.c.bf16 %v809, %v808
  %v863 = vpack.c.bf16 %v811, %v810
  %v864 = vpack.c.bf16 %v813, %v812
  %v865 = vpack.c.bf16 %v815, %v814
  %v866 = vpack.c.bf16 %v817, %v816
  %v867 = vpack.c.bf16 %v819, %v818
  %v868 = vpack.c.bf16 %v821, %v820
  %v869 = vpack.c.bf16 %v823, %v822
  %v870 = vpack.c.bf16 %v825, %v824
  %v871 = vpack.c.bf16 %v827, %v826
  %v872 = vpack.c.bf16 %v829, %v828
  %v873 = vpack.c.bf16 %v831, %v830
  %v874 = vpack.c.bf16 %v833, %v832
  %v875 = vpack.c.bf16 %v835, %v834
  %v876 = vpack.c.bf16 %v837, %v836
  %v877 = vpack.c.bf16 %v839, %v838
  %v878 = vpack.c.bf16 %v841, %v840
  %v879 = vpack.c.bf16 %v843, %v842
  %v880 = vpack.c.bf16 %v845, %v844
  %v881 = vpack.c.bf16 %v847, %v846
  %v882 = vpack.c.bf16 %v849, %v848
  %v883 = vpack.c.bf16 %v851, %v850
  %v916 = vunpack.c.l.b16 %v852
  %v917 = vunpack.c.h.b16 %v852
  %v918 = vunpack.c.l.b16 %v853
  %v919 = vunpack.c.h.b16 %v853
  %v920 = vunpack.c.l.b16 %v854
  %v921 = vunpack.c.h.b16 %v854
  %v922 = vunpack.c.l.b16 %v855
  %v923 = vunpack.c.h.b16 %v855
  %v924 = vunpack.c.l.b16 %v856
  %v925 = vunpack.c.h.b16 %v856
  %v926 = vunpack.c.l.b16 %v857
  %v927 = vunpack.c.h.b16 %v857
  %v928 = vunpack.c.l.b16 %v858
  %v929 = vunpack.c.h.b16 %v858
  %v930 = vunpack.c.l.b16 %v859
  %v931 = vunpack.c.h.b16 %v859
  %v932 = vunpack.c.l.b16 %v860
  %v933 = vunpack.c.h.b16 %v860
  %v934 = vunpack.c.l.b16 %v861
  %v935 = vunpack.c.h.b16 %v861
  %v936 = vunpack.c.l.b16 %v862
  %v937 = vunpack.c.h.b16 %v862
  %v938 = vunpack.c.l.b16 %v863
  %v939 = vunpack.c.h.b16 %v863
  %v940 = vunpack.c.l.b16 %v864
  %v941 = vunpack.c.h.b16 %v864
  %v942 = vunpack.c.l.b16 %v865
  %v943 = vunpack.c.h.b16 %v865
  %v944 = vunpack.c.l.b16 %v866
  %v945 = vunpack.c.h.b16 %v866
  %v946 = vunpack.c.l.b16 %v867
  %v947 = vunpack.c.h.b16 %v867
  %v948 = vunpack.c.l.b16 %v868
  %v949 = vunpack.c.h.b16 %v868
  %v950 = vunpack.c.l.b16 %v869
  %v951 = vunpack.c.h.b16 %v869
  %v952 = vunpack.c.l.b16 %v870
  %v953 = vunpack.c.h.b16 %v870
  %v954 = vunpack.c.l.b16 %v871
  %v955 = vunpack.c.h.b16 %v871
  %v956 = vunpack.c.l.b16 %v872
  %v957 = vunpack.c.h.b16 %v872
  %v958 = vunpack.c.l.b16 %v873
  %v959 = vunpack.c.h.b16 %v873
  %v960 = vunpack.c.l.b16 %v874
  %v961 = vunpack.c.h.b16 %v874
  %v962 = vunpack.c.l.b16 %v875
  %v963 = vunpack.c.h.b16 %v875
  %v964 = vunpack.c.l.b16 %v876
  %v965 = vunpack.c.h.b16 %v876
  %v966 = vunpack.c.l.b16 %v877
  %v967 = vunpack.c.h.b16 %v877
  %v968 = vunpack.c.l.b16 %v878
  %v969 = vunpack.c.h.b16 %v878
  %v970 = vunpack.c.l.b16 %v879
  %v971 = vunpack.c.h.b16 %v879
  %v972 = vunpack.c.l.b16 %v880
  %v973 = vunpack.c.h.b16 %v880
  %v974 = vunpack.c.l.b16 %v881
  %v975 = vunpack.c.h.b16 %v881
  %v976 = vunpack.c.l.b16 %v882
  %v977 = vunpack.c.h.b16 %v882
  %v978 = vunpack.c.l.b16 %v883
  %v979 = vunpack.c.h.b16 %v883
  %v980 = vpack.c.b16 %v916, %v916
  %v981 = vpack.c.b16 %v917, %v917
  %v982 = vpack.c.b16 %v918, %v918
  %v983 = vpack.c.b16 %v919, %v919
  %v984 = vpack.c.b16 %v920, %v920
  %v985 = vpack.c.b16 %v921, %v921
  %v986 = vpack.c.b16 %v922, %v922
  %v987 = vpack.c.b16 %v923, %v923
  %v988 = vpack.c.b16 %v924, %v924
  %v989 = vpack.c.b16 %v925, %v925
  %v990 = vpack.c.b16 %v926, %v926
  %v991 = vpack.c.b16 %v927, %v927
  %v992 = vpack.c.b16 %v928, %v928
  %v993 = vpack.c.b16 %v929, %v929
  %v994 = vpack.c.b16 %v930, %v930
  %v995 = vpack.c.b16 %v931, %v931
  %v996 = vpack.c.b16 %v932, %v932
  %v997 = vpack.c.b16 %v933, %v933
  %v998 = vpack.c.b16 %v934, %v934
  %v999 = vpack.c.b16 %v935, %v935
  %v1000 = vpack.c.b16 %v936, %v936
  %v1001 = vpack.c.b16 %v937, %v937
  %v1002 = vpack.c.b16 %v938, %v938
  %v1003 = vpack.c.b16 %v939, %v939
  %v1004 = vpack.c.b16 %v940, %v940
  %v1005 = vpack.c.b16 %v941, %v941
  %v1006 = vpack.c.b16 %v942, %v942
  %v1007 = vpack.c.b16 %v943, %v943
  %v1008 = vpack.c.b16 %v944, %v944
  %v1009 = vpack.c.b16 %v945, %v945
  %v1010 = vpack.c.b16 %v946, %v946
  %v1011 = vpack.c.b16 %v947, %v947
  %v1012 = vpack.c.b16 %v948, %v948
  %v1013 = vpack.c.b16 %v949, %v949
  %v1014 = vpack.c.b16 %v950, %v950
  %v1015 = vpack.c.b16 %v951, %v951
  %v1016 = vpack.c.b16 %v952, %v952
  %v1017 = vpack.c.b16 %v953, %v953
  %v1018 = vpack.c.b16 %v954, %v954
  %v1019 = vpack.c.b16 %v955, %v955
  %v1020 = vpack.c.b16 %v956, %v956
  %v1021 = vpack.c.b16 %v957, %v957
  %v1022 = vpack.c.b16 %v958, %v958
  %v1023 = vpack.c.b16 %v959, %v959
  %v1024 = vpack.c.b16 %v960, %v960
  %v1025 = vpack.c.b16 %v961, %v961
  %v1026 = vpack.c.b16 %v962, %v962
  %v1027 = vpack.c.b16 %v963, %v963
  %v1028 = vpack.c.b16 %v964, %v964
  %v1029 = vpack.c.b16 %v965, %v965
  %v1030 = vpack.c.b16 %v966, %v966
  %v1031 = vpack.c.b16 %v967, %v967
  %v1032 = vpack.c.b16 %v968, %v968
  %v1033 = vpack.c.b16 %v969, %v969
  %v1034 = vpack.c.b16 %v970, %v970
  %v1035 = vpack.c.b16 %v971, %v971
  %v1036 = vpack.c.b16 %v972, %v972
  %v1037 = vpack.c.b16 %v973, %v973
  %v1038 = vpack.c.b16 %v974, %v974
  %v1039 = vpack.c.b16 %v975, %v975
  %v1040 = vpack.c.b16 %v976, %v976
  %v1041 = vpack.c.b16 %v977, %v977
  %v1042 = vpack.c.b16 %v978, %v978
  %v1043 = vpack.c.b16 %v979, %v979
  %vm1108 = vcmask 60416
  %1109 = vst.msk [vmem:[%s5] sm:$0xf] %vm1108, %v980
  %1110 = vst.msk [vmem:[%s5 + $0x4] sm:$0xf] %vm1108, %v981
  %1111 = vst.msk [vmem:[%s5 + $0x8] sm:$0xf] %vm1108, %v982
  %1112 = vst.msk [vmem:[%s5 + $0xc] sm:$0xf] %vm1108, %v983
  %1113 = vst.msk [vmem:[%s5 + $0x10] sm:$0xf] %vm1108, %v984
  %1114 = vst.msk [vmem:[%s5 + $0x14] sm:$0xf] %vm1108, %v985
  %1115 = vst.msk [vmem:[%s5 + $0x18] sm:$0xf] %vm1108, %v986
  %1116 = vst.msk [vmem:[%s5 + $0x1c] sm:$0xf] %vm1108, %v987
  %1117 = vst.msk [vmem:[%s5 + $0x20] sm:$0xf] %vm1108, %v988
  %1118 = vst.msk [vmem:[%s5 + $0x24] sm:$0xf] %vm1108, %v989
  %1119 = vst.msk [vmem:[%s5 + $0x28] sm:$0xf] %vm1108, %v990
  %1120 = vst.msk [vmem:[%s5 + $0x2c] sm:$0xf] %vm1108, %v991
  %1121 = vst.msk [vmem:[%s5 + $0x30] sm:$0xf] %vm1108, %v992
  %1122 = vst.msk [vmem:[%s5 + $0x34] sm:$0xf] %vm1108, %v993
  %1123 = vst.msk [vmem:[%s5 + $0x38] sm:$0xf] %vm1108, %v994
  %1124 = vst.msk [vmem:[%s5 + $0x3c] sm:$0xf] %vm1108, %v995
  %1125 = vst.msk [vmem:[%s5 + $0x40] sm:$0xf] %vm1108, %v996
  %1126 = vst.msk [vmem:[%s5 + $0x44] sm:$0xf] %vm1108, %v997
  %1127 = vst.msk [vmem:[%s5 + $0x48] sm:$0xf] %vm1108, %v998
  %1128 = vst.msk [vmem:[%s5 + $0x4c] sm:$0xf] %vm1108, %v999
  %1129 = vst.msk [vmem:[%s5 + $0x50] sm:$0xf] %vm1108, %v1000
  %1130 = vst.msk [vmem:[%s5 + $0x54] sm:$0xf] %vm1108, %v1001
  %1131 = vst.msk [vmem:[%s5 + $0x58] sm:$0xf] %vm1108, %v1002
  %1132 = vst.msk [vmem:[%s5 + $0x5c] sm:$0xf] %vm1108, %v1003
  %1133 = vst.msk [vmem:[%s5 + $0x60] sm:$0xf] %vm1108, %v1004
  %1134 = vst.msk [vmem:[%s5 + $0x64] sm:$0xf] %vm1108, %v1005
  %1135 = vst.msk [vmem:[%s5 + $0x68] sm:$0xf] %vm1108, %v1006
  %1136 = vst.msk [vmem:[%s5 + $0x6c] sm:$0xf] %vm1108, %v1007
  %1137 = vst.msk [vmem:[%s5 + $0x70] sm:$0xf] %vm1108, %v1008
  %1138 = vst.msk [vmem:[%s5 + $0x74] sm:$0xf] %vm1108, %v1009
  %1139 = vst.msk [vmem:[%s5 + $0x78] sm:$0xf] %vm1108, %v1010
  %1140 = vst.msk [vmem:[%s5 + $0x7c] sm:$0xf] %vm1108, %v1011
  %1141 = vst.msk [vmem:[%s5 + $0x80] sm:$0xf] %vm1108, %v1012
  %1142 = vst.msk [vmem:[%s5 + $0x84] sm:$0xf] %vm1108, %v1013
  %1143 = vst.msk [vmem:[%s5 + $0x88] sm:$0xf] %vm1108, %v1014
  %1144 = vst.msk [vmem:[%s5 + $0x8c] sm:$0xf] %vm1108, %v1015
  %1145 = vst.msk [vmem:[%s5 + $0x90] sm:$0xf] %vm1108, %v1016
  %1146 = vst.msk [vmem:[%s5 + $0x94] sm:$0xf] %vm1108, %v1017
  %1147 = vst.msk [vmem:[%s5 + $0x98] sm:$0xf] %vm1108, %v1018
  %1148 = vst.msk [vmem:[%s5 + $0x9c] sm:$0xf] %vm1108, %v1019
  %1149 = vst.msk [vmem:[%s5 + $0xa0] sm:$0xf] %vm1108, %v1020
  %1150 = vst.msk [vmem:[%s5 + $0xa4] sm:$0xf] %vm1108, %v1021
  %1151 = vst.msk [vmem:[%s5 + $0xa8] sm:$0xf] %vm1108, %v1022
  %1152 = vst.msk [vmem:[%s5 + $0xac] sm:$0xf] %vm1108, %v1023
  %1153 = vst.msk [vmem:[%s5 + $0xb0] sm:$0xf] %vm1108, %v1024
  %1154 = vst.msk [vmem:[%s5 + $0xb4] sm:$0xf] %vm1108, %v1025
  %1155 = vst.msk [vmem:[%s5 + $0xb8] sm:$0xf] %vm1108, %v1026
  %1156 = vst.msk [vmem:[%s5 + $0xbc] sm:$0xf] %vm1108, %v1027
  %1157 = vst.msk [vmem:[%s5 + $0xc0] sm:$0xf] %vm1108, %v1028
  %1158 = vst.msk [vmem:[%s5 + $0xc4] sm:$0xf] %vm1108, %v1029
  %1159 = vst.msk [vmem:[%s5 + $0xc8] sm:$0xf] %vm1108, %v1030
  %1160 = vst.msk [vmem:[%s5 + $0xcc] sm:$0xf] %vm1108, %v1031
  %1161 = vst.msk [vmem:[%s5 + $0xd0] sm:$0xf] %vm1108, %v1032
  %1162 = vst.msk [vmem:[%s5 + $0xd4] sm:$0xf] %vm1108, %v1033
  %1163 = vst.msk [vmem:[%s5 + $0xd8] sm:$0xf] %vm1108, %v1034
  %1164 = vst.msk [vmem:[%s5 + $0xdc] sm:$0xf] %vm1108, %v1035
  %1165 = vst.msk [vmem:[%s5 + $0xe0] sm:$0xf] %vm1108, %v1036
  %1166 = vst.msk [vmem:[%s5 + $0xe4] sm:$0xf] %vm1108, %v1037
  %1167 = vst.msk [vmem:[%s5 + $0xe8] sm:$0xf] %vm1108, %v1038
  %1168 = vst.msk [vmem:[%s5 + $0xec] sm:$0xf] %vm1108, %v1039
  %1169 = vst.msk [vmem:[%s5 + $0xf0] sm:$0xf] %vm1108, %v1040
  %1170 = vst.msk [vmem:[%s5 + $0xf4] sm:$0xf] %vm1108, %v1041
  %1171 = vst.msk [vmem:[%s5 + $0xf8] sm:$0xf] %vm1108, %v1042
  %1172 = vst.msk [vmem:[%s5 + $0xfc] sm:$0xf] %vm1108, %v1043
  // Predicated region
  $region22: #{se_bottleneck_forward.6} parent=0 // pred_check
    _
  $region23: #{se_bottleneck_forward.6} parent=0 // pred_check_branch
    %1174 = sbr.rel (0) target = $region25
  $region24: #{se_bottleneck_forward.6} parent=0 // pred_region
    _
  $region25: #{se_bottleneck_forward.6} parent=0 // pred_fallthru
    _
  // Predicated region
  $region26: #{se_bottleneck_forward.6} parent=0 // pred_check
    _
  $region27: #{se_bottleneck_forward.6} parent=0 // pred_check_branch
    %1176 = sbr.rel (0) target = $region29
  $region28: #{se_bottleneck_forward.6} parent=0 // pred_region
    _
  $region29: #{se_bottleneck_forward.6} parent=0 // pred_fallthru
    _

// kernel: se_bottleneck_forward.10
$region0: #{se_bottleneck_forward.10}
  #allocation0 [shape = 'u32[]', space=smem, size = 0x4, offset = 0x4, fixed_abs, tag = 'smem constant byte address 0x4 - core index']
  #allocation1 [shape = 'u32[144,128]{1,0:T(1,128)}', space=vmem, size = 0x12000, scoped, tag = 'internal scratch']
  %s0 = inlined_call_operand.vmem [shape: f32[2,1,32], index: 0, kind: input, shape index: {}]
  %s1 = inlined_call_operand.vmem [shape: f32[32,4], index: 1, kind: input, shape index: {}]
  %s2 = inlined_call_operand.vmem [shape: f32[1,4], index: 2, kind: input, shape index: {}]
  %s3 = inlined_call_operand.vmem [shape: f32[4,32], index: 3, kind: input, shape index: {}]
  %s4 = inlined_call_operand.vmem [shape: f32[1,32], index: 4, kind: input, shape index: {}]
  %s5 = inlined_call_operand.vmem [shape: f32[2,1,32], index: 5, kind: output, shape index: {}]
  %s6 = sld [smem:[#allocation0]]
  $region30: #{se_bottleneck_forward.10} parent=0
    _
  %s8 = ssub.s32 1, %s6
  %s9 = scalar_select 0, %s8, %s6
  // Predicated region
  $region2: #{se_bottleneck_forward.10} parent=0 // pred_check
    _
  $region3: #{se_bottleneck_forward.10} parent=0 // pred_check_branch
    %11 = sbr.rel (0) target = $region5
  $region4: #{se_bottleneck_forward.10} parent=0 // pred_region
    _
  $region5: #{se_bottleneck_forward.10} parent=0 // pred_fallthru
    _
  // Predicated region
  $region6: #{se_bottleneck_forward.10} parent=0 // pred_check
    _
  $region7: #{se_bottleneck_forward.10} parent=0 // pred_check_branch
    %13 = sbr.rel (0) target = $region9
  $region8: #{se_bottleneck_forward.10} parent=0 // pred_region
    _
  $region9: #{se_bottleneck_forward.10} parent=0 // pred_fallthru
    _
  // Predicated region
  $region10: #{se_bottleneck_forward.10} parent=0 // pred_check
    _
  $region11: #{se_bottleneck_forward.10} parent=0 // pred_check_branch
    %15 = sbr.rel (0) target = $region13
  $region12: #{se_bottleneck_forward.10} parent=0 // pred_region
    _
  $region13: #{se_bottleneck_forward.10} parent=0 // pred_fallthru
    _
  // Predicated region
  $region14: #{se_bottleneck_forward.10} parent=0 // pred_check
    _
  $region15: #{se_bottleneck_forward.10} parent=0 // pred_check_branch
    %17 = sbr.rel (0) target = $region17
  $region16: #{se_bottleneck_forward.10} parent=0 // pred_region
    _
  $region17: #{se_bottleneck_forward.10} parent=0 // pred_fallthru
    _
  // Predicated region
  $region18: #{se_bottleneck_forward.10} parent=0 // pred_check
    _
  $region19: #{se_bottleneck_forward.10} parent=0 // pred_check_branch
    %19 = sbr.rel (0) target = $region21
  $region20: #{se_bottleneck_forward.10} parent=0 // pred_region
    _
  $region21: #{se_bottleneck_forward.10} parent=0 // pred_fallthru
    _
  %v20 = vld [vmem:[%s0] sm:$0x1]
  %v21 = vld [vmem:[%s0 + $0x1] sm:$0x1]
  %v22 = vmul.f32 %v20, 0.015625
  %v23 = vmul.f32 %v21, 0.015625
  %v24 = vld [vmem:[%s1] sm:$0xff]
  %v25 = vld [vmem:[%s1 + $0x8] sm:$0xff]
  %v26 = vld [vmem:[%s1 + $0x10] sm:$0xff]
  %v27 = vld [vmem:[%s1 + $0x18] sm:$0xff]
  %v28 = vld [vmem:[%s2] sm:$0x1]
  %v30 = vlaneseq
  %v31 = vshrl.u32 %v30, 7
  %v32 = vsub.s32 0, %v31
  %v33 = vrot.slane %v28, %v32
  %v37 = vcombine.low %v22, %v23
  %v39 = vunpack.c.l.s4 1966171168
  %v40 = vunpack.c.0.s8 %v39
  %v41 = vlaneseq
  %v42 = vshrl.u32 %v41, 7
  %v43 = vsub.s32 %v40, %v42
  %v44 = vrot.slane %v37, %v43
  %v46 = vunpack.c.l.s4 1966171168
  %v47 = vunpack.c.0.s8 %v46
  %v48 = vlaneseq
  %v49 = vshrl.u32 %v48, 7
  %v50 = vsub.s32 %v47, %v49
  %v51 = vrot.slane %v44, %v50
  %vm52 = vcmask 261120
  %v53 = vsel %vm52, %v51, 0
  %55 = vmatprep.subr.mxu0 0.0
  %56 = vmatpush1.msra.mxu0 0.0
  %57 = vmatprep.subr.mxu0 0.0
  %58 = vmatpush1.msra.mxu0 0.0
  %59 = vmatprep.subr.mxu0 0.0
  %60 = vmatpush1.msra.mxu0 0.0
  %61 = vmatprep.subr.mxu0 0.0
  %62 = vmatpush1.msra.mxu0 0.0
  %63 = vmatprep.subr.mxu0 0.0
  %64 = vmatpush1.msra.mxu0 0.0
  %65 = vmatprep.subr.mxu0 0.0
  %66 = vmatpush1.msra.mxu0 0.0
  %67 = vmatprep.subr.mxu0 0.0
  %68 = vmatpush1.msra.mxu0 0.0
  %69 = vmatprep.subr.mxu0 0.0
  %70 = vmatpush1.msra.mxu0 0.0
  %71 = vmatprep.subr.mxu0 0.0
  %72 = vmatpush1.msra.mxu0 0.0
  %73 = vmatprep.subr.mxu0 0.0
  %74 = vmatpush1.msra.mxu0 0.0
  %75 = vmatprep.subr.mxu0 0.0
  %76 = vmatpush1.msra.mxu0 0.0
  %77 = vmatprep.subr.mxu0 0.0
  %78 = vmatpush1.msra.mxu0 0.0
  %79 = vmatprep.subr.mxu0 0.0
  %80 = vmatpush1.msra.mxu0 %v27
  %81 = vmatprep.subr.mxu0 0.0
  %82 = vmatpush1.msra.mxu0 %v26
  %83 = vmatprep.subr.mxu0 0.0
  %84 = vmatpush1.msra.mxu0 %v25
  %85 = vmatprep.subr.mxu0 0.0
  %86 = vmatpush1.msra.mxu0 %v24
  %87 = vmatprep.subr.mxu0 0.0
  %88 = vmatpush2.msra.mxu0 0.0
  %89 = vmatprep.subr.mxu0 0.0
  %90 = vmatpush2.msra.mxu0 0.0
  %91 = vmatprep.subr.mxu0 0.0
  %92 = vmatpush2.msra.mxu0 0.0
  %93 = vmatprep.subr.mxu0 0.0
  %94 = vmatpush2.msra.mxu0 0.0
  %95 = vmatprep.subr.mxu0 0.0
  %96 = vmatpush2.msra.mxu0 0.0
  %97 = vmatprep.subr.mxu0 0.0
  %98 = vmatpush2.msra.mxu0 0.0
  %99 = vmatprep.subr.mxu0 0.0
  %100 = vmatpush2.msra.mxu0 0.0
  %101 = vmatprep.subr.mxu0 0.0
  %102 = vmatpush2.msra.mxu0 0.0
  %103 = vmatprep.subr.mxu0 0.0
  %104 = vmatpush2.msra.mxu0 0.0
  %105 = vmatprep.subr.mxu0 0.0
  %106 = vmatpush2.msra.mxu0 0.0
  %107 = vmatprep.subr.mxu0 0.0
  %108 = vmatpush2.msra.mxu0 0.0
  %109 = vmatprep.subr.mxu0 0.0
  %110 = vmatpush2.msra.mxu0 0.0
  %111 = vmatprep.subr.mxu0 0.0
  %112 = vmatpush2.msra.mxu0 0.0
  %113 = vmatprep.subr.mxu0 0.0
  %114 = vmatpush2.msra.mxu0 0.0
  %115 = vmatprep.subr.mxu0 0.0
  %116 = vmatpush2.msra.mxu0 0.0
  %117 = vmatprep.subr.mxu0 0.0
  %118 = vmatpush2.msra.mxu0 0.0
  %119 = vmatprep.mubr.f32.mxu0 0.0
  %120 = vmatmul.mubr.f32.gmra.mxu0 %v53
  %v121 = vpop.f32.mrf.mxu0
  %v122 = vadd.f32 %v33, %v121
  %v123 = vpop.f32.mrf.mxu0
  %124 = vdwg.mxu0
  %v125 = vmax.f32 %v122, 0.0
  %v126 = vld [vmem:[%s3] sm:$0xf]
  %v127 = vld [vmem:[%s4] sm:$0x1]
  %v129 = vlaneseq
  %v130 = vshrl.u32 %v129, 7
  %v131 = vsub.s32 0, %v130
  %v132 = vrot.slane %v127, %v131
  %vm134 = vcmask 31744
  %v136 = vsel %vm134, %v125, 0
  %vm138 = vcmask 1043456
  %v140 = vsel %vm138, %v126, 0
  %142 = vmatprep.subr.mxu0 0.0
  %143 = vmatpush1.msra.mxu0 0.0
  %144 = vmatprep.subr.mxu0 0.0
  %145 = vmatpush1.msra.mxu0 0.0
  %146 = vmatprep.subr.mxu0 0.0
  %147 = vmatpush1.msra.mxu0 0.0
  %148 = vmatprep.subr.mxu0 0.0
  %149 = vmatpush1.msra.mxu0 0.0
  %150 = vmatprep.subr.mxu0 0.0
  %151 = vmatpush1.msra.mxu0 0.0
  %152 = vmatprep.subr.mxu0 0.0
  %153 = vmatpush1.msra.mxu0 0.0
  %154 = vmatprep.subr.mxu0 0.0
  %155 = vmatpush1.msra.mxu0 0.0
  %156 = vmatprep.subr.mxu0 0.0
  %157 = vmatpush1.msra.mxu0 0.0
  %158 = vmatprep.subr.mxu0 0.0
  %159 = vmatpush1.msra.mxu0 0.0
  %160 = vmatprep.subr.mxu0 0.0
  %161 = vmatpush1.msra.mxu0 0.0
  %162 = vmatprep.subr.mxu0 0.0
  %163 = vmatpush1.msra.mxu0 0.0
  %164 = vmatprep.subr.mxu0 0.0
  %165 = vmatpush1.msra.mxu0 0.0
  %166 = vmatprep.subr.mxu0 0.0
  %167 = vmatpush1.msra.mxu0 0.0
  %168 = vmatprep.subr.mxu0 0.0
  %169 = vmatpush1.msra.mxu0 0.0
  %170 = vmatprep.subr.mxu0 0.0
  %171 = vmatpush1.msra.mxu0 0.0
  %172 = vmatprep.subr.mxu0 0.0
  %173 = vmatpush1.msra.mxu0 %v140
  %174 = vmatprep.subr.mxu0 0.0
  %175 = vmatpush2.msra.mxu0 0.0
  %176 = vmatprep.subr.mxu0 0.0
  %177 = vmatpush2.msra.mxu0 0.0
  %178 = vmatprep.subr.mxu0 0.0
  %179 = vmatpush2.msra.mxu0 0.0
  %180 = vmatprep.subr.mxu0 0.0
  %181 = vmatpush2.msra.mxu0 0.0
  %182 = vmatprep.subr.mxu0 0.0
  %183 = vmatpush2.msra.mxu0 0.0
  %184 = vmatprep.subr.mxu0 0.0
  %185 = vmatpush2.msra.mxu0 0.0
  %186 = vmatprep.subr.mxu0 0.0
  %187 = vmatpush2.msra.mxu0 0.0
  %188 = vmatprep.subr.mxu0 0.0
  %189 = vmatpush2.msra.mxu0 0.0
  %190 = vmatprep.subr.mxu0 0.0
  %191 = vmatpush2.msra.mxu0 0.0
  %192 = vmatprep.subr.mxu0 0.0
  %193 = vmatpush2.msra.mxu0 0.0
  %194 = vmatprep.subr.mxu0 0.0
  %195 = vmatpush2.msra.mxu0 0.0
  %196 = vmatprep.subr.mxu0 0.0
  %197 = vmatpush2.msra.mxu0 0.0
  %198 = vmatprep.subr.mxu0 0.0
  %199 = vmatpush2.msra.mxu0 0.0
  %200 = vmatprep.subr.mxu0 0.0
  %201 = vmatpush2.msra.mxu0 0.0
  %202 = vmatprep.subr.mxu0 0.0
  %203 = vmatpush2.msra.mxu0 0.0
  %204 = vmatprep.subr.mxu0 0.0
  %205 = vmatpush2.msra.mxu0 0.0
  %206 = vmatprep.mubr.f32.mxu0 0.0
  %207 = vmatmul.mubr.f32.gmra.mxu0 %v136
  %v208 = vpop.f32.mrf.mxu0
  %v209 = vadd.f32 %v132, %v208
  %v210 = vpop.f32.mrf.mxu0
  %211 = vdwg.mxu0
  %v212 = vxor.u32 %v209, 2147483648
  %v213 = vmul.f32 %v212, 1.442695
  %v214 = vpow.pop %v213
  %v215 = vadd.f32 %v214, 1.0
  %v216 = vrcp.pop %v215
  %v217 = vmul.f32 1.0, %v216
  %v220 = vunpack.c.l.s4 1966171168
  %v221 = vunpack.c.0.s8 %v220
  %v222 = vlaneseq
  %v223 = vshrl.u32 %v222, 7
  %v224 = vsub.s32 %v221, %v223
  %v225 = vrot.slane %v217, %v224
  %v226 = vcombine.high %v225, %v225
  %v228 = vunpack.c.l.s4 1966171168
  %v229 = vunpack.c.0.s8 %v228
  %v230 = vlaneseq
  %v231 = vshrl.u32 %v230, 7
  %v232 = vsub.s32 %v229, %v231
  %v233 = vrot.slane %v225, %v232
  %v235 = vunpack.c.l.s4 1966171168
  %v236 = vunpack.c.0.s8 %v235
  %v237 = vlaneseq
  %v238 = vshrl.u32 %v237, 7
  %v239 = vsub.s32 %v236, %v238
  %v240 = vrot.slane %v226, %v239
  %vm243 = vcmask 253952
  %244 = vst.msk [vmem:[%s5] sm:$0x1] %vm243, %v233
  %245 = vst.msk [vmem:[%s5 + $0x1] sm:$0x1] %vm243, %v240
  // Predicated region
  $region22: #{se_bottleneck_forward.10} parent=0 // pred_check
    _
  $region23: #{se_bottleneck_forward.10} parent=0 // pred_check_branch
    %247 = sbr.rel (0) target = $region25
  $region24: #{se_bottleneck_forward.10} parent=0 // pred_region
    _
  $region25: #{se_bottleneck_forward.10} parent=0 // pred_fallthru
    _
  // Predicated region
  $region26: #{se_bottleneck_forward.10} parent=0 // pred_check
    _
  $region27: #{se_bottleneck_forward.10} parent=0 // pred_check_branch
    %249 = sbr.rel (0) target = $region29
  $region28: #{se_bottleneck_forward.10} parent=0 // pred_region
    _
  $region29: #{se_bottleneck_forward.10} parent=0 // pred_fallthru
    _

// kernel: se_bottleneck_forward.9
$region0: #{se_bottleneck_forward.9}
  #allocation0 [shape = 'u32[]', space=smem, size = 0x4, offset = 0x4, fixed_abs, tag = 'smem constant byte address 0x4 - core index']
  #allocation1 [shape = 'u32[144,128]{1,0:T(1,128)}', space=vmem, size = 0x12000, scoped, tag = 'internal scratch']
  %s0 = inlined_call_operand.vmem [shape: bf16[2,64,8], index: 0, kind: input, shape index: {}]
  %s1 = inlined_call_operand.vmem [shape: bf16[8,32], index: 1, kind: input, shape index: {}]
  %s2 = inlined_call_operand.vmem [shape: f32[1,32], index: 2, kind: input, shape index: {}]
  %s3 = inlined_call_operand.vmem [shape: bf16[2,64,32], index: 3, kind: output, shape index: {0}]
  %s4 = inlined_call_operand.vmem [shape: f32[2,1,32], index: 4, kind: output, shape index: {1}]
  %5 = xla_tuple %s3, %s4
  %s6 = sld [smem:[#allocation0]]
  $region57: #{se_bottleneck_forward.9} parent=0
    _
  %s8 = ssub.s32 1, %s6
  %s9 = scalar_select 0, %s8, %s6
  loop: start=0, step=1, limit=4
  $region2: #{se_bottleneck_forward.9} parent=0 // loop_pre_header
    _
  $region3: #{se_bottleneck_forward.9} parent=0 // loop_header
    %s11 = sphi 0, %s15
    %p12 = scmp.ge.s32.totalorder %s11, 4
    %s18 = sphi 0, %s30
    %s19 = sphi 0, %s26
    %s20 = sphi 0, %s18
    %s21 = sphi 0, %s19
    %s22 = sphi 0, %s20
    %s23 = sphi 0, %s21
    %s35 = sphi 0, %s37
    %s38 = sphi 0, %s35
    %s39 = sphi 0, %s38
    %s55 = sphi 0, %s39
    %s59 = sphi 0, %s59
    %s61 = sphi 0, %s59
    %s62 = sphi 0, %s61
    %s76 = sphi 0, %s62
    %s80 = sphi 0, %s80
    %s82 = sphi 0, %s80
    %s83 = sphi 0, %s82
    %s97 = sphi 0, %s83
    %s105 = sphi 0, %s107
    %s108 = sphi 0, %s105
    %s109 = sphi 0, %s108
    %s125 = sphi 0, %s109
    %s131 = sphi 0, %s133
    %s134 = sphi 0, %s131
    %s135 = sphi 0, %s134
    %s151 = sphi 0, %s135
  $region4: #{se_bottleneck_forward.9} parent=0 // loop_header_branch
    %14 = sbr.rel (%p12) target = $region8
  $region5: #{se_bottleneck_forward.9} parent=0 // loop_body
    %s16 = ssub.s32 %s11, 1
    %s17 = ssub.s32 %s11, 2
    %s24 = sadd.s32 1, %s19
    %p25 = scmp.ge.s32.totalorder %s24, 1
    %s26 = scalar_select %p25, 0, %s24
    %s27 = sadd.s32 1, %s18
    %s28 = scalar_select %p25, %s27, %s18
    %p29 = scmp.ge.s32.totalorder %s28, 2
    %s30 = scalar_select %p29, 0, %s28
    %s31 = ssub.s32 %s18, %s30
    %s32 = ssub.s32 %s19, %s26
    %s33 = sor.u32 %s31, %s32
    %p34 = scmp.eq.s32.totalorder %s33, 0
    %s36 = sadd.s32 %s35, 1
    %s37 = scalar_select %p34, %s35, %s36
    %p40 = pneg %p34
    %p41 = scmp.eq.s32.totalorder %s11, 1
    %p42 = por %p40, %p41
    %p43 = scmp.ne.s32.totalorder %s35, %s38
    %p44 = scmp.eq.s32.totalorder %s11, 0
    %p45 = por %p43, %p44
    %p46 = scmp.ne.s32.totalorder %s35, %s38
    %p47 = scmp.eq.s32.totalorder %s16, 1
    %p48 = por %p46, %p47
    %p49 = scmp.ne.s32.totalorder %s38, %s39
    %p50 = scmp.eq.s32.totalorder %s16, 0
    %p51 = por %p49, %p50
    %p52 = scmp.ne.s32.totalorder %s38, %s39
    %p53 = scmp.eq.s32.totalorder %s17, 1
    %p54 = por %p52, %p53
    %p56 = scmp.ne.s32.totalorder %s39, %s55
    %p57 = scmp.eq.s32.totalorder %s17, 0
    %p58 = por %p56, %p57
    %s60 = sadd.s32 %s59, 1
    %p63 = scmp.eq.s32.totalorder %s11, 1
    %p64 = scmp.ne.s32.totalorder %s59, %s61
    %p65 = scmp.eq.s32.totalorder %s11, 0
    %p66 = por %p64, %p65
    %p67 = scmp.ne.s32.totalorder %s59, %s61
    %p68 = scmp.eq.s32.totalorder %s16, 1
    %p69 = por %p67, %p68
    %p70 = scmp.ne.s32.totalorder %s61, %s62
    %p71 = scmp.eq.s32.totalorder %s16, 0
    %p72 = por %p70, %p71
    %p73 = scmp.ne.s32.totalorder %s61, %s62
    %p74 = scmp.eq.s32.totalorder %s17, 1
    %p75 = por %p73, %p74
    %p77 = scmp.ne.s32.totalorder %s62, %s76
    %p78 = scmp.eq.s32.totalorder %s17, 0
    %p79 = por %p77, %p78
    %s81 = sadd.s32 %s80, 1
    %p84 = scmp.eq.s32.totalorder %s11, 1
    %p85 = scmp.ne.s32.totalorder %s80, %s82
    %p86 = scmp.eq.s32.totalorder %s11, 0
    %p87 = por %p85, %p86
    %p88 = scmp.ne.s32.totalorder %s80, %s82
    %p89 = scmp.eq.s32.totalorder %s16, 1
    %p90 = por %p88, %p89
    %p91 = scmp.ne.s32.totalorder %s82, %s83
    %p92 = scmp.eq.s32.totalorder %s16, 0
    %p93 = por %p91, %p92
    %p94 = scmp.ne.s32.totalorder %s82, %s83
    %p95 = scmp.eq.s32.totalorder %s17, 1
    %p96 = por %p94, %p95
    %p98 = scmp.ne.s32.totalorder %s83, %s97
    %p99 = scmp.eq.s32.totalorder %s17, 0
    %p100 = por %p98, %p99
    %s101 = ssub.s32 %s18, %s30
    %s102 = ssub.s32 %s19, %s26
    %s103 = sor.u32 %s101, %s102
    %p104 = scmp.eq.s32.totalorder %s103, 0
    %s106 = sadd.s32 %s105, 1
    %s107 = scalar_select %p104, %s105, %s106
    %p110 = pneg %p104
    %p111 = scmp.eq.s32.totalorder %s11, 1
    %p112 = por %p110, %p111
    %p113 = scmp.ne.s32.totalorder %s105, %s108
    %p114 = scmp.eq.s32.totalorder %s11, 0
    %p115 = por %p113, %p114
    %p116 = scmp.ne.s32.totalorder %s105, %s108
    %p117 = scmp.eq.s32.totalorder %s16, 1
    %p118 = por %p116, %p117
    %p119 = scmp.ne.s32.totalorder %s108, %s109
    %p120 = scmp.eq.s32.totalorder %s16, 0
    %p121 = por %p119, %p120
    %p122 = scmp.ne.s32.totalorder %s108, %s109
    %p123 = scmp.eq.s32.totalorder %s17, 1
    %p124 = por %p122, %p123
    %p126 = scmp.ne.s32.totalorder %s109, %s125
    %p127 = scmp.eq.s32.totalorder %s17, 0
    %p128 = por %p126, %p127
    %s129 = ssub.s32 %s18, %s30
    %p130 = scmp.eq.s32.totalorder %s129, 0
    %s132 = sadd.s32 %s131, 1
    %s133 = scalar_select %p130, %s131, %s132
    %p136 = pneg %p130
    %p137 = scmp.eq.s32.totalorder %s11, 1
    %p138 = por %p136, %p137
    %p139 = scmp.ne.s32.totalorder %s131, %s134
    %p140 = scmp.eq.s32.totalorder %s11, 0
    %p141 = por %p139, %p140
    %p142 = scmp.ne.s32.totalorder %s131, %s134
    %p143 = scmp.eq.s32.totalorder %s16, 1
    %p144 = por %p142, %p143
    %p145 = scmp.ne.s32.totalorder %s134, %s135
    %p146 = scmp.eq.s32.totalorder %s16, 0
    %p147 = por %p145, %p146
    %p148 = scmp.ne.s32.totalorder %s134, %s135
    %p149 = scmp.eq.s32.totalorder %s17, 1
    %p150 = por %p148, %p149
    %p152 = scmp.ne.s32.totalorder %s135, %s151
    %p153 = scmp.eq.s32.totalorder %s17, 0
    %p154 = por %p152, %p153
    %p155 = scmp.le.s32.totalorder 1, %s11
    %p156 = scmp.lt.s32.totalorder %s11, 3
    %p157 = pnand %p155, %p156
    %p158 = pneg %p157
    // Predicated region
    $region9: #{se_bottleneck_forward.9} parent=5 // pred_check
      _
    $region10: #{se_bottleneck_forward.9} parent=5 // pred_check_branch
      %160 = sbr.rel (%p157) target = $region12
    $region11: #{se_bottleneck_forward.9} parent=5 // pred_region
      %s161 = ssub.s32 %s11, 1
      // Predicated region
      $region13: #{se_bottleneck_forward.9} parent=11 // pred_check
        %p162 = pneg %p72
      $region14: #{se_bottleneck_forward.9} parent=11 // pred_check_branch
        %164 = sbr.rel (%p162) target = $region16
      $region15: #{se_bottleneck_forward.9} parent=11 // pred_region
        _
      $region16: #{se_bottleneck_forward.9} parent=11 // pred_fallthru
        _
      // Predicated region
      $region17: #{se_bottleneck_forward.9} parent=11 // pred_check
        %p165 = pneg %p93
      $region18: #{se_bottleneck_forward.9} parent=11 // pred_check_branch
        %167 = sbr.rel (%p165) target = $region20
      $region19: #{se_bottleneck_forward.9} parent=11 // pred_region
        _
      $region20: #{se_bottleneck_forward.9} parent=11 // pred_fallthru
        _
    $region12: #{se_bottleneck_forward.9} parent=5 // pred_fallthru
      _
    %p168 = scmp.lt.s32.totalorder %s11, 2
    // Predicated region
    $region21: #{se_bottleneck_forward.9} parent=5 // pred_check
      %p169 = pneg %p168
    $region22: #{se_bottleneck_forward.9} parent=5 // pred_check_branch
      %171 = sbr.rel (%p169) target = $region24
    $region23: #{se_bottleneck_forward.9} parent=5 // pred_region
      // Predicated region
      $region25: #{se_bottleneck_forward.9} parent=23 // pred_check
        %p172 = pneg %p45
      $region26: #{se_bottleneck_forward.9} parent=23 // pred_check_branch
        %174 = sbr.rel (%p172) target = $region28
      $region27: #{se_bottleneck_forward.9} parent=23 // pred_region
        %s175 = smul.u32 8, %s19
        %p176 = scmp.lt.s32.totalorder %s18, 1
        %s177 = scalar_select %p176, %s18, 1
        %p178 = scmp.lt.s32.totalorder %s175, 7
        %s179 = scalar_select %p178, %s175, 7
        %s180 = smul.addr %s177, 8
        %s181 = sadd.s32 %s179, %s180
        %s182 = smul.addr %s181, 4
        %s183 = scalar_lea.vmem %s0, %s182
        %s184 = smul.u32 8, %s19
      $region28: #{se_bottleneck_forward.9} parent=23 // pred_fallthru
        _
    $region24: #{se_bottleneck_forward.9} parent=5 // pred_fallthru
      _
    %p185 = scmp.le.s32.totalorder 1, %s11
    %p186 = scmp.lt.s32.totalorder %s11, 3
    %p187 = pnand %p185, %p186
    %p188 = pneg %p187
    // Predicated region
    $region29: #{se_bottleneck_forward.9} parent=5 // pred_check
      _
    $region30: #{se_bottleneck_forward.9} parent=5 // pred_check_branch
      %190 = sbr.rel (%p187) target = $region32
    $region31: #{se_bottleneck_forward.9} parent=5 // pred_region
      %s191 = ssub.s32 %s11, 1
      %s192 = smul.u32 8, %s21
      %p193 = scmp.lt.s32.totalorder %s20, 1
      %s194 = scalar_select %p193, %s20, 1
      %p195 = scmp.lt.s32.totalorder %s192, 7
      %s196 = scalar_select %p195, %s192, 7
      %s197 = smul.addr %s194, 8
      %s198 = sadd.s32 %s196, %s197
      %s199 = smul.addr %s198, 4
      %s200 = scalar_lea.vmem %s0, %s199
      %p201 = pneg %p51
      %p202 = pneg %p48
      %p203 = pneg %p72
      %p204 = pneg %p69
      %p205 = pneg %p93
      %p206 = pneg %p90
      %p207 = pneg %p121
      %p208 = pneg %p118
      %s209 = smul.u32 8, %s21
      %p210 = scmp.lt.s32.totalorder %s20, 1
      %s211 = scalar_select %p210, %s20, 1
      %p212 = scmp.lt.s32.totalorder %s209, 7
      %s213 = scalar_select %p212, %s209, 7
      %s214 = smul.addr %s211, 8
      %s215 = sadd.s32 %s213, %s214
      %s216 = smul.addr %s215, 4
      %s217 = scalar_lea.vmem %s3, %s216
      %p218 = pneg %p147
      %p219 = pneg %p144
      %p220 = scmp.lt.s32.totalorder %s20, 1
      %s221 = scalar_select %p220, %s20, 1
      %s222 = scalar_lea.vmem %s4, %s221
      %s223 = smul.u32 8, %s21
      %p224 = scmp.lt.s32.totalorder %s20, 1
      %s225 = scalar_select %p224, %s20, 1
      %p226 = scmp.lt.s32.totalorder %s223, 7
      %s227 = scalar_select %p226, %s223, 7
      %s228 = smul.addr %s225, 8
      %s229 = sadd.s32 %s227, %s228
      %s230 = smul.addr %s229, 4
      %s231 = scalar_lea.vmem %s0, %s230
      %s232 = smul.u32 8, %s21
      %s233 = smul.u32 8, %s21
      %p234 = scmp.lt.s32.totalorder %s20, 1
      %s235 = scalar_select %p234, %s20, 1
      %p236 = scmp.lt.s32.totalorder %s233, 7
      %s237 = scalar_select %p236, %s233, 7
      %s238 = smul.addr %s235, 8
      %s239 = sadd.s32 %s237, %s238
      %s240 = smul.addr %s239, 4
      %s241 = scalar_lea.vmem %s3, %s240
      %s242 = smul.u32 8, %s21
      %p243 = scmp.lt.s32.totalorder %s20, 1
      %s244 = scalar_select %p243, %s20, 1
      %s245 = scalar_lea.vmem %s4, %s244
      %p247 = scmp.eq.s32.totalorder %s21, 0
      // Predicated region
      $region33: #{se_bottleneck_forward.9} parent=31 // pred_check
        %p248 = pneg %p247
      $region34: #{se_bottleneck_forward.9} parent=31 // pred_check_branch
        %250 = sbr.rel (%p248) target = $region36
      $region35: #{se_bottleneck_forward.9} parent=31 // pred_region
        %vm251 = vcmask 253952
        %252 = vst.msk [vmem:[%s245] sm:$0x1] %vm251, 0.0
      $region36: #{se_bottleneck_forward.9} parent=31 // pred_fallthru
        _
      %v253 = vld [vmem:[%s231] sm:$0xf]
      %v254 = vld [vmem:[%s231 + $0x4] sm:$0xf]
      %v255 = vld [vmem:[%s231 + $0x8] sm:$0xf]
      %v256 = vld [vmem:[%s231 + $0xc] sm:$0xf]
      %v257 = vld [vmem:[%s231 + $0x10] sm:$0xf]
      %v258 = vld [vmem:[%s231 + $0x14] sm:$0xf]
      %v259 = vld [vmem:[%s231 + $0x18] sm:$0xf]
      %v260 = vld [vmem:[%s231 + $0x1c] sm:$0xf]
      %v261 = vld [vmem:[%s1] sm:$0xf]
      %v262 = vld [vmem:[%s2] sm:$0x1]
      %v264 = vlaneseq
      %v265 = vshrl.u32 %v264, 7
      %v266 = vsub.s32 0, %v265
      %v267 = vrot.slane %v262, %v266
      %v277 = vunpack.c.l.b16 %v253
      %v278 = vunpack.c.l.b16 %v254
      %v279 = vunpack.c.l.b16 %v255
      %v280 = vunpack.c.l.b16 %v256
      %v281 = vunpack.c.l.b16 %v257
      %v282 = vunpack.c.l.b16 %v258
      %v283 = vunpack.c.l.b16 %v259
      %v284 = vunpack.c.l.b16 %v260
      %v285 = vpack.c.b16 %v278, %v277
      %v286 = vpack.c.b16 %v280, %v279
      %v287 = vpack.c.b16 %v282, %v281
      %v288 = vpack.c.b16 %v284, %v283
      %vm289 = vcmask 64512
      %v291 = vsel %vm289, %v285, 0
      %v294 = vsel %vm289, %v286, 0
      %v297 = vsel %vm289, %v287, 0
      %v300 = vsel %vm289, %v288, 0
      %vm302 = vcmask 1043456
      %v304 = vsel %vm302, %v261, 0
      %306 = vmatprep.subr.bf16.mxu0 0
      %307 = vmatpush1.bf16.msra.mxu0 0
      %308 = vmatprep.subr.bf16.mxu0 0
      %309 = vmatpush1.bf16.msra.mxu0 0
      %310 = vmatprep.subr.bf16.mxu0 0
      %311 = vmatpush1.bf16.msra.mxu0 0
      %312 = vmatprep.subr.bf16.mxu0 0
      %313 = vmatpush1.bf16.msra.mxu0 0
      %314 = vmatprep.subr.bf16.mxu0 0
      %315 = vmatpush1.bf16.msra.mxu0 0
      %316 = vmatprep.subr.bf16.mxu0 0
      %317 = vmatpush1.bf16.msra.mxu0 0
      %318 = vmatprep.subr.bf16.mxu0 0
      %319 = vmatpush1.bf16.msra.mxu0 0
      %320 = vmatprep.subr.bf16.mxu0 0
      %321 = vmatpush1.bf16.msra.mxu0 %v304
      %322 = vmatprep.subr.bf16.mxu0 0
      %323 = vmatpush2.bf16.msra.mxu0 0
      %324 = vmatprep.subr.bf16.mxu0 0
      %325 = vmatpush2.bf16.msra.mxu0 0
      %326 = vmatprep.subr.bf16.mxu0 0
      %327 = vmatpush2.bf16.msra.mxu0 0
      %328 = vmatprep.subr.bf16.mxu0 0
      %329 = vmatpush2.bf16.msra.mxu0 0
      %330 = vmatprep.subr.bf16.mxu0 0
      %331 = vmatpush2.bf16.msra.mxu0 0
      %332 = vmatprep.subr.bf16.mxu0 0
      %333 = vmatpush2.bf16.msra.mxu0 0
      %334 = vmatprep.subr.bf16.mxu0 0
      %335 = vmatpush2.bf16.msra.mxu0 0
      %336 = vmatprep.subr.bf16.mxu0 0
      %337 = vmatpush2.bf16.msra.mxu0 0
      %338 = vmatprep.mubr.bf16.mxu0 0
      %339 = vmatmul.mubr.bf16.gmra.mxu0 %v291
      %v340 = vpop.f32.mrf.mxu0
      %v341 = vadd.f32 %v267, %v340
      %v342 = vpop.f32.mrf.mxu0
      %v343 = vpop.f32.mrf.mxu0
      %v344 = vadd.f32 %v267, %v343
      %v345 = vpop.f32.mrf.mxu0
      %346 = vmatprep.mubr.bf16.mxu0 0
      %347 = vmatmul.mubr.bf16.gmra.mxu0 %v294
      %v348 = vpop.f32.mrf.mxu0
      %v349 = vadd.f32 %v267, %v348
      %v350 = vpop.f32.mrf.mxu0
      %v351 = vpop.f32.mrf.mxu0
      %v352 = vadd.f32 %v267, %v351
      %v353 = vpop.f32.mrf.mxu0
      %354 = vmatprep.mubr.bf16.mxu0 0
      %355 = vmatmul.mubr.bf16.gmra.mxu0 %v297
      %v356 = vpop.f32.mrf.mxu0
      %v357 = vadd.f32 %v267, %v356
      %v358 = vpop.f32.mrf.mxu0
      %v359 = vpop.f32.mrf.mxu0
      %v360 = vadd.f32 %v267, %v359
      %v361 = vpop.f32.mrf.mxu0
      %362 = vmatprep.mubr.bf16.mxu0 0
      %363 = vmatmul.mubr.bf16.gmra.mxu0 %v300
      %v364 = vpop.f32.mrf.mxu0
      %v365 = vadd.f32 %v267, %v364
      %v366 = vpop.f32.mrf.mxu0
      %v367 = vpop.f32.mrf.mxu0
      %v368 = vadd.f32 %v267, %v367
      %v369 = vpop.f32.mrf.mxu0
      %370 = vdwg.mxu0
      %v371 = vpack.c.bf16 %v344, %v341
      %v372 = vpack.c.bf16 %v352, %v349
      %v373 = vpack.c.bf16 %v360, %v357
      %v374 = vpack.c.bf16 %v368, %v365
      %v379 = vunpack.c.l.b16 %v371
      %v380 = vunpack.c.h.b16 %v371
      %v381 = vunpack.c.l.b16 %v372
      %v382 = vunpack.c.h.b16 %v372
      %v383 = vunpack.c.l.b16 %v373
      %v384 = vunpack.c.h.b16 %v373
      %v385 = vunpack.c.l.b16 %v374
      %v386 = vunpack.c.h.b16 %v374
      %v387 = vpack.c.b16 %v379, %v379
      %v388 = vpack.c.b16 %v380, %v380
      %v389 = vpack.c.b16 %v381, %v381
      %v390 = vpack.c.b16 %v382, %v382
      %v391 = vpack.c.b16 %v383, %v383
      %v392 = vpack.c.b16 %v384, %v384
      %v393 = vpack.c.b16 %v385, %v385
      %v394 = vpack.c.b16 %v386, %v386
      %vm403 = vcmask 257024
      %404 = vst.msk [vmem:[%s241] sm:$0xf] %vm403, %v387
      %405 = vst.msk [vmem:[%s241 + $0x4] sm:$0xf] %vm403, %v388
      %406 = vst.msk [vmem:[%s241 + $0x8] sm:$0xf] %vm403, %v389
      %407 = vst.msk [vmem:[%s241 + $0xc] sm:$0xf] %vm403, %v390
      %408 = vst.msk [vmem:[%s241 + $0x10] sm:$0xf] %vm403, %v391
      %409 = vst.msk [vmem:[%s241 + $0x14] sm:$0xf] %vm403, %v392
      %410 = vst.msk [vmem:[%s241 + $0x18] sm:$0xf] %vm403, %v393
      %411 = vst.msk [vmem:[%s241 + $0x1c] sm:$0xf] %vm403, %v394
      %v412 = vld [vmem:[%s245] sm:$0x1]
      %vm413 = vcmask 261120
      %v414 = vsel %vm413, %v341, 0.0
      %v415 = vsel %vm413, %v344, 0.0
      %v416 = vadd.f32 %v414, %v415
      %v417 = vsel %vm413, %v349, 0.0
      %v418 = vadd.f32 %v416, %v417
      %v419 = vsel %vm413, %v352, 0.0
      %v420 = vadd.f32 %v418, %v419
      %v421 = vsel %vm413, %v357, 0.0
      %v422 = vadd.f32 %v420, %v421
      %v423 = vsel %vm413, %v360, 0.0
      %v424 = vadd.f32 %v422, %v423
      %v425 = vsel %vm413, %v365, 0.0
      %v426 = vadd.f32 %v424, %v425
      %v427 = vsel %vm413, %v368, 0.0
      %v428 = vadd.f32 %v426, %v427
      %v429 = vrot.slane %v428, 4
      %v430 = vadd.f32 %v428, %v429
      %v431 = vrot.slane %v430, 2
      %v432 = vadd.f32 %v430, %v431
      %v433 = vrot.slane %v432, 1
      %v434 = vadd.f32 %v432, %v433
      %v435 = vadd.f32 %v412, %v434
      %vm436 = vcmask 253952
      %437 = vst.msk [vmem:[%s245] sm:$0x1] %vm436, %v435
      %s438 = smul.u32 8, %s21
      %p439 = scmp.lt.s32.totalorder %s20, 1
      %s440 = scalar_select %p439, %s20, 1
      %p441 = scmp.lt.s32.totalorder %s438, 7
      %s442 = scalar_select %p441, %s438, 7
      %s443 = smul.addr %s440, 8
      %s444 = sadd.s32 %s442, %s443
      %s445 = smul.addr %s444, 4
      %s446 = scalar_lea.vmem %s3, %s445
      %p447 = scmp.lt.s32.totalorder %s20, 1
      %s448 = scalar_select %p447, %s20, 1
      %s449 = scalar_lea.vmem %s4, %s448
      // Predicated region
      $region37: #{se_bottleneck_forward.9} parent=31 // pred_check
        %p450 = pneg %p118
      $region38: #{se_bottleneck_forward.9} parent=31 // pred_check_branch
        %452 = sbr.rel (%p450) target = $region40
      $region39: #{se_bottleneck_forward.9} parent=31 // pred_region
        %s453 = smul.u32 8, %s21
      $region40: #{se_bottleneck_forward.9} parent=31 // pred_fallthru
        _
      // Predicated region
      $region41: #{se_bottleneck_forward.9} parent=31 // pred_check
        %p454 = pneg %p144
      $region42: #{se_bottleneck_forward.9} parent=31 // pred_check_branch
        %456 = sbr.rel (%p454) target = $region44
      $region43: #{se_bottleneck_forward.9} parent=31 // pred_region
        _
      $region44: #{se_bottleneck_forward.9} parent=31 // pred_fallthru
        _
    $region32: #{se_bottleneck_forward.9} parent=5 // pred_fallthru
      _
    %p457 = scmp.le.s32.totalorder 2, %s11
    // Predicated region
    $region45: #{se_bottleneck_forward.9} parent=5 // pred_check
      %p458 = pneg %p457
    $region46: #{se_bottleneck_forward.9} parent=5 // pred_check_branch
      %460 = sbr.rel (%p458) target = $region48
    $region47: #{se_bottleneck_forward.9} parent=5 // pred_region
      %s461 = ssub.s32 %s11, 2
      // Predicated region
      $region49: #{se_bottleneck_forward.9} parent=47 // pred_check
        %p462 = pneg %p124
      $region50: #{se_bottleneck_forward.9} parent=47 // pred_check_branch
        %464 = sbr.rel (%p462) target = $region52
      $region51: #{se_bottleneck_forward.9} parent=47 // pred_region
        %s465 = smul.u32 8, %s23
        %p466 = scmp.lt.s32.totalorder %s22, 1
        %s467 = scalar_select %p466, %s22, 1
        %p468 = scmp.lt.s32.totalorder %s465, 7
        %s469 = scalar_select %p468, %s465, 7
        %s470 = smul.addr %s467, 8
        %s471 = sadd.s32 %s469, %s470
        %s472 = smul.addr %s471, 4
        %s473 = scalar_lea.vmem %s3, %s472
      $region52: #{se_bottleneck_forward.9} parent=47 // pred_fallthru
        _
      // Predicated region
      $region53: #{se_bottleneck_forward.9} parent=47 // pred_check
        %p474 = pneg %p150
      $region54: #{se_bottleneck_forward.9} parent=47 // pred_check_branch
        %476 = sbr.rel (%p474) target = $region56
      $region55: #{se_bottleneck_forward.9} parent=47 // pred_region
        %p477 = scmp.lt.s32.totalorder %s22, 1
        %s478 = scalar_select %p477, %s22, 1
        %s479 = scalar_lea.vmem %s4, %s478
      $region56: #{se_bottleneck_forward.9} parent=47 // pred_fallthru
        _
    $region48: #{se_bottleneck_forward.9} parent=5 // pred_fallthru
      _
  $region6: #{se_bottleneck_forward.9} parent=0 // loop_footer
    %s15 = sadd.s32 1, %s11
  $region7: #{se_bottleneck_forward.9} parent=0 // loop_footer_branch
    %10 = sbr.rel target = $region3
  $region8: #{se_bottleneck_forward.9} parent=0 // loop_exit
    _

// kernel: se_bottleneck_forward.8
$region0: #{se_bottleneck_forward.8}
  #allocation0 [shape = 'u32[]', space=smem, size = 0x4, offset = 0x4, fixed_abs, tag = 'smem constant byte address 0x4 - core index']
  #allocation1 [shape = 'u32[144,128]{1,0:T(1,128)}', space=vmem, size = 0x12000, scoped, tag = 'internal scratch']
  %s0 = inlined_call_operand.vmem [shape: bf16[2,4,9,9,8], index: 0, kind: input, shape index: {}]
  %s1 = inlined_call_operand.vmem [shape: bf16[9,8,8], index: 1, kind: input, shape index: {}]
  %s2 = inlined_call_operand.vmem [shape: f32[1,8], index: 2, kind: input, shape index: {}]
  %s3 = inlined_call_operand.vmem [shape: bf16[2,64,8], index: 3, kind: output, shape index: {}]
  %s4 = sld [smem:[#allocation0]]
  $region45: #{se_bottleneck_forward.8} parent=0
    _
  %s6 = ssub.s32 1, %s4
  %s7 = scalar_select 0, %s6, %s4
  loop: start=0, step=1, limit=4
  $region2: #{se_bottleneck_forward.8} parent=0 // loop_pre_header
    _
  $region3: #{se_bottleneck_forward.8} parent=0 // loop_header
    %s9 = sphi 0, %s13
    %p10 = scmp.ge.s32.totalorder %s9, 4
    %s16 = sphi 0, %s28
    %s17 = sphi 0, %s24
    %s18 = sphi 0, %s16
    %s19 = sphi 0, %s17
    %s20 = sphi 0, %s18
    %s21 = sphi 0, %s19
    %s31 = sphi 0, %s33
    %s34 = sphi 0, %s31
    %s35 = sphi 0, %s34
    %s51 = sphi 0, %s35
    %s55 = sphi 0, %s55
    %s57 = sphi 0, %s55
    %s58 = sphi 0, %s57
    %s72 = sphi 0, %s58
    %s76 = sphi 0, %s76
    %s78 = sphi 0, %s76
    %s79 = sphi 0, %s78
    %s93 = sphi 0, %s79
    %s101 = sphi 0, %s103
    %s104 = sphi 0, %s101
    %s105 = sphi 0, %s104
    %s121 = sphi 0, %s105
  $region4: #{se_bottleneck_forward.8} parent=0 // loop_header_branch
    %12 = sbr.rel (%p10) target = $region8
  $region5: #{se_bottleneck_forward.8} parent=0 // loop_body
    %s14 = ssub.s32 %s9, 1
    %s15 = ssub.s32 %s9, 2
    %s22 = sadd.s32 1, %s17
    %p23 = scmp.ge.s32.totalorder %s22, 1
    %s24 = scalar_select %p23, 0, %s22
    %s25 = sadd.s32 1, %s16
    %s26 = scalar_select %p23, %s25, %s16
    %p27 = scmp.ge.s32.totalorder %s26, 2
    %s28 = scalar_select %p27, 0, %s26
    %s29 = ssub.s32 %s16, %s28
    %p30 = scmp.eq.s32.totalorder %s29, 0
    %s32 = sadd.s32 %s31, 1
    %s33 = scalar_select %p30, %s31, %s32
    %p36 = pneg %p30
    %p37 = scmp.eq.s32.totalorder %s9, 1
    %p38 = por %p36, %p37
    %p39 = scmp.ne.s32.totalorder %s31, %s34
    %p40 = scmp.eq.s32.totalorder %s9, 0
    %p41 = por %p39, %p40
    %p42 = scmp.ne.s32.totalorder %s31, %s34
    %p43 = scmp.eq.s32.totalorder %s14, 1
    %p44 = por %p42, %p43
    %p45 = scmp.ne.s32.totalorder %s34, %s35
    %p46 = scmp.eq.s32.totalorder %s14, 0
    %p47 = por %p45, %p46
    %p48 = scmp.ne.s32.totalorder %s34, %s35
    %p49 = scmp.eq.s32.totalorder %s15, 1
    %p50 = por %p48, %p49
    %p52 = scmp.ne.s32.totalorder %s35, %s51
    %p53 = scmp.eq.s32.totalorder %s15, 0
    %p54 = por %p52, %p53
    %s56 = sadd.s32 %s55, 1
    %p59 = scmp.eq.s32.totalorder %s9, 1
    %p60 = scmp.ne.s32.totalorder %s55, %s57
    %p61 = scmp.eq.s32.totalorder %s9, 0
    %p62 = por %p60, %p61
    %p63 = scmp.ne.s32.totalorder %s55, %s57
    %p64 = scmp.eq.s32.totalorder %s14, 1
    %p65 = por %p63, %p64
    %p66 = scmp.ne.s32.totalorder %s57, %s58
    %p67 = scmp.eq.s32.totalorder %s14, 0
    %p68 = por %p66, %p67
    %p69 = scmp.ne.s32.totalorder %s57, %s58
    %p70 = scmp.eq.s32.totalorder %s15, 1
    %p71 = por %p69, %p70
    %p73 = scmp.ne.s32.totalorder %s58, %s72
    %p74 = scmp.eq.s32.totalorder %s15, 0
    %p75 = por %p73, %p74
    %s77 = sadd.s32 %s76, 1
    %p80 = scmp.eq.s32.totalorder %s9, 1
    %p81 = scmp.ne.s32.totalorder %s76, %s78
    %p82 = scmp.eq.s32.totalorder %s9, 0
    %p83 = por %p81, %p82
    %p84 = scmp.ne.s32.totalorder %s76, %s78
    %p85 = scmp.eq.s32.totalorder %s14, 1
    %p86 = por %p84, %p85
    %p87 = scmp.ne.s32.totalorder %s78, %s79
    %p88 = scmp.eq.s32.totalorder %s14, 0
    %p89 = por %p87, %p88
    %p90 = scmp.ne.s32.totalorder %s78, %s79
    %p91 = scmp.eq.s32.totalorder %s15, 1
    %p92 = por %p90, %p91
    %p94 = scmp.ne.s32.totalorder %s79, %s93
    %p95 = scmp.eq.s32.totalorder %s15, 0
    %p96 = por %p94, %p95
    %s97 = ssub.s32 %s16, %s28
    %s98 = ssub.s32 %s17, %s24
    %s99 = sor.u32 %s97, %s98
    %p100 = scmp.eq.s32.totalorder %s99, 0
    %s102 = sadd.s32 %s101, 1
    %s103 = scalar_select %p100, %s101, %s102
    %p106 = pneg %p100
    %p107 = scmp.eq.s32.totalorder %s9, 1
    %p108 = por %p106, %p107
    %p109 = scmp.ne.s32.totalorder %s101, %s104
    %p110 = scmp.eq.s32.totalorder %s9, 0
    %p111 = por %p109, %p110
    %p112 = scmp.ne.s32.totalorder %s101, %s104
    %p113 = scmp.eq.s32.totalorder %s14, 1
    %p114 = por %p112, %p113
    %p115 = scmp.ne.s32.totalorder %s104, %s105
    %p116 = scmp.eq.s32.totalorder %s14, 0
    %p117 = por %p115, %p116
    %p118 = scmp.ne.s32.totalorder %s104, %s105
    %p119 = scmp.eq.s32.totalorder %s15, 1
    %p120 = por %p118, %p119
    %p122 = scmp.ne.s32.totalorder %s105, %s121
    %p123 = scmp.eq.s32.totalorder %s15, 0
    %p124 = por %p122, %p123
    %p125 = scmp.le.s32.totalorder 1, %s9
    %p126 = scmp.lt.s32.totalorder %s9, 3
    %p127 = pnand %p125, %p126
    %p128 = pneg %p127
    // Predicated region
    $region9: #{se_bottleneck_forward.8} parent=5 // pred_check
      _
    $region10: #{se_bottleneck_forward.8} parent=5 // pred_check_branch
      %130 = sbr.rel (%p127) target = $region12
    $region11: #{se_bottleneck_forward.8} parent=5 // pred_region
      %s131 = ssub.s32 %s9, 1
      // Predicated region
      $region13: #{se_bottleneck_forward.8} parent=11 // pred_check
        %p132 = pneg %p68
      $region14: #{se_bottleneck_forward.8} parent=11 // pred_check_branch
        %134 = sbr.rel (%p132) target = $region16
      $region15: #{se_bottleneck_forward.8} parent=11 // pred_region
        _
      $region16: #{se_bottleneck_forward.8} parent=11 // pred_fallthru
        _
      // Predicated region
      $region17: #{se_bottleneck_forward.8} parent=11 // pred_check
        %p135 = pneg %p89
      $region18: #{se_bottleneck_forward.8} parent=11 // pred_check_branch
        %137 = sbr.rel (%p135) target = $region20
      $region19: #{se_bottleneck_forward.8} parent=11 // pred_region
        _
      $region20: #{se_bottleneck_forward.8} parent=11 // pred_fallthru
        _
    $region12: #{se_bottleneck_forward.8} parent=5 // pred_fallthru
      _
    %p138 = scmp.lt.s32.totalorder %s9, 2
    // Predicated region
    $region21: #{se_bottleneck_forward.8} parent=5 // pred_check
      %p139 = pneg %p138
    $region22: #{se_bottleneck_forward.8} parent=5 // pred_check_branch
      %141 = sbr.rel (%p139) target = $region24
    $region23: #{se_bottleneck_forward.8} parent=5 // pred_region
      // Predicated region
      $region25: #{se_bottleneck_forward.8} parent=23 // pred_check
        %p142 = pneg %p41
      $region26: #{se_bottleneck_forward.8} parent=23 // pred_check_branch
        %144 = sbr.rel (%p142) target = $region28
      $region27: #{se_bottleneck_forward.8} parent=23 // pred_region
        %p145 = scmp.lt.s32.totalorder %s16, 1
        %s146 = scalar_select %p145, %s16, 1
        %s147 = smul.addr %s146, 72
        %s148 = smul.addr %s147, 4
        %s149 = scalar_lea.vmem %s0, %s148
      $region28: #{se_bottleneck_forward.8} parent=23 // pred_fallthru
        _
    $region24: #{se_bottleneck_forward.8} parent=5 // pred_fallthru
      _
    %p150 = scmp.le.s32.totalorder 1, %s9
    %p151 = scmp.lt.s32.totalorder %s9, 3
    %p152 = pnand %p150, %p151
    %p153 = pneg %p152
    // Predicated region
    $region29: #{se_bottleneck_forward.8} parent=5 // pred_check
      _
    $region30: #{se_bottleneck_forward.8} parent=5 // pred_check_branch
      %155 = sbr.rel (%p152) target = $region32
    $region31: #{se_bottleneck_forward.8} parent=5 // pred_region
      %s156 = ssub.s32 %s9, 1
      %p157 = scmp.lt.s32.totalorder %s18, 1
      %s158 = scalar_select %p157, %s18, 1
      %s159 = smul.addr %s158, 72
      %s160 = smul.addr %s159, 4
      %s161 = scalar_lea.vmem %s0, %s160
      %p162 = pneg %p47
      %p163 = pneg %p44
      %p164 = pneg %p68
      %p165 = pneg %p65
      %p166 = pneg %p89
      %p167 = pneg %p86
      %p168 = pneg %p117
      %p169 = pneg %p114
      %s170 = smul.u32 8, %s19
      %p171 = scmp.lt.s32.totalorder %s18, 1
      %s172 = scalar_select %p171, %s18, 1
      %p173 = scmp.lt.s32.totalorder %s170, 7
      %s174 = scalar_select %p173, %s170, 7
      %s175 = smul.addr %s172, 8
      %s176 = sadd.s32 %s174, %s175
      %s177 = smul.addr %s176, 4
      %s178 = scalar_lea.vmem %s3, %s177
      %p179 = scmp.lt.s32.totalorder %s18, 1
      %s180 = scalar_select %p179, %s18, 1
      %s181 = smul.addr %s180, 72
      %s182 = smul.addr %s181, 4
      %s183 = scalar_lea.vmem %s0, %s182
      %s184 = smul.u32 8, %s19
      %p185 = scmp.lt.s32.totalorder %s18, 1
      %s186 = scalar_select %p185, %s18, 1
      %p187 = scmp.lt.s32.totalorder %s184, 7
      %s188 = scalar_select %p187, %s184, 7
      %s189 = smul.addr %s186, 8
      %s190 = sadd.s32 %s188, %s189
      %s191 = smul.addr %s190, 4
      %s192 = scalar_lea.vmem %s3, %s191
      %s193 = smul.u32 8, %s19
      %s195 = smul.u32 %s19, 8
      %s196 = smul.u32 %s195, 2
      %s197 = smul.addr %s196, 4
      %s198 = scalar_lea.vmem %s183, %s197
      %v199 = vld [vmem:[%s198] sm:$0xf]
      %v200 = vld [vmem:[%s198 + $0x8] sm:$0xf]
      %v201 = vld [vmem:[%s198 + $0x10] sm:$0xf]
      %v202 = vld [vmem:[%s198 + $0x18] sm:$0xf]
      %v203 = vld [vmem:[%s198 + $0x20] sm:$0xf]
      %v204 = vld [vmem:[%s198 + $0x28] sm:$0xf]
      %v205 = vld [vmem:[%s198 + $0x30] sm:$0xf]
      %v206 = vld [vmem:[%s198 + $0x38] sm:$0xf]
      %v207 = vld [vmem:[%s1] sm:$0xf]
      %s208 = sadd.s32 %s196, 18
      %s209 = smul.addr %s208, 4
      %s210 = scalar_lea.vmem %s183, %s209
      %v211 = vld [vmem:[%s210] sm:$0xf]
      %v212 = vld [vmem:[%s210 + $0x8] sm:$0xf]
      %v213 = vld [vmem:[%s210 + $0x10] sm:$0xf]
      %v214 = vld [vmem:[%s210 + $0x18] sm:$0xf]
      %v215 = vld [vmem:[%s210 + $0x20] sm:$0xf]
      %v216 = vld [vmem:[%s210 + $0x28] sm:$0xf]
      %v217 = vld [vmem:[%s210 + $0x30] sm:$0xf]
      %v218 = vld [vmem:[%s210 + $0x38] sm:$0xf]
      %s219 = scalar_lea.vmem %s1, 4
      %v220 = vld [vmem:[%s219] sm:$0xf]
      %v229 = vunpack.c.l.b16 %v211
      %v230 = vunpack.c.l.b16 %v212
      %v231 = vunpack.c.l.b16 %v213
      %v232 = vunpack.c.l.b16 %v214
      %v233 = vunpack.c.l.b16 %v215
      %v234 = vunpack.c.l.b16 %v216
      %v235 = vunpack.c.l.b16 %v217
      %v236 = vunpack.c.l.b16 %v218
      %v237 = vpack.c.b16 %v230, %v229
      %v238 = vpack.c.b16 %v232, %v231
      %v239 = vpack.c.b16 %v234, %v233
      %v240 = vpack.c.b16 %v236, %v235
      %vm241 = vcmask 64512
      %v243 = vsel %vm241, %v237, 0
      %v246 = vsel %vm241, %v238, 0
      %v249 = vsel %vm241, %v239, 0
      %v252 = vsel %vm241, %v240, 0
      %vm254 = vcmask 1043456
      %v256 = vsel %vm254, %v220, 0
      %258 = vmatprep.subr.bf16.mxu0 0
      %259 = vmatpush1.bf16.msra.mxu0 0
      %260 = vmatprep.subr.bf16.mxu0 0
      %261 = vmatpush1.bf16.msra.mxu0 0
      %262 = vmatprep.subr.bf16.mxu0 0
      %263 = vmatpush1.bf16.msra.mxu0 0
      %264 = vmatprep.subr.bf16.mxu0 0
      %265 = vmatpush1.bf16.msra.mxu0 0
      %266 = vmatprep.subr.bf16.mxu0 0
      %267 = vmatpush1.bf16.msra.mxu0 0
      %268 = vmatprep.subr.bf16.mxu0 0
      %269 = vmatpush1.bf16.msra.mxu0 0
      %270 = vmatprep.subr.bf16.mxu0 0
      %271 = vmatpush1.bf16.msra.mxu0 0
      %272 = vmatprep.subr.bf16.mxu0 0
      %273 = vmatpush1.bf16.msra.mxu0 %v256
      %274 = vmatprep.subr.bf16.mxu0 0
      %275 = vmatpush2.bf16.msra.mxu0 0
      %276 = vmatprep.subr.bf16.mxu0 0
      %277 = vmatpush2.bf16.msra.mxu0 0
      %278 = vmatprep.subr.bf16.mxu0 0
      %279 = vmatpush2.bf16.msra.mxu0 0
      %280 = vmatprep.subr.bf16.mxu0 0
      %281 = vmatpush2.bf16.msra.mxu0 0
      %282 = vmatprep.subr.bf16.mxu0 0
      %283 = vmatpush2.bf16.msra.mxu0 0
      %284 = vmatprep.subr.bf16.mxu0 0
      %285 = vmatpush2.bf16.msra.mxu0 0
      %286 = vmatprep.subr.bf16.mxu0 0
      %287 = vmatpush2.bf16.msra.mxu0 0
      %288 = vmatprep.subr.bf16.mxu0 0
      %289 = vmatpush2.bf16.msra.mxu0 0
      %290 = vmatprep.mubr.bf16.mxu0 0
      %291 = vmatmul.mubr.bf16.gmra.mxu0 %v243
      %v292 = vpop.f32.mrf.mxu0
      %v293 = vadd.f32 0.0, %v292
      %v294 = vpop.f32.mrf.mxu0
      %v295 = vpop.f32.mrf.mxu0
      %v296 = vadd.f32 0.0, %v295
      %v297 = vpop.f32.mrf.mxu0
      %298 = vmatprep.mubr.bf16.mxu0 0
      %299 = vmatmul.mubr.bf16.gmra.mxu0 %v246
      %v300 = vpop.f32.mrf.mxu0
      %v301 = vadd.f32 0.0, %v300
      %v302 = vpop.f32.mrf.mxu0
      %v303 = vpop.f32.mrf.mxu0
      %v304 = vadd.f32 0.0, %v303
      %v305 = vpop.f32.mrf.mxu0
      %306 = vmatprep.mubr.bf16.mxu0 0
      %307 = vmatmul.mubr.bf16.gmra.mxu0 %v249
      %v308 = vpop.f32.mrf.mxu0
      %v309 = vadd.f32 0.0, %v308
      %v310 = vpop.f32.mrf.mxu0
      %v311 = vpop.f32.mrf.mxu0
      %v312 = vadd.f32 0.0, %v311
      %v313 = vpop.f32.mrf.mxu0
      %314 = vmatprep.mubr.bf16.mxu0 0
      %315 = vmatmul.mubr.bf16.gmra.mxu0 %v252
      %v316 = vpop.f32.mrf.mxu0
      %v317 = vadd.f32 0.0, %v316
      %v318 = vpop.f32.mrf.mxu0
      %v319 = vpop.f32.mrf.mxu0
      %v320 = vadd.f32 0.0, %v319
      %v321 = vpop.f32.mrf.mxu0
      %322 = vdwg.mxu0
      %v331 = vunpack.c.l.b16 %v199
      %v332 = vunpack.c.l.b16 %v200
      %v333 = vunpack.c.l.b16 %v201
      %v334 = vunpack.c.l.b16 %v202
      %v335 = vunpack.c.l.b16 %v203
      %v336 = vunpack.c.l.b16 %v204
      %v337 = vunpack.c.l.b16 %v205
      %v338 = vunpack.c.l.b16 %v206
      %v339 = vpack.c.b16 %v332, %v331
      %v340 = vpack.c.b16 %v334, %v333
      %v341 = vpack.c.b16 %v336, %v335
      %v342 = vpack.c.b16 %v338, %v337
      %v344 = vsel %vm241, %v339, 0
      %v347 = vsel %vm241, %v340, 0
      %v350 = vsel %vm241, %v341, 0
      %v353 = vsel %vm241, %v342, 0
      %v356 = vsel %vm254, %v207, 0
      %358 = vmatprep.subr.bf16.mxu0 0
      %359 = vmatpush1.bf16.msra.mxu0 0
      %360 = vmatprep.subr.bf16.mxu0 0
      %361 = vmatpush1.bf16.msra.mxu0 0
      %362 = vmatprep.subr.bf16.mxu0 0
      %363 = vmatpush1.bf16.msra.mxu0 0
      %364 = vmatprep.subr.bf16.mxu0 0
      %365 = vmatpush1.bf16.msra.mxu0 0
      %366 = vmatprep.subr.bf16.mxu0 0
      %367 = vmatpush1.bf16.msra.mxu0 0
      %368 = vmatprep.subr.bf16.mxu0 0
      %369 = vmatpush1.bf16.msra.mxu0 0
      %370 = vmatprep.subr.bf16.mxu0 0
      %371 = vmatpush1.bf16.msra.mxu0 0
      %372 = vmatprep.subr.bf16.mxu0 0
      %373 = vmatpush1.bf16.msra.mxu0 %v356
      %374 = vmatprep.subr.bf16.mxu0 0
      %375 = vmatpush2.bf16.msra.mxu0 0
      %376 = vmatprep.subr.bf16.mxu0 0
      %377 = vmatpush2.bf16.msra.mxu0 0
      %378 = vmatprep.subr.bf16.mxu0 0
      %379 = vmatpush2.bf16.msra.mxu0 0
      %380 = vmatprep.subr.bf16.mxu0 0
      %381 = vmatpush2.bf16.msra.mxu0 0
      %382 = vmatprep.subr.bf16.mxu0 0
      %383 = vmatpush2.bf16.msra.mxu0 0
      %384 = vmatprep.subr.bf16.mxu0 0
      %385 = vmatpush2.bf16.msra.mxu0 0
      %386 = vmatprep.subr.bf16.mxu0 0
      %387 = vmatpush2.bf16.msra.mxu0 0
      %388 = vmatprep.subr.bf16.mxu0 0
      %389 = vmatpush2.bf16.msra.mxu0 0
      %390 = vmatprep.mubr.bf16.mxu0 0
      %391 = vmatmul.mubr.bf16.gmra.mxu0 %v344
      %v392 = vpop.f32.mrf.mxu0
      %v393 = vadd.f32 %v293, %v392
      %v394 = vpop.f32.mrf.mxu0
      %v395 = vpop.f32.mrf.mxu0
      %v396 = vadd.f32 %v296, %v395
      %v397 = vpop.f32.mrf.mxu0
      %398 = vmatprep.mubr.bf16.mxu0 0
      %399 = vmatmul.mubr.bf16.gmra.mxu0 %v347
      %v400 = vpop.f32.mrf.mxu0
      %v401 = vadd.f32 %v301, %v400
      %v402 = vpop.f32.mrf.mxu0
      %v403 = vpop.f32.mrf.mxu0
      %v404 = vadd.f32 %v304, %v403
      %v405 = vpop.f32.mrf.mxu0
      %406 = vmatprep.mubr.bf16.mxu0 0
      %407 = vmatmul.mubr.bf16.gmra.mxu0 %v350
      %v408 = vpop.f32.mrf.mxu0
      %v409 = vadd.f32 %v309, %v408
      %v410 = vpop.f32.mrf.mxu0
      %v411 = vpop.f32.mrf.mxu0
      %v412 = vadd.f32 %v312, %v411
      %v413 = vpop.f32.mrf.mxu0
      %414 = vmatprep.mubr.bf16.mxu0 0
      %415 = vmatmul.mubr.bf16.gmra.mxu0 %v353
      %v416 = vpop.f32.mrf.mxu0
      %v417 = vadd.f32 %v317, %v416
      %v418 = vpop.f32.mrf.mxu0
      %v419 = vpop.f32.mrf.mxu0
      %v420 = vadd.f32 %v320, %v419
      %v421 = vpop.f32.mrf.mxu0
      %422 = vdwg.mxu0
      %v423 = vld [vmem:[%s198] sm:$0xf]
      %v424 = vld [vmem:[%s198 + $0x4] sm:$0x1]
      %v425 = vld [vmem:[%s198 + $0x8] sm:$0xf]
      %v426 = vld [vmem:[%s198 + $0xc] sm:$0x1]
      %v427 = vld [vmem:[%s198 + $0x10] sm:$0xf]
      %v428 = vld [vmem:[%s198 + $0x14] sm:$0x1]
      %v429 = vld [vmem:[%s198 + $0x18] sm:$0xf]
      %v430 = vld [vmem:[%s198 + $0x1c] sm:$0x1]
      %v431 = vld [vmem:[%s198 + $0x20] sm:$0xf]
      %v432 = vld [vmem:[%s198 + $0x24] sm:$0x1]
      %v433 = vld [vmem:[%s198 + $0x28] sm:$0xf]
      %v434 = vld [vmem:[%s198 + $0x2c] sm:$0x1]
      %v435 = vld [vmem:[%s198 + $0x30] sm:$0xf]
      %v436 = vld [vmem:[%s198 + $0x34] sm:$0x1]
      %v437 = vld [vmem:[%s198 + $0x38] sm:$0xf]
      %v438 = vld [vmem:[%s198 + $0x3c] sm:$0x1]
      %vm439 = vsmask.f32 3328
      %vm440 = vsmask.f32 7440
      %vm441 = vmor %vm439, %vm440
      %v443 = vshrl.u32 %v423, 16
      %v445 = vrot.slane %v443, 4
      %v446 = vshll.u32 %v423, 16
      %v448 = vrot.slane %v446, 5
      %v449 = vor.u32 %v445, %v448
      %v450 = vrot.slane %v449, 4
      %v452 = vshll.u32 %v424, 16
      %v454 = vrot.slane %v452, 5
      %v455 = vsel %vm441, %v450, %v454
      %v457 = vshrl.u32 %v425, 16
      %v459 = vrot.slane %v457, 4
      %v460 = vshll.u32 %v425, 16
      %v462 = vrot.slane %v460, 5
      %v463 = vor.u32 %v459, %v462
      %v464 = vrot.slane %v463, 4
      %v466 = vshll.u32 %v426, 16
      %v468 = vrot.slane %v466, 5
      %v469 = vsel %vm441, %v464, %v468
      %v471 = vshrl.u32 %v427, 16
      %v473 = vrot.slane %v471, 4
      %v474 = vshll.u32 %v427, 16
      %v476 = vrot.slane %v474, 5
      %v477 = vor.u32 %v473, %v476
      %v478 = vrot.slane %v477, 4
      %v480 = vshll.u32 %v428, 16
      %v482 = vrot.slane %v480, 5
      %v483 = vsel %vm441, %v478, %v482
      %v485 = vshrl.u32 %v429, 16
      %v487 = vrot.slane %v485, 4
      %v488 = vshll.u32 %v429, 16
      %v490 = vrot.slane %v488, 5
      %v491 = vor.u32 %v487, %v490
      %v492 = vrot.slane %v491, 4
      %v494 = vshll.u32 %v430, 16
      %v496 = vrot.slane %v494, 5
      %v497 = vsel %vm441, %v492, %v496
      %v499 = vshrl.u32 %v431, 16
      %v501 = vrot.slane %v499, 4
      %v502 = vshll.u32 %v431, 16
      %v504 = vrot.slane %v502, 5
      %v505 = vor.u32 %v501, %v504
      %v506 = vrot.slane %v505, 4
      %v508 = vshll.u32 %v432, 16
      %v510 = vrot.slane %v508, 5
      %v511 = vsel %vm441, %v506, %v510
      %v513 = vshrl.u32 %v433, 16
      %v515 = vrot.slane %v513, 4
      %v516 = vshll.u32 %v433, 16
      %v518 = vrot.slane %v516, 5
      %v519 = vor.u32 %v515, %v518
      %v520 = vrot.slane %v519, 4
      %v522 = vshll.u32 %v434, 16
      %v524 = vrot.slane %v522, 5
      %v525 = vsel %vm441, %v520, %v524
      %v527 = vshrl.u32 %v435, 16
      %v529 = vrot.slane %v527, 4
      %v530 = vshll.u32 %v435, 16
      %v532 = vrot.slane %v530, 5
      %v533 = vor.u32 %v529, %v532
      %v534 = vrot.slane %v533, 4
      %v536 = vshll.u32 %v436, 16
      %v538 = vrot.slane %v536, 5
      %v539 = vsel %vm441, %v534, %v538
      %v541 = vshrl.u32 %v437, 16
      %v543 = vrot.slane %v541, 4
      %v544 = vshll.u32 %v437, 16
      %v546 = vrot.slane %v544, 5
      %v547 = vor.u32 %v543, %v546
      %v548 = vrot.slane %v547, 4
      %v550 = vshll.u32 %v438, 16
      %v552 = vrot.slane %v550, 5
      %v553 = vsel %vm441, %v548, %v552
      %s554 = scalar_lea.vmem %s1, 8
      %v555 = vld [vmem:[%s554] sm:$0xf]
      %v556 = vunpack.c.l.b16 %v455
      %v557 = vunpack.c.l.b16 %v469
      %v558 = vunpack.c.l.b16 %v483
      %v559 = vunpack.c.l.b16 %v497
      %v560 = vunpack.c.l.b16 %v511
      %v561 = vunpack.c.l.b16 %v525
      %v562 = vunpack.c.l.b16 %v539
      %v563 = vunpack.c.l.b16 %v553
      %v564 = vpack.c.b16 %v557, %v556
      %v565 = vpack.c.b16 %v559, %v558
      %v566 = vpack.c.b16 %v561, %v560
      %v567 = vpack.c.b16 %v563, %v562
      %v569 = vsel %vm241, %v564, 0
      %v572 = vsel %vm241, %v565, 0
      %v575 = vsel %vm241, %v566, 0
      %v578 = vsel %vm241, %v567, 0
      %v581 = vsel %vm254, %v555, 0
      %583 = vmatprep.subr.bf16.mxu0 0
      %584 = vmatpush1.bf16.msra.mxu0 0
      %585 = vmatprep.subr.bf16.mxu0 0
      %586 = vmatpush1.bf16.msra.mxu0 0
      %587 = vmatprep.subr.bf16.mxu0 0
      %588 = vmatpush1.bf16.msra.mxu0 0
      %589 = vmatprep.subr.bf16.mxu0 0
      %590 = vmatpush1.bf16.msra.mxu0 0
      %591 = vmatprep.subr.bf16.mxu0 0
      %592 = vmatpush1.bf16.msra.mxu0 0
      %593 = vmatprep.subr.bf16.mxu0 0
      %594 = vmatpush1.bf16.msra.mxu0 0
      %595 = vmatprep.subr.bf16.mxu0 0
      %596 = vmatpush1.bf16.msra.mxu0 0
      %597 = vmatprep.subr.bf16.mxu0 0
      %598 = vmatpush1.bf16.msra.mxu0 %v581
      %599 = vmatprep.subr.bf16.mxu0 0
      %600 = vmatpush2.bf16.msra.mxu0 0
      %601 = vmatprep.subr.bf16.mxu0 0
      %602 = vmatpush2.bf16.msra.mxu0 0
      %603 = vmatprep.subr.bf16.mxu0 0
      %604 = vmatpush2.bf16.msra.mxu0 0
      %605 = vmatprep.subr.bf16.mxu0 0
      %606 = vmatpush2.bf16.msra.mxu0 0
      %607 = vmatprep.subr.bf16.mxu0 0
      %608 = vmatpush2.bf16.msra.mxu0 0
      %609 = vmatprep.subr.bf16.mxu0 0
      %610 = vmatpush2.bf16.msra.mxu0 0
      %611 = vmatprep.subr.bf16.mxu0 0
      %612 = vmatpush2.bf16.msra.mxu0 0
      %613 = vmatprep.subr.bf16.mxu0 0
      %614 = vmatpush2.bf16.msra.mxu0 0
      %615 = vmatprep.mubr.bf16.mxu0 0
      %616 = vmatmul.mubr.bf16.gmra.mxu0 %v569
      %v617 = vpop.f32.mrf.mxu0
      %v618 = vadd.f32 0.0, %v617
      %v619 = vpop.f32.mrf.mxu0
      %v620 = vpop.f32.mrf.mxu0
      %v621 = vadd.f32 0.0, %v620
      %v622 = vpop.f32.mrf.mxu0
      %623 = vmatprep.mubr.bf16.mxu0 0
      %624 = vmatmul.mubr.bf16.gmra.mxu0 %v572
      %v625 = vpop.f32.mrf.mxu0
      %v626 = vadd.f32 0.0, %v625
      %v627 = vpop.f32.mrf.mxu0
      %v628 = vpop.f32.mrf.mxu0
      %v629 = vadd.f32 0.0, %v628
      %v630 = vpop.f32.mrf.mxu0
      %631 = vmatprep.mubr.bf16.mxu0 0
      %632 = vmatmul.mubr.bf16.gmra.mxu0 %v575
      %v633 = vpop.f32.mrf.mxu0
      %v634 = vadd.f32 0.0, %v633
      %v635 = vpop.f32.mrf.mxu0
      %v636 = vpop.f32.mrf.mxu0
      %v637 = vadd.f32 0.0, %v636
      %v638 = vpop.f32.mrf.mxu0
      %639 = vmatprep.mubr.bf16.mxu0 0
      %640 = vmatmul.mubr.bf16.gmra.mxu0 %v578
      %v641 = vpop.f32.mrf.mxu0
      %v642 = vadd.f32 0.0, %v641
      %v643 = vpop.f32.mrf.mxu0
      %v644 = vpop.f32.mrf.mxu0
      %v645 = vadd.f32 0.0, %v644
      %v646 = vpop.f32.mrf.mxu0
      %647 = vdwg.mxu0
      %v648 = vadd.f32 %v393, %v618
      %v649 = vadd.f32 %v396, %v621
      %v650 = vadd.f32 %v401, %v626
      %v651 = vadd.f32 %v404, %v629
      %v652 = vadd.f32 %v409, %v634
      %v653 = vadd.f32 %v412, %v637
      %v654 = vadd.f32 %v417, %v642
      %v655 = vadd.f32 %v420, %v645
      %s656 = sadd.s32 %s196, 36
      %s657 = smul.addr %s656, 4
      %s658 = scalar_lea.vmem %s183, %s657
      %v659 = vld [vmem:[%s658] sm:$0xf]
      %v660 = vld [vmem:[%s658 + $0x8] sm:$0xf]
      %v661 = vld [vmem:[%s658 + $0x10] sm:$0xf]
      %v662 = vld [vmem:[%s658 + $0x18] sm:$0xf]
      %v663 = vld [vmem:[%s658 + $0x20] sm:$0xf]
      %v664 = vld [vmem:[%s658 + $0x28] sm:$0xf]
      %v665 = vld [vmem:[%s658 + $0x30] sm:$0xf]
      %v666 = vld [vmem:[%s658 + $0x38] sm:$0xf]
      %s667 = scalar_lea.vmem %s1, 12
      %v668 = vld [vmem:[%s667] sm:$0xf]
      %v677 = vunpack.c.l.b16 %v659
      %v678 = vunpack.c.l.b16 %v660
      %v679 = vunpack.c.l.b16 %v661
      %v680 = vunpack.c.l.b16 %v662
      %v681 = vunpack.c.l.b16 %v663
      %v682 = vunpack.c.l.b16 %v664
      %v683 = vunpack.c.l.b16 %v665
      %v684 = vunpack.c.l.b16 %v666
      %v685 = vpack.c.b16 %v678, %v677
      %v686 = vpack.c.b16 %v680, %v679
      %v687 = vpack.c.b16 %v682, %v681
      %v688 = vpack.c.b16 %v684, %v683
      %v690 = vsel %vm241, %v685, 0
      %v693 = vsel %vm241, %v686, 0
      %v696 = vsel %vm241, %v687, 0
      %v699 = vsel %vm241, %v688, 0
      %v702 = vsel %vm254, %v668, 0
      %704 = vmatprep.subr.bf16.mxu0 0
      %705 = vmatpush1.bf16.msra.mxu0 0
      %706 = vmatprep.subr.bf16.mxu0 0
      %707 = vmatpush1.bf16.msra.mxu0 0
      %708 = vmatprep.subr.bf16.mxu0 0
      %709 = vmatpush1.bf16.msra.mxu0 0
      %710 = vmatprep.subr.bf16.mxu0 0
      %711 = vmatpush1.bf16.msra.mxu0 0
      %712 = vmatprep.subr.bf16.mxu0 0
      %713 = vmatpush1.bf16.msra.mxu0 0
      %714 = vmatprep.subr.bf16.mxu0 0
      %715 = vmatpush1.bf16.msra.mxu0 0
      %716 = vmatprep.subr.bf16.mxu0 0
      %717 = vmatpush1.bf16.msra.mxu0 0
      %718 = vmatprep.subr.bf16.mxu0 0
      %719 = vmatpush1.bf16.msra.mxu0 %v702
      %720 = vmatprep.subr.bf16.mxu0 0
      %721 = vmatpush2.bf16.msra.mxu0 0
      %722 = vmatprep.subr.bf16.mxu0 0
      %723 = vmatpush2.bf16.msra.mxu0 0
      %724 = vmatprep.subr.bf16.mxu0 0
      %725 = vmatpush2.bf16.msra.mxu0 0
      %726 = vmatprep.subr.bf16.mxu0 0
      %727 = vmatpush2.bf16.msra.mxu0 0
      %728 = vmatprep.subr.bf16.mxu0 0
      %729 = vmatpush2.bf16.msra.mxu0 0
      %730 = vmatprep.subr.bf16.mxu0 0
      %731 = vmatpush2.bf16.msra.mxu0 0
      %732 = vmatprep.subr.bf16.mxu0 0
      %733 = vmatpush2.bf16.msra.mxu0 0
      %734 = vmatprep.subr.bf16.mxu0 0
      %735 = vmatpush2.bf16.msra.mxu0 0
      %736 = vmatprep.mubr.bf16.mxu0 0
      %737 = vmatmul.mubr.bf16.gmra.mxu0 %v690
      %v738 = vpop.f32.mrf.mxu0
      %v739 = vadd.f32 0.0, %v738
      %v740 = vpop.f32.mrf.mxu0
      %v741 = vpop.f32.mrf.mxu0
      %v742 = vadd.f32 0.0, %v741
      %v743 = vpop.f32.mrf.mxu0
      %744 = vmatprep.mubr.bf16.mxu0 0
      %745 = vmatmul.mubr.bf16.gmra.mxu0 %v693
      %v746 = vpop.f32.mrf.mxu0
      %v747 = vadd.f32 0.0, %v746
      %v748 = vpop.f32.mrf.mxu0
      %v749 = vpop.f32.mrf.mxu0
      %v750 = vadd.f32 0.0, %v749
      %v751 = vpop.f32.mrf.mxu0
      %752 = vmatprep.mubr.bf16.mxu0 0
      %753 = vmatmul.mubr.bf16.gmra.mxu0 %v696
      %v754 = vpop.f32.mrf.mxu0
      %v755 = vadd.f32 0.0, %v754
      %v756 = vpop.f32.mrf.mxu0
      %v757 = vpop.f32.mrf.mxu0
      %v758 = vadd.f32 0.0, %v757
      %v759 = vpop.f32.mrf.mxu0
      %760 = vmatprep.mubr.bf16.mxu0 0
      %761 = vmatmul.mubr.bf16.gmra.mxu0 %v699
      %v762 = vpop.f32.mrf.mxu0
      %v763 = vadd.f32 0.0, %v762
      %v764 = vpop.f32.mrf.mxu0
      %v765 = vpop.f32.mrf.mxu0
      %v766 = vadd.f32 0.0, %v765
      %v767 = vpop.f32.mrf.mxu0
      %768 = vdwg.mxu0
      %v769 = vadd.f32 %v648, %v739
      %v770 = vadd.f32 %v649, %v742
      %v771 = vadd.f32 %v650, %v747
      %v772 = vadd.f32 %v651, %v750
      %v773 = vadd.f32 %v652, %v755
      %v774 = vadd.f32 %v653, %v758
      %v775 = vadd.f32 %v654, %v763
      %v776 = vadd.f32 %v655, %v766
      %s777 = sadd.s32 %s196, 54
      %s778 = smul.addr %s777, 4
      %s779 = scalar_lea.vmem %s183, %s778
      %v780 = vld [vmem:[%s779] sm:$0xf]
      %v781 = vld [vmem:[%s779 + $0x8] sm:$0xf]
      %v782 = vld [vmem:[%s779 + $0x10] sm:$0xf]
      %v783 = vld [vmem:[%s779 + $0x18] sm:$0xf]
      %v784 = vld [vmem:[%s779 + $0x20] sm:$0xf]
      %v785 = vld [vmem:[%s779 + $0x28] sm:$0xf]
      %v786 = vld [vmem:[%s779 + $0x30] sm:$0xf]
      %v787 = vld [vmem:[%s779 + $0x38] sm:$0xf]
      %s788 = scalar_lea.vmem %s1, 16
      %v789 = vld [vmem:[%s788] sm:$0xf]
      %v798 = vunpack.c.l.b16 %v780
      %v799 = vunpack.c.l.b16 %v781
      %v800 = vunpack.c.l.b16 %v782
      %v801 = vunpack.c.l.b16 %v783
      %v802 = vunpack.c.l.b16 %v784
      %v803 = vunpack.c.l.b16 %v785
      %v804 = vunpack.c.l.b16 %v786
      %v805 = vunpack.c.l.b16 %v787
      %v806 = vpack.c.b16 %v799, %v798
      %v807 = vpack.c.b16 %v801, %v800
      %v808 = vpack.c.b16 %v803, %v802
      %v809 = vpack.c.b16 %v805, %v804
      %v811 = vsel %vm241, %v806, 0
      %v814 = vsel %vm241, %v807, 0
      %v817 = vsel %vm241, %v808, 0
      %v820 = vsel %vm241, %v809, 0
      %v823 = vsel %vm254, %v789, 0
      %825 = vmatprep.subr.bf16.mxu0 0
      %826 = vmatpush1.bf16.msra.mxu0 0
      %827 = vmatprep.subr.bf16.mxu0 0
      %828 = vmatpush1.bf16.msra.mxu0 0
      %829 = vmatprep.subr.bf16.mxu0 0
      %830 = vmatpush1.bf16.msra.mxu0 0
      %831 = vmatprep.subr.bf16.mxu0 0
      %832 = vmatpush1.bf16.msra.mxu0 0
      %833 = vmatprep.subr.bf16.mxu0 0
      %834 = vmatpush1.bf16.msra.mxu0 0
      %835 = vmatprep.subr.bf16.mxu0 0
      %836 = vmatpush1.bf16.msra.mxu0 0
      %837 = vmatprep.subr.bf16.mxu0 0
      %838 = vmatpush1.bf16.msra.mxu0 0
      %839 = vmatprep.subr.bf16.mxu0 0
      %840 = vmatpush1.bf16.msra.mxu0 %v823
      %841 = vmatprep.subr.bf16.mxu0 0
      %842 = vmatpush2.bf16.msra.mxu0 0
      %843 = vmatprep.subr.bf16.mxu0 0
      %844 = vmatpush2.bf16.msra.mxu0 0
      %845 = vmatprep.subr.bf16.mxu0 0
      %846 = vmatpush2.bf16.msra.mxu0 0
      %847 = vmatprep.subr.bf16.mxu0 0
      %848 = vmatpush2.bf16.msra.mxu0 0
      %849 = vmatprep.subr.bf16.mxu0 0
      %850 = vmatpush2.bf16.msra.mxu0 0
      %851 = vmatprep.subr.bf16.mxu0 0
      %852 = vmatpush2.bf16.msra.mxu0 0
      %853 = vmatprep.subr.bf16.mxu0 0
      %854 = vmatpush2.bf16.msra.mxu0 0
      %855 = vmatprep.subr.bf16.mxu0 0
      %856 = vmatpush2.bf16.msra.mxu0 0
      %857 = vmatprep.mubr.bf16.mxu0 0
      %858 = vmatmul.mubr.bf16.gmra.mxu0 %v811
      %v859 = vpop.f32.mrf.mxu0
      %v860 = vadd.f32 0.0, %v859
      %v861 = vpop.f32.mrf.mxu0
      %v862 = vpop.f32.mrf.mxu0
      %v863 = vadd.f32 0.0, %v862
      %v864 = vpop.f32.mrf.mxu0
      %865 = vmatprep.mubr.bf16.mxu0 0
      %866 = vmatmul.mubr.bf16.gmra.mxu0 %v814
      %v867 = vpop.f32.mrf.mxu0
      %v868 = vadd.f32 0.0, %v867
      %v869 = vpop.f32.mrf.mxu0
      %v870 = vpop.f32.mrf.mxu0
      %v871 = vadd.f32 0.0, %v870
      %v872 = vpop.f32.mrf.mxu0
      %873 = vmatprep.mubr.bf16.mxu0 0
      %874 = vmatmul.mubr.bf16.gmra.mxu0 %v817
      %v875 = vpop.f32.mrf.mxu0
      %v876 = vadd.f32 0.0, %v875
      %v877 = vpop.f32.mrf.mxu0
      %v878 = vpop.f32.mrf.mxu0
      %v879 = vadd.f32 0.0, %v878
      %v880 = vpop.f32.mrf.mxu0
      %881 = vmatprep.mubr.bf16.mxu0 0
      %882 = vmatmul.mubr.bf16.gmra.mxu0 %v820
      %v883 = vpop.f32.mrf.mxu0
      %v884 = vadd.f32 0.0, %v883
      %v885 = vpop.f32.mrf.mxu0
      %v886 = vpop.f32.mrf.mxu0
      %v887 = vadd.f32 0.0, %v886
      %v888 = vpop.f32.mrf.mxu0
      %889 = vdwg.mxu0
      %v890 = vadd.f32 %v769, %v860
      %v891 = vadd.f32 %v770, %v863
      %v892 = vadd.f32 %v771, %v868
      %v893 = vadd.f32 %v772, %v871
      %v894 = vadd.f32 %v773, %v876
      %v895 = vadd.f32 %v774, %v879
      %v896 = vadd.f32 %v775, %v884
      %v897 = vadd.f32 %v776, %v887
      %v898 = vld [vmem:[%s658] sm:$0xf]
      %v899 = vld [vmem:[%s658 + $0x4] sm:$0x1]
      %v900 = vld [vmem:[%s658 + $0x8] sm:$0xf]
      %v901 = vld [vmem:[%s658 + $0xc] sm:$0x1]
      %v902 = vld [vmem:[%s658 + $0x10] sm:$0xf]
      %v903 = vld [vmem:[%s658 + $0x14] sm:$0x1]
      %v904 = vld [vmem:[%s658 + $0x18] sm:$0xf]
      %v905 = vld [vmem:[%s658 + $0x1c] sm:$0x1]
      %v906 = vld [vmem:[%s658 + $0x20] sm:$0xf]
      %v907 = vld [vmem:[%s658 + $0x24] sm:$0x1]
      %v908 = vld [vmem:[%s658 + $0x28] sm:$0xf]
      %v909 = vld [vmem:[%s658 + $0x2c] sm:$0x1]
      %v910 = vld [vmem:[%s658 + $0x30] sm:$0xf]
      %v911 = vld [vmem:[%s658 + $0x34] sm:$0x1]
      %v912 = vld [vmem:[%s658 + $0x38] sm:$0xf]
      %v913 = vld [vmem:[%s658 + $0x3c] sm:$0x1]
      %v915 = vshrl.u32 %v898, 16
      %v917 = vrot.slane %v915, 4
      %v918 = vshll.u32 %v898, 16
      %v920 = vrot.slane %v918, 5
      %v921 = vor.u32 %v917, %v920
      %v922 = vrot.slane %v921, 4
      %v924 = vshll.u32 %v899, 16
      %v926 = vrot.slane %v924, 5
      %v927 = vsel %vm441, %v922, %v926
      %v929 = vshrl.u32 %v900, 16
      %v931 = vrot.slane %v929, 4
      %v932 = vshll.u32 %v900, 16
      %v934 = vrot.slane %v932, 5
      %v935 = vor.u32 %v931, %v934
      %v936 = vrot.slane %v935, 4
      %v938 = vshll.u32 %v901, 16
      %v940 = vrot.slane %v938, 5
      %v941 = vsel %vm441, %v936, %v940
      %v943 = vshrl.u32 %v902, 16
      %v945 = vrot.slane %v943, 4
      %v946 = vshll.u32 %v902, 16
      %v948 = vrot.slane %v946, 5
      %v949 = vor.u32 %v945, %v948
      %v950 = vrot.slane %v949, 4
      %v952 = vshll.u32 %v903, 16
      %v954 = vrot.slane %v952, 5
      %v955 = vsel %vm441, %v950, %v954
      %v957 = vshrl.u32 %v904, 16
      %v959 = vrot.slane %v957, 4
      %v960 = vshll.u32 %v904, 16
      %v962 = vrot.slane %v960, 5
      %v963 = vor.u32 %v959, %v962
      %v964 = vrot.slane %v963, 4
      %v966 = vshll.u32 %v905, 16
      %v968 = vrot.slane %v966, 5
      %v969 = vsel %vm441, %v964, %v968
      %v971 = vshrl.u32 %v906, 16
      %v973 = vrot.slane %v971, 4
      %v974 = vshll.u32 %v906, 16
      %v976 = vrot.slane %v974, 5
      %v977 = vor.u32 %v973, %v976
      %v978 = vrot.slane %v977, 4
      %v980 = vshll.u32 %v907, 16
      %v982 = vrot.slane %v980, 5
      %v983 = vsel %vm441, %v978, %v982
      %v985 = vshrl.u32 %v908, 16
      %v987 = vrot.slane %v985, 4
      %v988 = vshll.u32 %v908, 16
      %v990 = vrot.slane %v988, 5
      %v991 = vor.u32 %v987, %v990
      %v992 = vrot.slane %v991, 4
      %v994 = vshll.u32 %v909, 16
      %v996 = vrot.slane %v994, 5
      %v997 = vsel %vm441, %v992, %v996
      %v999 = vshrl.u32 %v910, 16
      %v1001 = vrot.slane %v999, 4
      %v1002 = vshll.u32 %v910, 16
      %v1004 = vrot.slane %v1002, 5
      %v1005 = vor.u32 %v1001, %v1004
      %v1006 = vrot.slane %v1005, 4
      %v1008 = vshll.u32 %v911, 16
      %v1010 = vrot.slane %v1008, 5
      %v1011 = vsel %vm441, %v1006, %v1010
      %v1013 = vshrl.u32 %v912, 16
      %v1015 = vrot.slane %v1013, 4
      %v1016 = vshll.u32 %v912, 16
      %v1018 = vrot.slane %v1016, 5
      %v1019 = vor.u32 %v1015, %v1018
      %v1020 = vrot.slane %v1019, 4
      %v1022 = vshll.u32 %v913, 16
      %v1024 = vrot.slane %v1022, 5
      %v1025 = vsel %vm441, %v1020, %v1024
      %s1026 = scalar_lea.vmem %s1, 20
      %v1027 = vld [vmem:[%s1026] sm:$0xf]
      %v1028 = vunpack.c.l.b16 %v927
      %v1029 = vunpack.c.l.b16 %v941
      %v1030 = vunpack.c.l.b16 %v955
      %v1031 = vunpack.c.l.b16 %v969
      %v1032 = vunpack.c.l.b16 %v983
      %v1033 = vunpack.c.l.b16 %v997
      %v1034 = vunpack.c.l.b16 %v1011
      %v1035 = vunpack.c.l.b16 %v1025
      %v1036 = vpack.c.b16 %v1029, %v1028
      %v1037 = vpack.c.b16 %v1031, %v1030
      %v1038 = vpack.c.b16 %v1033, %v1032
      %v1039 = vpack.c.b16 %v1035, %v1034
      %v1041 = vsel %vm241, %v1036, 0
      %v1044 = vsel %vm241, %v1037, 0
      %v1047 = vsel %vm241, %v1038, 0
      %v1050 = vsel %vm241, %v1039, 0
      %v1053 = vsel %vm254, %v1027, 0
      %1055 = vmatprep.subr.bf16.mxu0 0
      %1056 = vmatpush1.bf16.msra.mxu0 0
      %1057 = vmatprep.subr.bf16.mxu0 0
      %1058 = vmatpush1.bf16.msra.mxu0 0
      %1059 = vmatprep.subr.bf16.mxu0 0
      %1060 = vmatpush1.bf16.msra.mxu0 0
      %1061 = vmatprep.subr.bf16.mxu0 0
      %1062 = vmatpush1.bf16.msra.mxu0 0
      %1063 = vmatprep.subr.bf16.mxu0 0
      %1064 = vmatpush1.bf16.msra.mxu0 0
      %1065 = vmatprep.subr.bf16.mxu0 0
      %1066 = vmatpush1.bf16.msra.mxu0 0
      %1067 = vmatprep.subr.bf16.mxu0 0
      %1068 = vmatpush1.bf16.msra.mxu0 0
      %1069 = vmatprep.subr.bf16.mxu0 0
      %1070 = vmatpush1.bf16.msra.mxu0 %v1053
      %1071 = vmatprep.subr.bf16.mxu0 0
      %1072 = vmatpush2.bf16.msra.mxu0 0
      %1073 = vmatprep.subr.bf16.mxu0 0
      %1074 = vmatpush2.bf16.msra.mxu0 0
      %1075 = vmatprep.subr.bf16.mxu0 0
      %1076 = vmatpush2.bf16.msra.mxu0 0
      %1077 = vmatprep.subr.bf16.mxu0 0
      %1078 = vmatpush2.bf16.msra.mxu0 0
      %1079 = vmatprep.subr.bf16.mxu0 0
      %1080 = vmatpush2.bf16.msra.mxu0 0
      %1081 = vmatprep.subr.bf16.mxu0 0
      %1082 = vmatpush2.bf16.msra.mxu0 0
      %1083 = vmatprep.subr.bf16.mxu0 0
      %1084 = vmatpush2.bf16.msra.mxu0 0
      %1085 = vmatprep.subr.bf16.mxu0 0
      %1086 = vmatpush2.bf16.msra.mxu0 0
      %1087 = vmatprep.mubr.bf16.mxu0 0
      %1088 = vmatmul.mubr.bf16.gmra.mxu0 %v1041
      %v1089 = vpop.f32.mrf.mxu0
      %v1090 = vadd.f32 0.0, %v1089
      %v1091 = vpop.f32.mrf.mxu0
      %v1092 = vpop.f32.mrf.mxu0
      %v1093 = vadd.f32 0.0, %v1092
      %v1094 = vpop.f32.mrf.mxu0
      %1095 = vmatprep.mubr.bf16.mxu0 0
      %1096 = vmatmul.mubr.bf16.gmra.mxu0 %v1044
      %v1097 = vpop.f32.mrf.mxu0
      %v1098 = vadd.f32 0.0, %v1097
      %v1099 = vpop.f32.mrf.mxu0
      %v1100 = vpop.f32.mrf.mxu0
      %v1101 = vadd.f32 0.0, %v1100
      %v1102 = vpop.f32.mrf.mxu0
      %1103 = vmatprep.mubr.bf16.mxu0 0
      %1104 = vmatmul.mubr.bf16.gmra.mxu0 %v1047
      %v1105 = vpop.f32.mrf.mxu0
      %v1106 = vadd.f32 0.0, %v1105
      %v1107 = vpop.f32.mrf.mxu0
      %v1108 = vpop.f32.mrf.mxu0
      %v1109 = vadd.f32 0.0, %v1108
      %v1110 = vpop.f32.mrf.mxu0
      %1111 = vmatprep.mubr.bf16.mxu0 0
      %1112 = vmatmul.mubr.bf16.gmra.mxu0 %v1050
      %v1113 = vpop.f32.mrf.mxu0
      %v1114 = vadd.f32 0.0, %v1113
      %v1115 = vpop.f32.mrf.mxu0
      %v1116 = vpop.f32.mrf.mxu0
      %v1117 = vadd.f32 0.0, %v1116
      %v1118 = vpop.f32.mrf.mxu0
      %1119 = vdwg.mxu0
      %v1120 = vadd.f32 %v890, %v1090
      %v1121 = vadd.f32 %v891, %v1093
      %v1122 = vadd.f32 %v892, %v1098
      %v1123 = vadd.f32 %v893, %v1101
      %v1124 = vadd.f32 %v894, %v1106
      %v1125 = vadd.f32 %v895, %v1109
      %v1126 = vadd.f32 %v896, %v1114
      %v1127 = vadd.f32 %v897, %v1117
      %s1128 = sadd.s32 %s195, 1
      %s1129 = smul.u32 %s1128, 2
      %s1130 = smul.addr %s1129, 4
      %s1131 = scalar_lea.vmem %s183, %s1130
      %v1132 = vld [vmem:[%s1131] sm:$0xf]
      %v1133 = vld [vmem:[%s1131 + $0x8] sm:$0xf]
      %v1134 = vld [vmem:[%s1131 + $0x10] sm:$0xf]
      %v1135 = vld [vmem:[%s1131 + $0x18] sm:$0xf]
      %v1136 = vld [vmem:[%s1131 + $0x20] sm:$0xf]
      %v1137 = vld [vmem:[%s1131 + $0x28] sm:$0xf]
      %v1138 = vld [vmem:[%s1131 + $0x30] sm:$0xf]
      %v1139 = vld [vmem:[%s1131 + $0x38] sm:$0xf]
      %s1140 = scalar_lea.vmem %s1, 24
      %v1141 = vld [vmem:[%s1140] sm:$0xf]
      %v1150 = vunpack.c.l.b16 %v1132
      %v1151 = vunpack.c.l.b16 %v1133
      %v1152 = vunpack.c.l.b16 %v1134
      %v1153 = vunpack.c.l.b16 %v1135
      %v1154 = vunpack.c.l.b16 %v1136
      %v1155 = vunpack.c.l.b16 %v1137
      %v1156 = vunpack.c.l.b16 %v1138
      %v1157 = vunpack.c.l.b16 %v1139
      %v1158 = vpack.c.b16 %v1151, %v1150
      %v1159 = vpack.c.b16 %v1153, %v1152
      %v1160 = vpack.c.b16 %v1155, %v1154
      %v1161 = vpack.c.b16 %v1157, %v1156
      %v1163 = vsel %vm241, %v1158, 0
      %v1166 = vsel %vm241, %v1159, 0
      %v1169 = vsel %vm241, %v1160, 0
      %v1172 = vsel %vm241, %v1161, 0
      %v1175 = vsel %vm254, %v1141, 0
      %1177 = vmatprep.subr.bf16.mxu0 0
      %1178 = vmatpush1.bf16.msra.mxu0 0
      %1179 = vmatprep.subr.bf16.mxu0 0
      %1180 = vmatpush1.bf16.msra.mxu0 0
      %1181 = vmatprep.subr.bf16.mxu0 0
      %1182 = vmatpush1.bf16.msra.mxu0 0
      %1183 = vmatprep.subr.bf16.mxu0 0
      %1184 = vmatpush1.bf16.msra.mxu0 0
      %1185 = vmatprep.subr.bf16.mxu0 0
      %1186 = vmatpush1.bf16.msra.mxu0 0
      %1187 = vmatprep.subr.bf16.mxu0 0
      %1188 = vmatpush1.bf16.msra.mxu0 0
      %1189 = vmatprep.subr.bf16.mxu0 0
      %1190 = vmatpush1.bf16.msra.mxu0 0
      %1191 = vmatprep.subr.bf16.mxu0 0
      %1192 = vmatpush1.bf16.msra.mxu0 %v1175
      %1193 = vmatprep.subr.bf16.mxu0 0
      %1194 = vmatpush2.bf16.msra.mxu0 0
      %1195 = vmatprep.subr.bf16.mxu0 0
      %1196 = vmatpush2.bf16.msra.mxu0 0
      %1197 = vmatprep.subr.bf16.mxu0 0
      %1198 = vmatpush2.bf16.msra.mxu0 0
      %1199 = vmatprep.subr.bf16.mxu0 0
      %1200 = vmatpush2.bf16.msra.mxu0 0
      %1201 = vmatprep.subr.bf16.mxu0 0
      %1202 = vmatpush2.bf16.msra.mxu0 0
      %1203 = vmatprep.subr.bf16.mxu0 0
      %1204 = vmatpush2.bf16.msra.mxu0 0
      %1205 = vmatprep.subr.bf16.mxu0 0
      %1206 = vmatpush2.bf16.msra.mxu0 0
      %1207 = vmatprep.subr.bf16.mxu0 0
      %1208 = vmatpush2.bf16.msra.mxu0 0
      %1209 = vmatprep.mubr.bf16.mxu0 0
      %1210 = vmatmul.mubr.bf16.gmra.mxu0 %v1163
      %v1211 = vpop.f32.mrf.mxu0
      %v1212 = vadd.f32 0.0, %v1211
      %v1213 = vpop.f32.mrf.mxu0
      %v1214 = vpop.f32.mrf.mxu0
      %v1215 = vadd.f32 0.0, %v1214
      %v1216 = vpop.f32.mrf.mxu0
      %1217 = vmatprep.mubr.bf16.mxu0 0
      %1218 = vmatmul.mubr.bf16.gmra.mxu0 %v1166
      %v1219 = vpop.f32.mrf.mxu0
      %v1220 = vadd.f32 0.0, %v1219
      %v1221 = vpop.f32.mrf.mxu0
      %v1222 = vpop.f32.mrf.mxu0
      %v1223 = vadd.f32 0.0, %v1222
      %v1224 = vpop.f32.mrf.mxu0
      %1225 = vmatprep.mubr.bf16.mxu0 0
      %1226 = vmatmul.mubr.bf16.gmra.mxu0 %v1169
      %v1227 = vpop.f32.mrf.mxu0
      %v1228 = vadd.f32 0.0, %v1227
      %v1229 = vpop.f32.mrf.mxu0
      %v1230 = vpop.f32.mrf.mxu0
      %v1231 = vadd.f32 0.0, %v1230
      %v1232 = vpop.f32.mrf.mxu0
      %1233 = vmatprep.mubr.bf16.mxu0 0
      %1234 = vmatmul.mubr.bf16.gmra.mxu0 %v1172
      %v1235 = vpop.f32.mrf.mxu0
      %v1236 = vadd.f32 0.0, %v1235
      %v1237 = vpop.f32.mrf.mxu0
      %v1238 = vpop.f32.mrf.mxu0
      %v1239 = vadd.f32 0.0, %v1238
      %v1240 = vpop.f32.mrf.mxu0
      %1241 = vdwg.mxu0
      %v1242 = vadd.f32 %v1120, %v1212
      %v1243 = vadd.f32 %v1121, %v1215
      %v1244 = vadd.f32 %v1122, %v1220
      %v1245 = vadd.f32 %v1123, %v1223
      %v1246 = vadd.f32 %v1124, %v1228
      %v1247 = vadd.f32 %v1125, %v1231
      %v1248 = vadd.f32 %v1126, %v1236
      %v1249 = vadd.f32 %v1127, %v1239
      %s1250 = sadd.s32 %s1129, 18
      %s1251 = smul.addr %s1250, 4
      %s1252 = scalar_lea.vmem %s183, %s1251
      %v1253 = vld [vmem:[%s1252] sm:$0xf]
      %v1254 = vld [vmem:[%s1252 + $0x8] sm:$0xf]
      %v1255 = vld [vmem:[%s1252 + $0x10] sm:$0xf]
      %v1256 = vld [vmem:[%s1252 + $0x18] sm:$0xf]
      %v1257 = vld [vmem:[%s1252 + $0x20] sm:$0xf]
      %v1258 = vld [vmem:[%s1252 + $0x28] sm:$0xf]
      %v1259 = vld [vmem:[%s1252 + $0x30] sm:$0xf]
      %v1260 = vld [vmem:[%s1252 + $0x38] sm:$0xf]
      %s1261 = scalar_lea.vmem %s1, 28
      %v1262 = vld [vmem:[%s1261] sm:$0xf]
      %v1271 = vunpack.c.l.b16 %v1253
      %v1272 = vunpack.c.l.b16 %v1254
      %v1273 = vunpack.c.l.b16 %v1255
      %v1274 = vunpack.c.l.b16 %v1256
      %v1275 = vunpack.c.l.b16 %v1257
      %v1276 = vunpack.c.l.b16 %v1258
      %v1277 = vunpack.c.l.b16 %v1259
      %v1278 = vunpack.c.l.b16 %v1260
      %v1279 = vpack.c.b16 %v1272, %v1271
      %v1280 = vpack.c.b16 %v1274, %v1273
      %v1281 = vpack.c.b16 %v1276, %v1275
      %v1282 = vpack.c.b16 %v1278, %v1277
      %v1284 = vsel %vm241, %v1279, 0
      %v1287 = vsel %vm241, %v1280, 0
      %v1290 = vsel %vm241, %v1281, 0
      %v1293 = vsel %vm241, %v1282, 0
      %v1296 = vsel %vm254, %v1262, 0
      %1298 = vmatprep.subr.bf16.mxu0 0
      %1299 = vmatpush1.bf16.msra.mxu0 0
      %1300 = vmatprep.subr.bf16.mxu0 0
      %1301 = vmatpush1.bf16.msra.mxu0 0
      %1302 = vmatprep.subr.bf16.mxu0 0
      %1303 = vmatpush1.bf16.msra.mxu0 0
      %1304 = vmatprep.subr.bf16.mxu0 0
      %1305 = vmatpush1.bf16.msra.mxu0 0
      %1306 = vmatprep.subr.bf16.mxu0 0
      %1307 = vmatpush1.bf16.msra.mxu0 0
      %1308 = vmatprep.subr.bf16.mxu0 0
      %1309 = vmatpush1.bf16.msra.mxu0 0
      %1310 = vmatprep.subr.bf16.mxu0 0
      %1311 = vmatpush1.bf16.msra.mxu0 0
      %1312 = vmatprep.subr.bf16.mxu0 0
      %1313 = vmatpush1.bf16.msra.mxu0 %v1296
      %1314 = vmatprep.subr.bf16.mxu0 0
      %1315 = vmatpush2.bf16.msra.mxu0 0
      %1316 = vmatprep.subr.bf16.mxu0 0
      %1317 = vmatpush2.bf16.msra.mxu0 0
      %1318 = vmatprep.subr.bf16.mxu0 0
      %1319 = vmatpush2.bf16.msra.mxu0 0
      %1320 = vmatprep.subr.bf16.mxu0 0
      %1321 = vmatpush2.bf16.msra.mxu0 0
      %1322 = vmatprep.subr.bf16.mxu0 0
      %1323 = vmatpush2.bf16.msra.mxu0 0
      %1324 = vmatprep.subr.bf16.mxu0 0
      %1325 = vmatpush2.bf16.msra.mxu0 0
      %1326 = vmatprep.subr.bf16.mxu0 0
      %1327 = vmatpush2.bf16.msra.mxu0 0
      %1328 = vmatprep.subr.bf16.mxu0 0
      %1329 = vmatpush2.bf16.msra.mxu0 0
      %1330 = vmatprep.mubr.bf16.mxu0 0
      %1331 = vmatmul.mubr.bf16.gmra.mxu0 %v1284
      %v1332 = vpop.f32.mrf.mxu0
      %v1333 = vadd.f32 0.0, %v1332
      %v1334 = vpop.f32.mrf.mxu0
      %v1335 = vpop.f32.mrf.mxu0
      %v1336 = vadd.f32 0.0, %v1335
      %v1337 = vpop.f32.mrf.mxu0
      %1338 = vmatprep.mubr.bf16.mxu0 0
      %1339 = vmatmul.mubr.bf16.gmra.mxu0 %v1287
      %v1340 = vpop.f32.mrf.mxu0
      %v1341 = vadd.f32 0.0, %v1340
      %v1342 = vpop.f32.mrf.mxu0
      %v1343 = vpop.f32.mrf.mxu0
      %v1344 = vadd.f32 0.0, %v1343
      %v1345 = vpop.f32.mrf.mxu0
      %1346 = vmatprep.mubr.bf16.mxu0 0
      %1347 = vmatmul.mubr.bf16.gmra.mxu0 %v1290
      %v1348 = vpop.f32.mrf.mxu0
      %v1349 = vadd.f32 0.0, %v1348
      %v1350 = vpop.f32.mrf.mxu0
      %v1351 = vpop.f32.mrf.mxu0
      %v1352 = vadd.f32 0.0, %v1351
      %v1353 = vpop.f32.mrf.mxu0
      %1354 = vmatprep.mubr.bf16.mxu0 0
      %1355 = vmatmul.mubr.bf16.gmra.mxu0 %v1293
      %v1356 = vpop.f32.mrf.mxu0
      %v1357 = vadd.f32 0.0, %v1356
      %v1358 = vpop.f32.mrf.mxu0
      %v1359 = vpop.f32.mrf.mxu0
      %v1360 = vadd.f32 0.0, %v1359
      %v1361 = vpop.f32.mrf.mxu0
      %1362 = vdwg.mxu0
      %v1363 = vadd.f32 %v1242, %v1333
      %v1364 = vadd.f32 %v1243, %v1336
      %v1365 = vadd.f32 %v1244, %v1341
      %v1366 = vadd.f32 %v1245, %v1344
      %v1367 = vadd.f32 %v1246, %v1349
      %v1368 = vadd.f32 %v1247, %v1352
      %v1369 = vadd.f32 %v1248, %v1357
      %v1370 = vadd.f32 %v1249, %v1360
      %v1371 = vld [vmem:[%s1131] sm:$0xf]
      %v1372 = vld [vmem:[%s1131 + $0x4] sm:$0x1]
      %v1373 = vld [vmem:[%s1131 + $0x8] sm:$0xf]
      %v1374 = vld [vmem:[%s1131 + $0xc] sm:$0x1]
      %v1375 = vld [vmem:[%s1131 + $0x10] sm:$0xf]
      %v1376 = vld [vmem:[%s1131 + $0x14] sm:$0x1]
      %v1377 = vld [vmem:[%s1131 + $0x18] sm:$0xf]
      %v1378 = vld [vmem:[%s1131 + $0x1c] sm:$0x1]
      %v1379 = vld [vmem:[%s1131 + $0x20] sm:$0xf]
      %v1380 = vld [vmem:[%s1131 + $0x24] sm:$0x1]
      %v1381 = vld [vmem:[%s1131 + $0x28] sm:$0xf]
      %v1382 = vld [vmem:[%s1131 + $0x2c] sm:$0x1]
      %v1383 = vld [vmem:[%s1131 + $0x30] sm:$0xf]
      %v1384 = vld [vmem:[%s1131 + $0x34] sm:$0x1]
      %v1385 = vld [vmem:[%s1131 + $0x38] sm:$0xf]
      %v1386 = vld [vmem:[%s1131 + $0x3c] sm:$0x1]
      %v1388 = vshrl.u32 %v1371, 16
      %v1390 = vrot.slane %v1388, 4
      %v1391 = vshll.u32 %v1371, 16
      %v1393 = vrot.slane %v1391, 5
      %v1394 = vor.u32 %v1390, %v1393
      %v1395 = vrot.slane %v1394, 4
      %v1397 = vshll.u32 %v1372, 16
      %v1399 = vrot.slane %v1397, 5
      %v1400 = vsel %vm441, %v1395, %v1399
      %v1402 = vshrl.u32 %v1373, 16
      %v1404 = vrot.slane %v1402, 4
      %v1405 = vshll.u32 %v1373, 16
      %v1407 = vrot.slane %v1405, 5
      %v1408 = vor.u32 %v1404, %v1407
      %v1409 = vrot.slane %v1408, 4
      %v1411 = vshll.u32 %v1374, 16
      %v1413 = vrot.slane %v1411, 5
      %v1414 = vsel %vm441, %v1409, %v1413
      %v1416 = vshrl.u32 %v1375, 16
      %v1418 = vrot.slane %v1416, 4
      %v1419 = vshll.u32 %v1375, 16
      %v1421 = vrot.slane %v1419, 5
      %v1422 = vor.u32 %v1418, %v1421
      %v1423 = vrot.slane %v1422, 4
      %v1425 = vshll.u32 %v1376, 16
      %v1427 = vrot.slane %v1425, 5
      %v1428 = vsel %vm441, %v1423, %v1427
      %v1430 = vshrl.u32 %v1377, 16
      %v1432 = vrot.slane %v1430, 4
      %v1433 = vshll.u32 %v1377, 16
      %v1435 = vrot.slane %v1433, 5
      %v1436 = vor.u32 %v1432, %v1435
      %v1437 = vrot.slane %v1436, 4
      %v1439 = vshll.u32 %v1378, 16
      %v1441 = vrot.slane %v1439, 5
      %v1442 = vsel %vm441, %v1437, %v1441
      %v1444 = vshrl.u32 %v1379, 16
      %v1446 = vrot.slane %v1444, 4
      %v1447 = vshll.u32 %v1379, 16
      %v1449 = vrot.slane %v1447, 5
      %v1450 = vor.u32 %v1446, %v1449
      %v1451 = vrot.slane %v1450, 4
      %v1453 = vshll.u32 %v1380, 16
      %v1455 = vrot.slane %v1453, 5
      %v1456 = vsel %vm441, %v1451, %v1455
      %v1458 = vshrl.u32 %v1381, 16
      %v1460 = vrot.slane %v1458, 4
      %v1461 = vshll.u32 %v1381, 16
      %v1463 = vrot.slane %v1461, 5
      %v1464 = vor.u32 %v1460, %v1463
      %v1465 = vrot.slane %v1464, 4
      %v1467 = vshll.u32 %v1382, 16
      %v1469 = vrot.slane %v1467, 5
      %v1470 = vsel %vm441, %v1465, %v1469
      %v1472 = vshrl.u32 %v1383, 16
      %v1474 = vrot.slane %v1472, 4
      %v1475 = vshll.u32 %v1383, 16
      %v1477 = vrot.slane %v1475, 5
      %v1478 = vor.u32 %v1474, %v1477
      %v1479 = vrot.slane %v1478, 4
      %v1481 = vshll.u32 %v1384, 16
      %v1483 = vrot.slane %v1481, 5
      %v1484 = vsel %vm441, %v1479, %v1483
      %v1486 = vshrl.u32 %v1385, 16
      %v1488 = vrot.slane %v1486, 4
      %v1489 = vshll.u32 %v1385, 16
      %v1491 = vrot.slane %v1489, 5
      %v1492 = vor.u32 %v1488, %v1491
      %v1493 = vrot.slane %v1492, 4
      %v1495 = vshll.u32 %v1386, 16
      %v1497 = vrot.slane %v1495, 5
      %v1498 = vsel %vm441, %v1493, %v1497
      %s1499 = scalar_lea.vmem %s1, 32
      %v1500 = vld [vmem:[%s1499] sm:$0xf]
      %v1501 = vunpack.c.l.b16 %v1400
      %v1502 = vunpack.c.l.b16 %v1414
      %v1503 = vunpack.c.l.b16 %v1428
      %v1504 = vunpack.c.l.b16 %v1442
      %v1505 = vunpack.c.l.b16 %v1456
      %v1506 = vunpack.c.l.b16 %v1470
      %v1507 = vunpack.c.l.b16 %v1484
      %v1508 = vunpack.c.l.b16 %v1498
      %v1509 = vpack.c.b16 %v1502, %v1501
      %v1510 = vpack.c.b16 %v1504, %v1503
      %v1511 = vpack.c.b16 %v1506, %v1505
      %v1512 = vpack.c.b16 %v1508, %v1507
      %v1514 = vsel %vm241, %v1509, 0
      %v1517 = vsel %vm241, %v1510, 0
      %v1520 = vsel %vm241, %v1511, 0
      %v1523 = vsel %vm241, %v1512, 0
      %v1526 = vsel %vm254, %v1500, 0
      %1528 = vmatprep.subr.bf16.mxu0 0
      %1529 = vmatpush1.bf16.msra.mxu0 0
      %1530 = vmatprep.subr.bf16.mxu0 0
      %1531 = vmatpush1.bf16.msra.mxu0 0
      %1532 = vmatprep.subr.bf16.mxu0 0
      %1533 = vmatpush1.bf16.msra.mxu0 0
      %1534 = vmatprep.subr.bf16.mxu0 0
      %1535 = vmatpush1.bf16.msra.mxu0 0
      %1536 = vmatprep.subr.bf16.mxu0 0
      %1537 = vmatpush1.bf16.msra.mxu0 0
      %1538 = vmatprep.subr.bf16.mxu0 0
      %1539 = vmatpush1.bf16.msra.mxu0 0
      %1540 = vmatprep.subr.bf16.mxu0 0
      %1541 = vmatpush1.bf16.msra.mxu0 0
      %1542 = vmatprep.subr.bf16.mxu0 0
      %1543 = vmatpush1.bf16.msra.mxu0 %v1526
      %1544 = vmatprep.subr.bf16.mxu0 0
      %1545 = vmatpush2.bf16.msra.mxu0 0
      %1546 = vmatprep.subr.bf16.mxu0 0
      %1547 = vmatpush2.bf16.msra.mxu0 0
      %1548 = vmatprep.subr.bf16.mxu0 0
      %1549 = vmatpush2.bf16.msra.mxu0 0
      %1550 = vmatprep.subr.bf16.mxu0 0
      %1551 = vmatpush2.bf16.msra.mxu0 0
      %1552 = vmatprep.subr.bf16.mxu0 0
      %1553 = vmatpush2.bf16.msra.mxu0 0
      %1554 = vmatprep.subr.bf16.mxu0 0
      %1555 = vmatpush2.bf16.msra.mxu0 0
      %1556 = vmatprep.subr.bf16.mxu0 0
      %1557 = vmatpush2.bf16.msra.mxu0 0
      %1558 = vmatprep.subr.bf16.mxu0 0
      %1559 = vmatpush2.bf16.msra.mxu0 0
      %1560 = vmatprep.mubr.bf16.mxu0 0
      %1561 = vmatmul.mubr.bf16.gmra.mxu0 %v1514
      %v1562 = vpop.f32.mrf.mxu0
      %v1563 = vadd.f32 0.0, %v1562
      %v1564 = vpop.f32.mrf.mxu0
      %v1565 = vpop.f32.mrf.mxu0
      %v1566 = vadd.f32 0.0, %v1565
      %v1567 = vpop.f32.mrf.mxu0
      %1568 = vmatprep.mubr.bf16.mxu0 0
      %1569 = vmatmul.mubr.bf16.gmra.mxu0 %v1517
      %v1570 = vpop.f32.mrf.mxu0
      %v1571 = vadd.f32 0.0, %v1570
      %v1572 = vpop.f32.mrf.mxu0
      %v1573 = vpop.f32.mrf.mxu0
      %v1574 = vadd.f32 0.0, %v1573
      %v1575 = vpop.f32.mrf.mxu0
      %1576 = vmatprep.mubr.bf16.mxu0 0
      %1577 = vmatmul.mubr.bf16.gmra.mxu0 %v1520
      %v1578 = vpop.f32.mrf.mxu0
      %v1579 = vadd.f32 0.0, %v1578
      %v1580 = vpop.f32.mrf.mxu0
      %v1581 = vpop.f32.mrf.mxu0
      %v1582 = vadd.f32 0.0, %v1581
      %v1583 = vpop.f32.mrf.mxu0
      %1584 = vmatprep.mubr.bf16.mxu0 0
      %1585 = vmatmul.mubr.bf16.gmra.mxu0 %v1523
      %v1586 = vpop.f32.mrf.mxu0
      %v1587 = vadd.f32 0.0, %v1586
      %v1588 = vpop.f32.mrf.mxu0
      %v1589 = vpop.f32.mrf.mxu0
      %v1590 = vadd.f32 0.0, %v1589
      %v1591 = vpop.f32.mrf.mxu0
      %1592 = vdwg.mxu0
      %v1593 = vadd.f32 %v1363, %v1563
      %v1594 = vadd.f32 %v1364, %v1566
      %v1595 = vadd.f32 %v1365, %v1571
      %v1596 = vadd.f32 %v1366, %v1574
      %v1597 = vadd.f32 %v1367, %v1579
      %v1598 = vadd.f32 %v1368, %v1582
      %v1599 = vadd.f32 %v1369, %v1587
      %v1600 = vadd.f32 %v1370, %v1590
      %v1601 = vld [vmem:[%s2] sm:$0x1]
      %v1603 = vlaneseq
      %v1604 = vshrl.u32 %v1603, 7
      %v1605 = vsub.s32 0, %v1604
      %v1606 = vrot.slane %v1601, %v1605
      %v1608 = vadd.f32 %v1593, %v1606
      %v1609 = vadd.f32 %v1594, %v1606
      %v1610 = vadd.f32 %v1595, %v1606
      %v1611 = vadd.f32 %v1596, %v1606
      %v1612 = vadd.f32 %v1597, %v1606
      %v1613 = vadd.f32 %v1598, %v1606
      %v1614 = vadd.f32 %v1599, %v1606
      %v1615 = vadd.f32 %v1600, %v1606
      %v1616 = vmax.f32 %v1608, 0.0
      %v1617 = vmax.f32 %v1609, 0.0
      %v1618 = vmax.f32 %v1610, 0.0
      %v1619 = vmax.f32 %v1611, 0.0
      %v1620 = vmax.f32 %v1612, 0.0
      %v1621 = vmax.f32 %v1613, 0.0
      %v1622 = vmax.f32 %v1614, 0.0
      %v1623 = vmax.f32 %v1615, 0.0
      %v1624 = vpack.c.bf16 %v1617, %v1616
      %v1625 = vpack.c.bf16 %v1619, %v1618
      %v1626 = vpack.c.bf16 %v1621, %v1620
      %v1627 = vpack.c.bf16 %v1623, %v1622
      %v1632 = vunpack.c.l.b16 %v1624
      %v1633 = vunpack.c.h.b16 %v1624
      %v1634 = vunpack.c.l.b16 %v1625
      %v1635 = vunpack.c.h.b16 %v1625
      %v1636 = vunpack.c.l.b16 %v1626
      %v1637 = vunpack.c.h.b16 %v1626
      %v1638 = vunpack.c.l.b16 %v1627
      %v1639 = vunpack.c.h.b16 %v1627
      %v1640 = vpack.c.b16 %v1632, %v1632
      %v1641 = vpack.c.b16 %v1633, %v1633
      %v1642 = vpack.c.b16 %v1634, %v1634
      %v1643 = vpack.c.b16 %v1635, %v1635
      %v1644 = vpack.c.b16 %v1636, %v1636
      %v1645 = vpack.c.b16 %v1637, %v1637
      %v1646 = vpack.c.b16 %v1638, %v1638
      %v1647 = vpack.c.b16 %v1639, %v1639
      %vm1656 = vcmask 60416
      %1657 = vst.msk [vmem:[%s192] sm:$0xf] %vm1656, %v1640
      %1658 = vst.msk [vmem:[%s192 + $0x4] sm:$0xf] %vm1656, %v1641
      %1659 = vst.msk [vmem:[%s192 + $0x8] sm:$0xf] %vm1656, %v1642
      %1660 = vst.msk [vmem:[%s192 + $0xc] sm:$0xf] %vm1656, %v1643
      %1661 = vst.msk [vmem:[%s192 + $0x10] sm:$0xf] %vm1656, %v1644
      %1662 = vst.msk [vmem:[%s192 + $0x14] sm:$0xf] %vm1656, %v1645
      %1663 = vst.msk [vmem:[%s192 + $0x18] sm:$0xf] %vm1656, %v1646
      %1664 = vst.msk [vmem:[%s192 + $0x1c] sm:$0xf] %vm1656, %v1647
      %s1665 = smul.u32 8, %s19
      %p1666 = scmp.lt.s32.totalorder %s18, 1
      %s1667 = scalar_select %p1666, %s18, 1
      %p1668 = scmp.lt.s32.totalorder %s1665, 7
      %s1669 = scalar_select %p1668, %s1665, 7
      %s1670 = smul.addr %s1667, 8
      %s1671 = sadd.s32 %s1669, %s1670
      %s1672 = smul.addr %s1671, 4
      %s1673 = scalar_lea.vmem %s3, %s1672
      // Predicated region
      $region33: #{se_bottleneck_forward.8} parent=31 // pred_check
        %p1674 = pneg %p114
      $region34: #{se_bottleneck_forward.8} parent=31 // pred_check_branch
        %1676 = sbr.rel (%p1674) target = $region36
      $region35: #{se_bottleneck_forward.8} parent=31 // pred_region
        %s1677 = smul.u32 8, %s19
      $region36: #{se_bottleneck_forward.8} parent=31 // pred_fallthru
        _
    $region32: #{se_bottleneck_forward.8} parent=5 // pred_fallthru
      _
    %p1678 = scmp.le.s32.totalorder 2, %s9
    // Predicated region
    $region37: #{se_bottleneck_forward.8} parent=5 // pred_check
      %p1679 = pneg %p1678
    $region38: #{se_bottleneck_forward.8} parent=5 // pred_check_branch
      %1681 = sbr.rel (%p1679) target = $region40
    $region39: #{se_bottleneck_forward.8} parent=5 // pred_region
      %s1682 = ssub.s32 %s9, 2
      // Predicated region
      $region41: #{se_bottleneck_forward.8} parent=39 // pred_check
        %p1683 = pneg %p120
      $region42: #{se_bottleneck_forward.8} parent=39 // pred_check_branch
        %1685 = sbr.rel (%p1683) target = $region44
      $region43: #{se_bottleneck_forward.8} parent=39 // pred_region
        %s1686 = smul.u32 8, %s21
        %p1687 = scmp.lt.s32.totalorder %s20, 1
        %s1688 = scalar_select %p1687, %s20, 1
        %p1689 = scmp.lt.s32.totalorder %s1686, 7
        %s1690 = scalar_select %p1689, %s1686, 7
        %s1691 = smul.addr %s1688, 8
        %s1692 = sadd.s32 %s1690, %s1691
        %s1693 = smul.addr %s1692, 4
        %s1694 = scalar_lea.vmem %s3, %s1693
      $region44: #{se_bottleneck_forward.8} parent=39 // pred_fallthru
        _
    $region40: #{se_bottleneck_forward.8} parent=5 // pred_fallthru
      _
  $region6: #{se_bottleneck_forward.8} parent=0 // loop_footer
    %s13 = sadd.s32 1, %s9
  $region7: #{se_bottleneck_forward.8} parent=0 // loop_footer_branch
    %8 = sbr.rel target = $region3
  $region8: #{se_bottleneck_forward.8} parent=0 // loop_exit
    _

// kernel: se_bottleneck_forward.11
$region0: #{se_bottleneck_forward.11}
  #allocation0 [shape = 'u32[]', space=smem, size = 0x4, offset = 0x4, fixed_abs, tag = 'smem constant byte address 0x4 - core index']
  #allocation1 [shape = 'u32[144,128]{1,0:T(1,128)}', space=vmem, size = 0x12000, scoped, tag = 'internal scratch']
  %s0 = inlined_call_operand.vmem [shape: bf16[2,64,32], index: 0, kind: input, shape index: {}]
  %s1 = inlined_call_operand.vmem [shape: bf16[2,64,32], index: 1, kind: input, shape index: {}]
  %s2 = inlined_call_operand.vmem [shape: f32[2,1,32], index: 2, kind: input, shape index: {}]
  %s3 = inlined_call_operand.hbm [shape: f32[2,64,32], index: 3, kind: output, shape index: {}]
  %s4 = sld [smem:[#allocation0]]
  $region45: #{se_bottleneck_forward.11} parent=0
    _
  %s6 = ssub.s32 1, %s4
  %s7 = scalar_select 0, %s6, %s4
  $region1: #{se_bottleneck_forward.11} parent=0
    #allocation2 [shape = 'u8[65536]{0}', space=vmem, size = 0x10000, scoped, tag = 'output window, operand 0']
    #allocation3 [shape = 's32[2]{0}', space=sflag, size = 0x8, scoped, tag = 'scoped memory for se_bottleneck_forward.11']
    %8 = vsyncpa [#allocation3], 0
    %s9 = scalar_lea.sflag [#allocation3], 1
    %10 = vsyncpa %s9, 0
    loop: start=0, step=1, limit=4
    $region2: #{se_bottleneck_forward.11} parent=1 // loop_pre_header
      _
    $region3: #{se_bottleneck_forward.11} parent=1 // loop_header
      %s12 = sphi 0, %s16
      %p13 = scmp.ge.s32.totalorder %s12, 4
      %s19 = sphi 0, %s31
      %s20 = sphi 0, %s27
      %s21 = sphi 0, %s19
      %s22 = sphi 0, %s20
      %s23 = sphi 0, %s21
      %s24 = sphi 0, %s22
      %s36 = sphi 0, %s38
      %s39 = sphi 0, %s36
      %s40 = sphi 0, %s39
      %s56 = sphi 0, %s40
      %s64 = sphi 0, %s66
      %s67 = sphi 0, %s64
      %s68 = sphi 0, %s67
      %s84 = sphi 0, %s68
      %s90 = sphi 0, %s92
      %s93 = sphi 0, %s90
      %s94 = sphi 0, %s93
      %s110 = sphi 0, %s94
      %s118 = sphi 0, %s120
      %s121 = sphi 0, %s118
      %s122 = sphi 0, %s121
      %s138 = sphi 0, %s122
    $region4: #{se_bottleneck_forward.11} parent=1 // loop_header_branch
      %15 = sbr.rel (%p13) target = $region8
    $region5: #{se_bottleneck_forward.11} parent=1 // loop_body
      %s17 = ssub.s32 %s12, 1
      %s18 = ssub.s32 %s12, 2
      %s25 = sadd.s32 1, %s20
      %p26 = scmp.ge.s32.totalorder %s25, 1
      %s27 = scalar_select %p26, 0, %s25
      %s28 = sadd.s32 1, %s19
      %s29 = scalar_select %p26, %s28, %s19
      %p30 = scmp.ge.s32.totalorder %s29, 2
      %s31 = scalar_select %p30, 0, %s29
      %s32 = ssub.s32 %s19, %s31
      %s33 = ssub.s32 %s20, %s27
      %s34 = sor.u32 %s32, %s33
      %p35 = scmp.eq.s32.totalorder %s34, 0
      %s37 = sadd.s32 %s36, 1
      %s38 = scalar_select %p35, %s36, %s37
      %p41 = pneg %p35
      %p42 = scmp.eq.s32.totalorder %s12, 1
      %p43 = por %p41, %p42
      %p44 = scmp.ne.s32.totalorder %s36, %s39
      %p45 = scmp.eq.s32.totalorder %s12, 0
      %p46 = por %p44, %p45
      %p47 = scmp.ne.s32.totalorder %s36, %s39
      %p48 = scmp.eq.s32.totalorder %s17, 1
      %p49 = por %p47, %p48
      %p50 = scmp.ne.s32.totalorder %s39, %s40
      %p51 = scmp.eq.s32.totalorder %s17, 0
      %p52 = por %p50, %p51
      %p53 = scmp.ne.s32.totalorder %s39, %s40
      %p54 = scmp.eq.s32.totalorder %s18, 1
      %p55 = por %p53, %p54
      %p57 = scmp.ne.s32.totalorder %s40, %s56
      %p58 = scmp.eq.s32.totalorder %s18, 0
      %p59 = por %p57, %p58
      %s60 = ssub.s32 %s19, %s31
      %s61 = ssub.s32 %s20, %s27
      %s62 = sor.u32 %s60, %s61
      %p63 = scmp.eq.s32.totalorder %s62, 0
      %s65 = sadd.s32 %s64, 1
      %s66 = scalar_select %p63, %s64, %s65
      %p69 = pneg %p63
      %p70 = scmp.eq.s32.totalorder %s12, 1
      %p71 = por %p69, %p70
      %p72 = scmp.ne.s32.totalorder %s64, %s67
      %p73 = scmp.eq.s32.totalorder %s12, 0
      %p74 = por %p72, %p73
      %p75 = scmp.ne.s32.totalorder %s64, %s67
      %p76 = scmp.eq.s32.totalorder %s17, 1
      %p77 = por %p75, %p76
      %p78 = scmp.ne.s32.totalorder %s67, %s68
      %p79 = scmp.eq.s32.totalorder %s17, 0
      %p80 = por %p78, %p79
      %p81 = scmp.ne.s32.totalorder %s67, %s68
      %p82 = scmp.eq.s32.totalorder %s18, 1
      %p83 = por %p81, %p82
      %p85 = scmp.ne.s32.totalorder %s68, %s84
      %p86 = scmp.eq.s32.totalorder %s18, 0
      %p87 = por %p85, %p86
      %s88 = ssub.s32 %s19, %s31
      %p89 = scmp.eq.s32.totalorder %s88, 0
      %s91 = sadd.s32 %s90, 1
      %s92 = scalar_select %p89, %s90, %s91
      %p95 = pneg %p89
      %p96 = scmp.eq.s32.totalorder %s12, 1
      %p97 = por %p95, %p96
      %p98 = scmp.ne.s32.totalorder %s90, %s93
      %p99 = scmp.eq.s32.totalorder %s12, 0
      %p100 = por %p98, %p99
      %p101 = scmp.ne.s32.totalorder %s90, %s93
      %p102 = scmp.eq.s32.totalorder %s17, 1
      %p103 = por %p101, %p102
      %p104 = scmp.ne.s32.totalorder %s93, %s94
      %p105 = scmp.eq.s32.totalorder %s17, 0
      %p106 = por %p104, %p105
      %p107 = scmp.ne.s32.totalorder %s93, %s94
      %p108 = scmp.eq.s32.totalorder %s18, 1
      %p109 = por %p107, %p108
      %p111 = scmp.ne.s32.totalorder %s94, %s110
      %p112 = scmp.eq.s32.totalorder %s18, 0
      %p113 = por %p111, %p112
      %s114 = ssub.s32 %s19, %s31
      %s115 = ssub.s32 %s20, %s27
      %s116 = sor.u32 %s114, %s115
      %p117 = scmp.eq.s32.totalorder %s116, 0
      %s119 = sadd.s32 %s118, 1
      %s120 = scalar_select %p117, %s118, %s119
      %p123 = pneg %p117
      %p124 = scmp.eq.s32.totalorder %s12, 1
      %p125 = por %p123, %p124
      %p126 = scmp.ne.s32.totalorder %s118, %s121
      %p127 = scmp.eq.s32.totalorder %s12, 0
      %p128 = por %p126, %p127
      %p129 = scmp.ne.s32.totalorder %s118, %s121
      %p130 = scmp.eq.s32.totalorder %s17, 1
      %p131 = por %p129, %p130
      %p132 = scmp.ne.s32.totalorder %s121, %s122
      %p133 = scmp.eq.s32.totalorder %s17, 0
      %p134 = por %p132, %p133
      %p135 = scmp.ne.s32.totalorder %s121, %s122
      %p136 = scmp.eq.s32.totalorder %s18, 1
      %p137 = por %p135, %p136
      %p139 = scmp.ne.s32.totalorder %s122, %s138
      %p140 = scmp.eq.s32.totalorder %s18, 0
      %p141 = por %p139, %p140
      %p142 = scmp.le.s32.totalorder 1, %s12
      %p143 = scmp.lt.s32.totalorder %s12, 3
      %p144 = pnand %p142, %p143
      %p145 = pneg %p144
      // Predicated region
      $region9: #{se_bottleneck_forward.11} parent=5 // pred_check
        _
      $region10: #{se_bottleneck_forward.11} parent=5 // pred_check_branch
        %147 = sbr.rel (%p144) target = $region12
      $region11: #{se_bottleneck_forward.11} parent=5 // pred_region
        %s148 = ssub.s32 %s12, 1
      $region12: #{se_bottleneck_forward.11} parent=5 // pred_fallthru
        _
      %p149 = scmp.lt.s32.totalorder %s12, 2
      // Predicated region
      $region13: #{se_bottleneck_forward.11} parent=5 // pred_check
        %p150 = pneg %p149
      $region14: #{se_bottleneck_forward.11} parent=5 // pred_check_branch
        %152 = sbr.rel (%p150) target = $region16
      $region15: #{se_bottleneck_forward.11} parent=5 // pred_region
        // Predicated region
        $region17: #{se_bottleneck_forward.11} parent=15 // pred_check
          %p153 = pneg %p46
        $region18: #{se_bottleneck_forward.11} parent=15 // pred_check_branch
          %155 = sbr.rel (%p153) target = $region20
        $region19: #{se_bottleneck_forward.11} parent=15 // pred_region
          %s156 = smul.u32 8, %s20
          %p157 = scmp.lt.s32.totalorder %s19, 1
          %s158 = scalar_select %p157, %s19, 1
          %p159 = scmp.lt.s32.totalorder %s156, 7
          %s160 = scalar_select %p159, %s156, 7
          %s161 = smul.addr %s158, 8
          %s162 = sadd.s32 %s160, %s161
          %s163 = smul.addr %s162, 4
          %s164 = scalar_lea.vmem %s0, %s163
          %s165 = smul.u32 8, %s20
        $region20: #{se_bottleneck_forward.11} parent=15 // pred_fallthru
          _
        // Predicated region
        $region21: #{se_bottleneck_forward.11} parent=15 // pred_check
          %p166 = pneg %p74
        $region22: #{se_bottleneck_forward.11} parent=15 // pred_check_branch
          %168 = sbr.rel (%p166) target = $region24
        $region23: #{se_bottleneck_forward.11} parent=15 // pred_region
          %s169 = smul.u32 8, %s20
          %p170 = scmp.lt.s32.totalorder %s19, 1
          %s171 = scalar_select %p170, %s19, 1
          %p172 = scmp.lt.s32.totalorder %s169, 7
          %s173 = scalar_select %p172, %s169, 7
          %s174 = smul.addr %s171, 8
          %s175 = sadd.s32 %s173, %s174
          %s176 = smul.addr %s175, 4
          %s177 = scalar_lea.vmem %s1, %s176
          %s178 = smul.u32 8, %s20
        $region24: #{se_bottleneck_forward.11} parent=15 // pred_fallthru
          _
        // Predicated region
        $region25: #{se_bottleneck_forward.11} parent=15 // pred_check
          %p179 = pneg %p100
        $region26: #{se_bottleneck_forward.11} parent=15 // pred_check_branch
          %181 = sbr.rel (%p179) target = $region28
        $region27: #{se_bottleneck_forward.11} parent=15 // pred_region
          %p182 = scmp.lt.s32.totalorder %s19, 1
          %s183 = scalar_select %p182, %s19, 1
          %s184 = scalar_lea.vmem %s2, %s183
        $region28: #{se_bottleneck_forward.11} parent=15 // pred_fallthru
          _
      $region16: #{se_bottleneck_forward.11} parent=5 // pred_fallthru
        _
      %p185 = scmp.le.s32.totalorder 1, %s12
      %p186 = scmp.lt.s32.totalorder %s12, 3
      %p187 = pnand %p185, %p186
      %p188 = pneg %p187
      // Predicated region
      $region29: #{se_bottleneck_forward.11} parent=5 // pred_check
        _
      $region30: #{se_bottleneck_forward.11} parent=5 // pred_check_branch
        %190 = sbr.rel (%p187) target = $region32
      $region31: #{se_bottleneck_forward.11} parent=5 // pred_region
        %s191 = ssub.s32 %s12, 1
        %s192 = smul.u32 8, %s22
        %p193 = scmp.lt.s32.totalorder %s21, 1
        %s194 = scalar_select %p193, %s21, 1
        %p195 = scmp.lt.s32.totalorder %s192, 7
        %s196 = scalar_select %p195, %s192, 7
        %s197 = smul.addr %s194, 8
        %s198 = sadd.s32 %s196, %s197
        %s199 = smul.addr %s198, 4
        %s200 = scalar_lea.vmem %s0, %s199
        %p201 = pneg %p52
        %p202 = pneg %p49
        %s203 = smul.u32 8, %s22
        %p204 = scmp.lt.s32.totalorder %s21, 1
        %s205 = scalar_select %p204, %s21, 1
        %p206 = scmp.lt.s32.totalorder %s203, 7
        %s207 = scalar_select %p206, %s203, 7
        %s208 = smul.addr %s205, 8
        %s209 = sadd.s32 %s207, %s208
        %s210 = smul.addr %s209, 4
        %s211 = scalar_lea.vmem %s1, %s210
        %p212 = pneg %p80
        %p213 = pneg %p77
        %p214 = scmp.lt.s32.totalorder %s21, 1
        %s215 = scalar_select %p214, %s21, 1
        %s216 = scalar_lea.vmem %s2, %s215
        %p217 = pneg %p106
        %p218 = pneg %p103
        %p219 = pneg %p134
        %p220 = pneg %p131
        %s221 = sand.u32 %s121, 1
        %s222 = scalar_lea.sflag [#allocation3], %s221
        %s223 = sand.u32 %s121, 1
        %s224 = smul.addr %s223, 64
        %s225 = scalar_lea.vmem [#allocation2], %s224
        %s226 = smul.u32 8, %s22
        %p227 = scmp.lt.s32.totalorder %s21, 1
        %s228 = scalar_select %p227, %s21, 1
        %p229 = scmp.lt.s32.totalorder %s226, 7
        %s230 = scalar_select %p229, %s226, 7
        %s231 = smul.addr %s228, 8
        %s232 = sadd.s32 %s230, %s231
        %s233 = smul.addr %s232, 4
        %s234 = scalar_lea.vmem %s0, %s233
        %s235 = smul.u32 8, %s22
        %s236 = smul.u32 8, %s22
        %p237 = scmp.lt.s32.totalorder %s21, 1
        %s238 = scalar_select %p237, %s21, 1
        %p239 = scmp.lt.s32.totalorder %s236, 7
        %s240 = scalar_select %p239, %s236, 7
        %s241 = smul.addr %s238, 8
        %s242 = sadd.s32 %s240, %s241
        %s243 = smul.addr %s242, 4
        %s244 = scalar_lea.vmem %s1, %s243
        %s245 = smul.u32 8, %s22
        %p246 = scmp.lt.s32.totalorder %s21, 1
        %s247 = scalar_select %p246, %s21, 1
        %s248 = scalar_lea.vmem %s2, %s247
        %s249 = smul.u32 8, %s22
        %v250 = vld [vmem:[%s234] sm:$0xf]
        %v251 = vld [vmem:[%s234 + $0x4] sm:$0xf]
        %v252 = vld [vmem:[%s234 + $0x8] sm:$0xf]
        %v253 = vld [vmem:[%s234 + $0xc] sm:$0xf]
        %v254 = vld [vmem:[%s234 + $0x10] sm:$0xf]
        %v255 = vld [vmem:[%s234 + $0x14] sm:$0xf]
        %v256 = vld [vmem:[%s234 + $0x18] sm:$0xf]
        %v257 = vld [vmem:[%s234 + $0x1c] sm:$0xf]
        %v258 = vunpack.c.l.bf16 %v250
        %v259 = vunpack.c.l.bf16 %v251
        %v260 = vunpack.c.l.bf16 %v252
        %v261 = vunpack.c.l.bf16 %v253
        %v262 = vunpack.c.l.bf16 %v254
        %v263 = vunpack.c.l.bf16 %v255
        %v264 = vunpack.c.l.bf16 %v256
        %v265 = vunpack.c.l.bf16 %v257
        %v266 = vld [vmem:[%s248] sm:$0x1]
        %v268 = vlaneseq
        %v269 = vshrl.u32 %v268, 7
        %v270 = vsub.s32 0, %v269
        %v271 = vrot.slane %v266, %v270
        %v273 = vmul.f32 %v258, %v271
        %v274 = vmul.f32 %v259, %v271
        %v275 = vmul.f32 %v260, %v271
        %v276 = vmul.f32 %v261, %v271
        %v277 = vmul.f32 %v262, %v271
        %v278 = vmul.f32 %v263, %v271
        %v279 = vmul.f32 %v264, %v271
        %v280 = vmul.f32 %v265, %v271
        %v281 = vld [vmem:[%s244] sm:$0xf]
        %v282 = vld [vmem:[%s244 + $0x4] sm:$0xf]
        %v283 = vld [vmem:[%s244 + $0x8] sm:$0xf]
        %v284 = vld [vmem:[%s244 + $0xc] sm:$0xf]
        %v285 = vld [vmem:[%s244 + $0x10] sm:$0xf]
        %v286 = vld [vmem:[%s244 + $0x14] sm:$0xf]
        %v287 = vld [vmem:[%s244 + $0x18] sm:$0xf]
        %v288 = vld [vmem:[%s244 + $0x1c] sm:$0xf]
        %v289 = vunpack.c.l.bf16 %v281
        %v290 = vunpack.c.l.bf16 %v282
        %v291 = vunpack.c.l.bf16 %v283
        %v292 = vunpack.c.l.bf16 %v284
        %v293 = vunpack.c.l.bf16 %v285
        %v294 = vunpack.c.l.bf16 %v286
        %v295 = vunpack.c.l.bf16 %v287
        %v296 = vunpack.c.l.bf16 %v288
        %v297 = vadd.f32 %v273, %v289
        %v298 = vadd.f32 %v274, %v290
        %v299 = vadd.f32 %v275, %v291
        %v300 = vadd.f32 %v276, %v292
        %v301 = vadd.f32 %v277, %v293
        %v302 = vadd.f32 %v278, %v294
        %v303 = vadd.f32 %v279, %v295
        %v304 = vadd.f32 %v280, %v296
        %vm305 = vcmask 261120
        %306 = vst.msk [vmem:[%s225] sm:$0xff] %vm305, %v297
        %307 = vst.msk [vmem:[%s225 + $0x8] sm:$0xff] %vm305, %v298
        %308 = vst.msk [vmem:[%s225 + $0x10] sm:$0xff] %vm305, %v299
        %309 = vst.msk [vmem:[%s225 + $0x18] sm:$0xff] %vm305, %v300
        %310 = vst.msk [vmem:[%s225 + $0x20] sm:$0xff] %vm305, %v301
        %311 = vst.msk [vmem:[%s225 + $0x28] sm:$0xff] %vm305, %v302
        %312 = vst.msk [vmem:[%s225 + $0x30] sm:$0xff] %vm305, %v303
        %313 = vst.msk [vmem:[%s225 + $0x38] sm:$0xff] %vm305, %v304
        %s314 = sand.u32 %s121, 1
        %s315 = scalar_lea.sflag [#allocation3], %s314
        %s316 = sand.u32 %s121, 1
        %s317 = smul.addr %s316, 64
        %s318 = scalar_lea.vmem [#allocation2], %s317
        // Predicated region
        $region33: #{se_bottleneck_forward.11} parent=31 // pred_check
          %p319 = pneg %p131
        $region34: #{se_bottleneck_forward.11} parent=31 // pred_check_branch
          %321 = sbr.rel (%p319) target = $region36
        $region35: #{se_bottleneck_forward.11} parent=31 // pred_region
          %s322 = smul.u32 8, %s22
          %s324 = ssub.s32 1024, 1024
          %325 = vsyncadd %s315, %s324
          %s326 = smul.addr %s21, 8
          %s327 = sadd.s32 %s322, %s326
          %s328 = smul.addr %s327, 128
          %s329 = scalar_lea.hbm %s3, %s328
          %s330 = sshll.u32 %s318, 4
          %s331 = int_to_ptr.vmem [resolvable:$true] %s330
          %336 = dma.vmem_to_hbm [thread:$0]  %s331, 1024, %s329, %s315, 128, 128, 8
        $region36: #{se_bottleneck_forward.11} parent=31 // pred_fallthru
          _
      $region32: #{se_bottleneck_forward.11} parent=5 // pred_fallthru
        _
      %p337 = scmp.le.s32.totalorder 2, %s12
      // Predicated region
      $region37: #{se_bottleneck_forward.11} parent=5 // pred_check
        %p338 = pneg %p337
      $region38: #{se_bottleneck_forward.11} parent=5 // pred_check_branch
        %340 = sbr.rel (%p338) target = $region40
      $region39: #{se_bottleneck_forward.11} parent=5 // pred_region
        %s341 = ssub.s32 %s12, 2
        // Predicated region
        $region41: #{se_bottleneck_forward.11} parent=39 // pred_check
          %p342 = pneg %p137
        $region42: #{se_bottleneck_forward.11} parent=39 // pred_check_branch
          %344 = sbr.rel (%p342) target = $region44
        $region43: #{se_bottleneck_forward.11} parent=39 // pred_region
          %s345 = sand.u32 %s122, 1
          %s346 = scalar_lea.sflag [#allocation3], %s345
          %s347 = sand.u32 %s122, 1
          %s348 = smul.addr %s347, 64
          %s349 = scalar_lea.vmem [#allocation2], %s348
          %350 = dma.done %s346, 1024
        $region44: #{se_bottleneck_forward.11} parent=39 // pred_fallthru
          _
      $region40: #{se_bottleneck_forward.11} parent=5 // pred_fallthru
        _
    $region6: #{se_bottleneck_forward.11} parent=1 // loop_footer
      %s16 = sadd.s32 1, %s12
    $region7: #{se_bottleneck_forward.11} parent=1 // loop_footer_branch
      %11 = sbr.rel target = $region3
    $region8: #{se_bottleneck_forward.11} parent=1 // loop_exit
      _
    %351 = vsyncpa [#allocation3], 1
    %s352 = scalar_lea.sflag [#allocation3], 1
    %353 = vsyncpa %s352, 1

// kernel: se_bottleneck_forward.7
$region0: #{se_bottleneck_forward.7}
  #allocation0 [shape = 'u32[]', space=smem, size = 0x4, offset = 0x4, fixed_abs, tag = 'smem constant byte address 0x4 - core index']
  #allocation1 [shape = 'u32[144,128]{1,0:T(1,128)}', space=vmem, size = 0x12000, scoped, tag = 'internal scratch']
  %s0 = inlined_call_operand.vmem [shape: bf16[128,16], index: 0, kind: input, shape index: {}]
  %s1 = inlined_call_operand.vmem [shape: f32[1,16], index: 1, kind: input, shape index: {}]
  %s2 = inlined_call_operand.vmem [shape: f32[1,16], index: 2, kind: input, shape index: {}]
  %s3 = inlined_call_operand.vmem [shape: bf16[16,32], index: 3, kind: input, shape index: {}]
  %s4 = inlined_call_operand.vmem [shape: f32[1,32], index: 4, kind: input, shape index: {}]
  %s5 = inlined_call_operand.vmem [shape: bf16[128,32], index: 5, kind: output, shape index: {}]
  %s6 = sld [smem:[#allocation0]]
  $region30: #{se_bottleneck_forward.7} parent=0
    _
  %s8 = ssub.s32 1, %s6
  %s9 = scalar_select 0, %s8, %s6
  // Predicated region
  $region2: #{se_bottleneck_forward.7} parent=0 // pred_check
    _
  $region3: #{se_bottleneck_forward.7} parent=0 // pred_check_branch
    %11 = sbr.rel (0) target = $region5
  $region4: #{se_bottleneck_forward.7} parent=0 // pred_region
    _
  $region5: #{se_bottleneck_forward.7} parent=0 // pred_fallthru
    _
  // Predicated region
  $region6: #{se_bottleneck_forward.7} parent=0 // pred_check
    _
  $region7: #{se_bottleneck_forward.7} parent=0 // pred_check_branch
    %13 = sbr.rel (0) target = $region9
  $region8: #{se_bottleneck_forward.7} parent=0 // pred_region
    _
  $region9: #{se_bottleneck_forward.7} parent=0 // pred_fallthru
    _
  // Predicated region
  $region10: #{se_bottleneck_forward.7} parent=0 // pred_check
    _
  $region11: #{se_bottleneck_forward.7} parent=0 // pred_check_branch
    %15 = sbr.rel (0) target = $region13
  $region12: #{se_bottleneck_forward.7} parent=0 // pred_region
    _
  $region13: #{se_bottleneck_forward.7} parent=0 // pred_fallthru
    _
  // Predicated region
  $region14: #{se_bottleneck_forward.7} parent=0 // pred_check
    _
  $region15: #{se_bottleneck_forward.7} parent=0 // pred_check_branch
    %17 = sbr.rel (0) target = $region17
  $region16: #{se_bottleneck_forward.7} parent=0 // pred_region
    _
  $region17: #{se_bottleneck_forward.7} parent=0 // pred_fallthru
    _
  // Predicated region
  $region18: #{se_bottleneck_forward.7} parent=0 // pred_check
    _
  $region19: #{se_bottleneck_forward.7} parent=0 // pred_check_branch
    %19 = sbr.rel (0) target = $region21
  $region20: #{se_bottleneck_forward.7} parent=0 // pred_region
    _
  $region21: #{se_bottleneck_forward.7} parent=0 // pred_fallthru
    _
  %v21 = vld [vmem:[%s0] sm:$0xf]
  %v22 = vld [vmem:[%s0 + $0x4] sm:$0xf]
  %v23 = vld [vmem:[%s0 + $0x8] sm:$0xf]
  %v24 = vld [vmem:[%s0 + $0xc] sm:$0xf]
  %v25 = vld [vmem:[%s0 + $0x10] sm:$0xf]
  %v26 = vld [vmem:[%s0 + $0x14] sm:$0xf]
  %v27 = vld [vmem:[%s0 + $0x18] sm:$0xf]
  %v28 = vld [vmem:[%s0 + $0x1c] sm:$0xf]
  %v29 = vld [vmem:[%s0 + $0x20] sm:$0xf]
  %v30 = vld [vmem:[%s0 + $0x24] sm:$0xf]
  %v31 = vld [vmem:[%s0 + $0x28] sm:$0xf]
  %v32 = vld [vmem:[%s0 + $0x2c] sm:$0xf]
  %v33 = vld [vmem:[%s0 + $0x30] sm:$0xf]
  %v34 = vld [vmem:[%s0 + $0x34] sm:$0xf]
  %v35 = vld [vmem:[%s0 + $0x38] sm:$0xf]
  %v36 = vld [vmem:[%s0 + $0x3c] sm:$0xf]
  %v37 = vunpack.c.l.bf16 %v21
  %v38 = vunpack.c.l.bf16 %v22
  %v39 = vunpack.c.l.bf16 %v23
  %v40 = vunpack.c.l.bf16 %v24
  %v41 = vunpack.c.l.bf16 %v25
  %v42 = vunpack.c.l.bf16 %v26
  %v43 = vunpack.c.l.bf16 %v27
  %v44 = vunpack.c.l.bf16 %v28
  %v45 = vunpack.c.l.bf16 %v29
  %v46 = vunpack.c.l.bf16 %v30
  %v47 = vunpack.c.l.bf16 %v31
  %v48 = vunpack.c.l.bf16 %v32
  %v49 = vunpack.c.l.bf16 %v33
  %v50 = vunpack.c.l.bf16 %v34
  %v51 = vunpack.c.l.bf16 %v35
  %v52 = vunpack.c.l.bf16 %v36
  %v53 = vld [vmem:[%s1] sm:$0x1]
  %v55 = vlaneseq
  %v56 = vshrl.u32 %v55, 7
  %v57 = vsub.s32 0, %v56
  %v58 = vrot.slane %v53, %v57
  %v60 = vmul.f32 %v37, %v58
  %v61 = vmul.f32 %v38, %v58
  %v62 = vmul.f32 %v39, %v58
  %v63 = vmul.f32 %v40, %v58
  %v64 = vmul.f32 %v41, %v58
  %v65 = vmul.f32 %v42, %v58
  %v66 = vmul.f32 %v43, %v58
  %v67 = vmul.f32 %v44, %v58
  %v68 = vmul.f32 %v45, %v58
  %v69 = vmul.f32 %v46, %v58
  %v70 = vmul.f32 %v47, %v58
  %v71 = vmul.f32 %v48, %v58
  %v72 = vmul.f32 %v49, %v58
  %v73 = vmul.f32 %v50, %v58
  %v74 = vmul.f32 %v51, %v58
  %v75 = vmul.f32 %v52, %v58
  %v76 = vld [vmem:[%s2] sm:$0x1]
  %v78 = vlaneseq
  %v79 = vshrl.u32 %v78, 7
  %v80 = vsub.s32 0, %v79
  %v81 = vrot.slane %v76, %v80
  %v83 = vadd.f32 %v60, %v81
  %v84 = vadd.f32 %v61, %v81
  %v85 = vadd.f32 %v62, %v81
  %v86 = vadd.f32 %v63, %v81
  %v87 = vadd.f32 %v64, %v81
  %v88 = vadd.f32 %v65, %v81
  %v89 = vadd.f32 %v66, %v81
  %v90 = vadd.f32 %v67, %v81
  %v91 = vadd.f32 %v68, %v81
  %v92 = vadd.f32 %v69, %v81
  %v93 = vadd.f32 %v70, %v81
  %v94 = vadd.f32 %v71, %v81
  %v95 = vadd.f32 %v72, %v81
  %v96 = vadd.f32 %v73, %v81
  %v97 = vadd.f32 %v74, %v81
  %v98 = vadd.f32 %v75, %v81
  %v99 = vmax.f32 %v83, 0.0
  %v100 = vmax.f32 %v84, 0.0
  %v101 = vmax.f32 %v85, 0.0
  %v102 = vmax.f32 %v86, 0.0
  %v103 = vmax.f32 %v87, 0.0
  %v104 = vmax.f32 %v88, 0.0
  %v105 = vmax.f32 %v89, 0.0
  %v106 = vmax.f32 %v90, 0.0
  %v107 = vmax.f32 %v91, 0.0
  %v108 = vmax.f32 %v92, 0.0
  %v109 = vmax.f32 %v93, 0.0
  %v110 = vmax.f32 %v94, 0.0
  %v111 = vmax.f32 %v95, 0.0
  %v112 = vmax.f32 %v96, 0.0
  %v113 = vmax.f32 %v97, 0.0
  %v114 = vmax.f32 %v98, 0.0
  %v115 = vpack.c.bf16 %v100, %v99
  %v116 = vpack.c.bf16 %v102, %v101
  %v117 = vpack.c.bf16 %v104, %v103
  %v118 = vpack.c.bf16 %v106, %v105
  %v119 = vpack.c.bf16 %v108, %v107
  %v120 = vpack.c.bf16 %v110, %v109
  %v121 = vpack.c.bf16 %v112, %v111
  %v122 = vpack.c.bf16 %v114, %v113
  %v123 = vld [vmem:[%s3] sm:$0xf]
  %v124 = vld [vmem:[%s3 + $0x4] sm:$0xf]
  %v125 = vld [vmem:[%s4] sm:$0x1]
  %v127 = vlaneseq
  %v128 = vshrl.u32 %v127, 7
  %v129 = vsub.s32 0, %v128
  %v130 = vrot.slane %v125, %v129
  %v134 = vunpack.c.l.b16 %v123
  %v135 = vunpack.c.l.b16 %v124
  %v136 = vpack.c.b16 %v135, %v134
  %vm138 = vcmask 130048
  %v140 = vsel %vm138, %v115, 0
  %v143 = vsel %vm138, %v116, 0
  %v146 = vsel %vm138, %v117, 0
  %v149 = vsel %vm138, %v118, 0
  %v152 = vsel %vm138, %v119, 0
  %v155 = vsel %vm138, %v120, 0
  %v158 = vsel %vm138, %v121, 0
  %v161 = vsel %vm138, %v122, 0
  %163 = vmatprep.subr.bf16.mxu0 0
  %164 = vmatpush1.bf16.msra.mxu0 0
  %165 = vmatprep.subr.bf16.mxu0 0
  %166 = vmatpush1.bf16.msra.mxu0 0
  %167 = vmatprep.subr.bf16.mxu0 0
  %168 = vmatpush1.bf16.msra.mxu0 0
  %169 = vmatprep.subr.bf16.mxu0 0
  %170 = vmatpush1.bf16.msra.mxu0 0
  %171 = vmatprep.subr.bf16.mxu0 0
  %172 = vmatpush1.bf16.msra.mxu0 0
  %173 = vmatprep.subr.bf16.mxu0 0
  %174 = vmatpush1.bf16.msra.mxu0 0
  %175 = vmatprep.subr.bf16.mxu0 0
  %176 = vmatpush1.bf16.msra.mxu0 0
  %177 = vmatprep.subr.bf16.mxu0 0
  %178 = vmatpush1.bf16.msra.mxu0 %v136
  %179 = vmatprep.subr.bf16.mxu0 0
  %180 = vmatpush2.bf16.msra.mxu0 0
  %181 = vmatprep.subr.bf16.mxu0 0
  %182 = vmatpush2.bf16.msra.mxu0 0
  %183 = vmatprep.subr.bf16.mxu0 0
  %184 = vmatpush2.bf16.msra.mxu0 0
  %185 = vmatprep.subr.bf16.mxu0 0
  %186 = vmatpush2.bf16.msra.mxu0 0
  %187 = vmatprep.subr.bf16.mxu0 0
  %188 = vmatpush2.bf16.msra.mxu0 0
  %189 = vmatprep.subr.bf16.mxu0 0
  %190 = vmatpush2.bf16.msra.mxu0 0
  %191 = vmatprep.subr.bf16.mxu0 0
  %192 = vmatpush2.bf16.msra.mxu0 0
  %193 = vmatprep.subr.bf16.mxu0 0
  %194 = vmatpush2.bf16.msra.mxu0 0
  %195 = vmatprep.mubr.bf16.mxu0 0
  %196 = vmatmul.mubr.bf16.gmra.mxu0 %v140
  %v197 = vpop.f32.mrf.mxu0
  %v198 = vadd.f32 %v130, %v197
  %v199 = vpop.f32.mrf.mxu0
  %v200 = vpop.f32.mrf.mxu0
  %v201 = vadd.f32 %v130, %v200
  %v202 = vpop.f32.mrf.mxu0
  %203 = vmatprep.mubr.bf16.mxu0 0
  %204 = vmatmul.mubr.bf16.gmra.mxu0 %v143
  %v205 = vpop.f32.mrf.mxu0
  %v206 = vadd.f32 %v130, %v205
  %v207 = vpop.f32.mrf.mxu0
  %v208 = vpop.f32.mrf.mxu0
  %v209 = vadd.f32 %v130, %v208
  %v210 = vpop.f32.mrf.mxu0
  %211 = vmatprep.mubr.bf16.mxu0 0
  %212 = vmatmul.mubr.bf16.gmra.mxu0 %v146
  %v213 = vpop.f32.mrf.mxu0
  %v214 = vadd.f32 %v130, %v213
  %v215 = vpop.f32.mrf.mxu0
  %v216 = vpop.f32.mrf.mxu0
  %v217 = vadd.f32 %v130, %v216
  %v218 = vpop.f32.mrf.mxu0
  %219 = vmatprep.mubr.bf16.mxu0 0
  %220 = vmatmul.mubr.bf16.gmra.mxu0 %v149
  %v221 = vpop.f32.mrf.mxu0
  %v222 = vadd.f32 %v130, %v221
  %v223 = vpop.f32.mrf.mxu0
  %v224 = vpop.f32.mrf.mxu0
  %v225 = vadd.f32 %v130, %v224
  %v226 = vpop.f32.mrf.mxu0
  %227 = vmatprep.mubr.bf16.mxu0 0
  %228 = vmatmul.mubr.bf16.gmra.mxu0 %v152
  %v229 = vpop.f32.mrf.mxu0
  %v230 = vadd.f32 %v130, %v229
  %v231 = vpop.f32.mrf.mxu0
  %v232 = vpop.f32.mrf.mxu0
  %v233 = vadd.f32 %v130, %v232
  %v234 = vpop.f32.mrf.mxu0
  %235 = vmatprep.mubr.bf16.mxu0 0
  %236 = vmatmul.mubr.bf16.gmra.mxu0 %v155
  %v237 = vpop.f32.mrf.mxu0
  %v238 = vadd.f32 %v130, %v237
  %v239 = vpop.f32.mrf.mxu0
  %v240 = vpop.f32.mrf.mxu0
  %v241 = vadd.f32 %v130, %v240
  %v242 = vpop.f32.mrf.mxu0
  %243 = vmatprep.mubr.bf16.mxu0 0
  %244 = vmatmul.mubr.bf16.gmra.mxu0 %v158
  %v245 = vpop.f32.mrf.mxu0
  %v246 = vadd.f32 %v130, %v245
  %v247 = vpop.f32.mrf.mxu0
  %v248 = vpop.f32.mrf.mxu0
  %v249 = vadd.f32 %v130, %v248
  %v250 = vpop.f32.mrf.mxu0
  %251 = vmatprep.mubr.bf16.mxu0 0
  %252 = vmatmul.mubr.bf16.gmra.mxu0 %v161
  %v253 = vpop.f32.mrf.mxu0
  %v254 = vadd.f32 %v130, %v253
  %v255 = vpop.f32.mrf.mxu0
  %v256 = vpop.f32.mrf.mxu0
  %v257 = vadd.f32 %v130, %v256
  %v258 = vpop.f32.mrf.mxu0
  %259 = vdwg.mxu0
  %v260 = vpack.c.bf16 %v201, %v198
  %v261 = vpack.c.bf16 %v209, %v206
  %v262 = vpack.c.bf16 %v217, %v214
  %v263 = vpack.c.bf16 %v225, %v222
  %v264 = vpack.c.bf16 %v233, %v230
  %v265 = vpack.c.bf16 %v241, %v238
  %v266 = vpack.c.bf16 %v249, %v246
  %v267 = vpack.c.bf16 %v257, %v254
  %v276 = vunpack.c.l.b16 %v260
  %v277 = vunpack.c.h.b16 %v260
  %v278 = vunpack.c.l.b16 %v261
  %v279 = vunpack.c.h.b16 %v261
  %v280 = vunpack.c.l.b16 %v262
  %v281 = vunpack.c.h.b16 %v262
  %v282 = vunpack.c.l.b16 %v263
  %v283 = vunpack.c.h.b16 %v263
  %v284 = vunpack.c.l.b16 %v264
  %v285 = vunpack.c.h.b16 %v264
  %v286 = vunpack.c.l.b16 %v265
  %v287 = vunpack.c.h.b16 %v265
  %v288 = vunpack.c.l.b16 %v266
  %v289 = vunpack.c.h.b16 %v266
  %v290 = vunpack.c.l.b16 %v267
  %v291 = vunpack.c.h.b16 %v267
  %v292 = vpack.c.b16 %v276, %v276
  %v293 = vpack.c.b16 %v277, %v277
  %v294 = vpack.c.b16 %v278, %v278
  %v295 = vpack.c.b16 %v279, %v279
  %v296 = vpack.c.b16 %v280, %v280
  %v297 = vpack.c.b16 %v281, %v281
  %v298 = vpack.c.b16 %v282, %v282
  %v299 = vpack.c.b16 %v283, %v283
  %v300 = vpack.c.b16 %v284, %v284
  %v301 = vpack.c.b16 %v285, %v285
  %v302 = vpack.c.b16 %v286, %v286
  %v303 = vpack.c.b16 %v287, %v287
  %v304 = vpack.c.b16 %v288, %v288
  %v305 = vpack.c.b16 %v289, %v289
  %v306 = vpack.c.b16 %v290, %v290
  %v307 = vpack.c.b16 %v291, %v291
  %vm324 = vcmask 257024
  %325 = vst.msk [vmem:[%s5] sm:$0xf] %vm324, %v292
  %326 = vst.msk [vmem:[%s5 + $0x4] sm:$0xf] %vm324, %v293
  %327 = vst.msk [vmem:[%s5 + $0x8] sm:$0xf] %vm324, %v294
  %328 = vst.msk [vmem:[%s5 + $0xc] sm:$0xf] %vm324, %v295
  %329 = vst.msk [vmem:[%s5 + $0x10] sm:$0xf] %vm324, %v296
  %330 = vst.msk [vmem:[%s5 + $0x14] sm:$0xf] %vm324, %v297
  %331 = vst.msk [vmem:[%s5 + $0x18] sm:$0xf] %vm324, %v298
  %332 = vst.msk [vmem:[%s5 + $0x1c] sm:$0xf] %vm324, %v299
  %333 = vst.msk [vmem:[%s5 + $0x20] sm:$0xf] %vm324, %v300
  %334 = vst.msk [vmem:[%s5 + $0x24] sm:$0xf] %vm324, %v301
  %335 = vst.msk [vmem:[%s5 + $0x28] sm:$0xf] %vm324, %v302
  %336 = vst.msk [vmem:[%s5 + $0x2c] sm:$0xf] %vm324, %v303
  %337 = vst.msk [vmem:[%s5 + $0x30] sm:$0xf] %vm324, %v304
  %338 = vst.msk [vmem:[%s5 + $0x34] sm:$0xf] %vm324, %v305
  %339 = vst.msk [vmem:[%s5 + $0x38] sm:$0xf] %vm324, %v306
  %340 = vst.msk [vmem:[%s5 + $0x3c] sm:$0xf] %vm324, %v307
  // Predicated region
  $region22: #{se_bottleneck_forward.7} parent=0 // pred_check
    _
  $region23: #{se_bottleneck_forward.7} parent=0 // pred_check_branch
    %342 = sbr.rel (0) target = $region25
  $region24: #{se_bottleneck_forward.7} parent=0 // pred_region
    _
  $region25: #{se_bottleneck_forward.7} parent=0 // pred_fallthru
    _
  // Predicated region
  $region26: #{se_bottleneck_forward.7} parent=0 // pred_check
    _
  $region27: #{se_bottleneck_forward.7} parent=0 // pred_check_branch
    %344 = sbr.rel (0) target = $region29
  $region28: #{se_bottleneck_forward.7} parent=0 // pred_region
    _
  $region29: #{se_bottleneck_forward.7} parent=0 // pred_fallthru
    _

</llo_original>
